<compile_context>
chip_gen: v5e
topology: v5e:2x2
jax: 0.10.0
libtpu: 0.0.40
codegen_flags: <defaults>
</compile_context>

<pallas_src>
import functools
import math

import jax
import jax.numpy as jnp
from jax.experimental import pallas as pl
from jax.experimental.pallas import tpu as pltpu

EPS = 1e-12
TWO_PI_ISH = 2.0 * 3.14  # matches the literal "2 * 3.14" used in DMT


def _cal_gamma(v):
    # gamma((v+1)/2) / (sqrt(v*pi) * gamma(v/2)), via lgamma for stability.
    return math.exp(math.lgamma((v + 1.0) / 2.0) - math.lgamma(v / 2.0)) / math.sqrt(
        v * math.pi
    )


def source_loss_kernel(
    x_ref, xt_ref, zrow_ref, zcol_ref,
    rsqx_ref, csqx_ref, rsqz_ref, csqz_ref, rho_ref, inv_sigma_ref,
    out_ref,
    *, tm, tn, d_lat, n_real, mask_pad, use_vpu_latent, exact_log_q,
    log_c_in, expnt_in, inv_v_in, log_c_lat, expnt_lat, inv_v_lat,
):
    j = pl.program_id(0)          # column-tile index (outer grid axis)
    i = pl.program_id(1)          # row-tile index (inner grid axis)
    r0 = i * tm
    c0 = j * tn

    # ---- P: input-space squared distances, (tm, tn) tile on the MXU ----
    cross_x = jax.lax.dot_general(
        x_ref[...], xt_ref[...], (((1,), (0,)), ((), ())),
        preferred_element_type=jnp.float32)                       # (tm, tn)
    dis_p = jnp.maximum(rsqx_ref[...] + csqx_ref[...] - 2.0 * cross_x, 1e-12)
    dr_p = jnp.maximum((dis_p - rho_ref[...]) * inv_sigma_ref[...], 0.0)
    p = jnp.exp(log_c_in + expnt_in * jnp.log1p(dr_p * inv_v_in))

    # ---- Q: latent-space similarity (rho=0, sigma=1) ----
    if use_vpu_latent:
        # D_lat is tiny (e.g. 2): a K=2 MXU contraction wastes the vmatmul
        # cadence; compute the cross term as D_lat broadcast FMAs on the VPU.
        cross_z = zrow_ref[0] * zcol_ref[0]                       # (tm,1)*(1,tn)
        for k in range(1, d_lat):
            cross_z = cross_z + zrow_ref[k] * zcol_ref[k]
    else:
        cross_z = jax.lax.dot_general(
            zrow_ref[...], zcol_ref[...], (((1,), (0,)), ((), ())),
            preferred_element_type=jnp.float32)
    dis_q = jnp.maximum(rsqz_ref[...] + csqz_ref[...] - 2.0 * cross_z, 1e-12)
    log_q = log_c_lat + expnt_lat * jnp.log1p(dis_q * inv_v_lat)
    q = jnp.exp(log_q)

    # ---- two-way divergence, algebraically fused ----
    p_ = p + EPS                      # == p*(1-2*EPS)+EPS in float32
    if exact_log_q:
        log_q_term = jnp.log(q + 2.0 * EPS)
    else:
        # Valid because v_latent is small => q >> EPS, so log(q_+EPS) == log_q.
        log_q_term = log_q
    log1m = jnp.log1p(-q)             # == log(1 - q_ + EPS) in float32
    contrib = log1m + p_ * (log_q_term - log1m)

    row_ids = r0 + jax.lax.broadcasted_iota(jnp.int32, (tm, 1), 0)
    col_ids = c0 + jax.lax.broadcasted_iota(jnp.int32, (1, tn), 1)

    if mask_pad:
        valid = jnp.logical_and(row_ids < n_real, col_ids < n_real)
        contrib = jnp.where(valid, contrib, 0.0)

    # Collapse only the sublane (row) direction; keep the lane (column) axis
    # live.  The expensive cross-lane reduce happens once, in XLA.
    out_ref[0, :, :] = jnp.sum(contrib, axis=0, keepdims=True)

    # ---- exact diagonal removal: only tiles that cross the diagonal pay ----
    @pl.when(jnp.logical_and(r0 < c0 + tn, c0 < r0 + tm))
    def _():
        diag = jnp.sum(jnp.where(row_ids == col_ids, contrib, 0.0),
                       axis=0, keepdims=True)
        out_ref[0, :, :] = out_ref[0, :, :] - diag


def _choose_tiles(n, tm=128, tn_max=2048):
    """Pick (padded_n, tm, tn): tm | padded_n, tn | padded_n, 128 | tn."""
    tm = max(8, (int(tm) // 8) * 8)
    align = tm * 128 // math.gcd(tm, 128)
    n_pad = ((n + align - 1) // align) * align
    k = n_pad // 128
    limit = max(1, int(tn_max) // 128)
    tn = 128
    for d in range(1, k + 1):
        if k % d == 0 and d <= limit:
            tn = max(tn, d * 128)
    return n_pad, tm, tn


def source_loss(input_data, latent_data, rho, sigma, *, v_input=100.0,
                v_latent=0.01, tm=128, tn_max=2048, vmem_limit_bytes=None):
    x = jnp.asarray(input_data, jnp.float32)
    z = jnp.asarray(latent_data, jnp.float32)
    n, d_in = x.shape
    n2, d_lat = z.shape
    assert n == n2 and n >= 2

    np_, tm, tn = _choose_tiles(n, tm=tm, tn_max=tn_max)
    pad = np_ - n

    rho1 = jnp.asarray(rho, jnp.float32).reshape(n)
    sigma1 = jnp.asarray(sigma, jnp.float32).reshape(n)

    if pad:
        x = jnp.pad(x, ((0, pad), (0, 0)))
        z = jnp.pad(z, ((0, pad), (0, 0)))
        rho1 = jnp.pad(rho1, (0, pad))
        sigma1 = jnp.pad(sigma1, (0, pad), constant_values=1.0)

    xt = x.T                                       # (d_in, Np) — MXU RHS layout
    inv_sigma = (1.0 / sigma1).reshape(1, np_)
    rho_row = rho1.reshape(1, np_)
    sq_x = jnp.sum(x * x, axis=1)                  # norms precomputed once in XLA
    sq_z = jnp.sum(z * z, axis=1)

    use_vpu_latent = d_lat <= 8
    if use_vpu_latent:
        zrow = z.T.reshape(d_lat, np_, 1)          # per-feature (tm,1) row tiles
        zcol = z.T.reshape(d_lat, 1, np_)          # per-feature (1,tn) col tiles
        zrow_spec = pl.BlockSpec((d_lat, tm, 1), lambda j, i: (0, i, 0))
        zcol_spec = pl.BlockSpec((d_lat, 1, tn), lambda j, i: (0, 0, j))
    else:
        zrow = z                                   # (Np, d_lat)
        zcol = z.T                                 # (d_lat, Np)
        zrow_spec = pl.BlockSpec((tm, d_lat), lambda j, i: (i, 0))
        zcol_spec = pl.BlockSpec((d_lat, tn), lambda j, i: (0, j))

    v_in = float(v_input)
    v_lat = float(v_latent)
    kernel = functools.partial(
        source_loss_kernel,
        tm=tm, tn=tn, d_lat=d_lat, n_real=n, mask_pad=(pad > 0),
        use_vpu_latent=use_vpu_latent, exact_log_q=(v_lat > 2.0),
        log_c_in=math.log(_cal_gamma(v_in) * TWO_PI_ISH),
        expnt_in=-(v_in + 1.0) / 2.0, inv_v_in=1.0 / v_in,
        log_c_lat=math.log(_cal_gamma(v_lat) * TWO_PI_ISH),
        expnt_lat=-(v_lat + 1.0) / 2.0, inv_v_lat=1.0 / v_lat,
    )

    if vmem_limit_bytes is None:
        f32b = 4
        live_temps = 10 * tm * tn * f32b               # live (tm, tn) temporaries
        dma_bufs = 2 * f32b * (tm * max(d_in, 128) + d_in * tn       # x / xT tiles
                               + 2 * d_lat * (tm * 128 + 8 * tn)     # latent tiles
                               + 7 * 8 * tn + 2 * tm * 128)          # norms/rho/out
        vmem_limit_bytes = int(min(112 << 20, max(32 << 20, live_temps + dma_bufs)))

    n_row_tiles = np_ // tm
    n_col_tiles = np_ // tn

    partials = pl.pallas_call(
        kernel,
        out_shape=jax.ShapeDtypeStruct((n_row_tiles, 1, np_), jnp.float32),
        grid_spec=pltpu.PrefetchScalarGridSpec(
            num_scalar_prefetch=0,
            grid=(n_col_tiles, n_row_tiles),   # column tile outer, row tile inner
            in_specs=[
                pl.BlockSpec((tm, d_in), lambda j, i: (i, 0)),    # X row tile (LHS)
                pl.BlockSpec((d_in, tn), lambda j, i: (0, j)),    # X^T col tile (RHS)
                zrow_spec,                                        # Z row tile
                zcol_spec,                                        # Z^T col tile
                pl.BlockSpec((tm, 1), lambda j, i: (i, 0)),       # ||x_i||^2 rows
                pl.BlockSpec((1, tn), lambda j, i: (0, j)),       # ||x_j||^2 cols
                pl.BlockSpec((tm, 1), lambda j, i: (i, 0)),       # ||z_i||^2 rows
                pl.BlockSpec((1, tn), lambda j, i: (0, j)),       # ||z_j||^2 cols
                pl.BlockSpec((1, tn), lambda j, i: (0, j)),       # rho
                pl.BlockSpec((1, tn), lambda j, i: (0, j)),       # 1 / sigma
            ],
            out_specs=pl.BlockSpec((1, 1, tn), lambda j, i: (i, 0, j)),
        ),
        compiler_params=pltpu.CompilerParams(
            dimension_semantics=("parallel", "parallel"),
            vmem_limit_bytes=vmem_limit_bytes,
        ),
    )(x, xt, zrow, zcol,
      sq_x.reshape(np_, 1), sq_x.reshape(1, np_),
      sq_z.reshape(np_, 1), sq_z.reshape(1, np_),
      rho_row, inv_sigma)

    total = jnp.sum(partials)
    denom = jnp.float32(n) * jnp.float32(n - 1)
    return -total / denom


def _source_loss_ref(x, z, rho, sigma, v_input, v_latent):
    """Pure-JAX reference mirroring the PyTorch forward (masked diagonal)."""
    def sqdist(a):
        sq = jnp.sum(a * a, axis=1, keepdims=True)
        d = sq + sq.T - 2.0 * (a @ a.T)
        return jnp.maximum(d, 1e-12)

    def sim(dist, rho_, sigma_, gamma, v):
        dr = jnp.maximum((dist - rho_) / sigma_, 0.0)
        return gamma * TWO_PI_ISH * (1.0 + dr / v) ** (-(v + 1.0) / 2.0)

    n = x.shape[0]
    p = sim(sqdist(x), rho[None, :], sigma[None, :], _cal_gamma(v_input), v_input)
    q = sim(sqdist(z), 0.0, 1.0, _cal_gamma(v_latent), v_latent)
    mask = ~jnp.eye(n, dtype=bool)
    p_ = p[mask] * (1.0 - 2.0 * EPS) + EPS
    q_ = q[mask] * (1.0 - 2.0 * EPS) + EPS
    l1 = jnp.mean(p_ * jnp.log(q_ + EPS))
    l2 = jnp.mean((1.0 - p_) * jnp.log(1.0 - q_ + EPS))
    return -(l1 + l2)


if __name__ == "__main__":
    key = jax.random.PRNGKey(0)
    k1, k2, k3, k4 = jax.random.split(key, 4)

    N, D_IN, D_LAT = 256, 16, 2
    V_INPUT, V_LATENT = 100.0, 0.01

    input_data = jax.random.normal(k1, (N, D_IN), dtype=jnp.float32)
    latent_data = jax.random.normal(k2, (N, D_LAT), dtype=jnp.float32)
    rho = jax.random.uniform(k3, (N,), dtype=jnp.float32) * 0.1
    sigma = 0.5 + jax.random.uniform(k4, (N,), dtype=jnp.float32)

    # Exact tile-divisible case.
    loss = source_loss(input_data, latent_data, rho, sigma,
                       v_input=V_INPUT, v_latent=V_LATENT)
    loss = jax.block_until_ready(loss)
    ref = _source_loss_ref(input_data, latent_data, rho, sigma, V_INPUT, V_LATENT)
    assert jnp.isfinite(loss), "loss is not finite"
    assert jnp.allclose(loss, ref, rtol=2e-3, atol=1e-4), (loss, ref)

    # Awkward N exercising the zero-padding + in-kernel mask path.
    N2 = 200
    loss2 = source_loss(input_data[:N2], latent_data[:N2], rho[:N2], sigma[:N2],
                        v_input=V_INPUT, v_latent=V_LATENT)
    loss2 = jax.block_until_ready(loss2)
    ref2 = _source_loss_ref(input_data[:N2], latent_data[:N2], rho[:N2],
                            sigma[:N2], V_INPUT, V_LATENT)
    assert jnp.isfinite(loss2), "padded-path loss is not finite"
    assert jnp.allclose(loss2, ref2, rtol=2e-3, atol=1e-4), (loss2, ref2)

    print("KERNEL_OK")
</pallas_src>

<mosaic_0001>
module attributes {stable_mosaic.version = 11 : i64} {
  func.func @source_loss_kernel(%arg0: i32, %arg1: i32, %arg2: memref<128x16xf32, #tpu.memory_space<vmem>>, %arg3: memref<16x256xf32, #tpu.memory_space<vmem>>, %arg4: memref<2x128x1xf32, #tpu.memory_space<vmem>>, %arg5: memref<2x1x256xf32, #tpu.memory_space<vmem>>, %arg6: memref<128x1xf32, #tpu.memory_space<vmem>>, %arg7: memref<1x256xf32, #tpu.memory_space<vmem>>, %arg8: memref<128x1xf32, #tpu.memory_space<vmem>>, %arg9: memref<1x256xf32, #tpu.memory_space<vmem>>, %arg10: memref<1x256xf32, #tpu.memory_space<vmem>>, %arg11: memref<1x256xf32, #tpu.memory_space<vmem>>, %arg12: memref<1x1x256xf32, #tpu.memory_space<vmem>>) attributes {dimension_semantics = [#tpu.dimension_semantics<parallel>, #tpu.dimension_semantics<parallel>], iteration_bounds = array<i64: 1, 2>, scalar_prefetch = 0 : i64, scratch_operands = 0 : i64, tpu.core_type = #tpu.core_type<tc>, window_params = [{transform_indices = @transform_0, window_bounds = array<i64: 128, 16>}, {transform_indices = @transform_1, window_bounds = array<i64: 16, 256>}, {transform_indices = @transform_2, window_bounds = array<i64: 2, 128, 1>}, {transform_indices = @transform_3, window_bounds = array<i64: 2, 1, 256>}, {transform_indices = @transform_4, window_bounds = array<i64: 128, 1>}, {transform_indices = @transform_5, window_bounds = array<i64: 1, 256>}, {transform_indices = @transform_6, window_bounds = array<i64: 128, 1>}, {transform_indices = @transform_7, window_bounds = array<i64: 1, 256>}, {transform_indices = @transform_8, window_bounds = array<i64: 1, 256>}, {transform_indices = @transform_9, window_bounds = array<i64: 1, 256>}, {transform_indices = @transform_10, window_bounds = array<i64: 1, 1, 256>}]} {
    %c128_i32 = arith.constant 128 : i32
    %0 = arith.muli %arg1, %c128_i32 : i32
    %c256_i32 = arith.constant 256 : i32
    %1 = arith.muli %arg0, %c256_i32 : i32
    %c0 = arith.constant 0 : index
    %c0_0 = arith.constant 0 : index
    %2 = vector.load %arg2[%c0, %c0_0] : memref<128x16xf32, #tpu.memory_space<vmem>>, vector<128x16xf32>
    %c0_1 = arith.constant 0 : index
    %c0_2 = arith.constant 0 : index
    %3 = vector.load %arg3[%c0_1, %c0_2] : memref<16x256xf32, #tpu.memory_space<vmem>>, vector<16x256xf32>
    %cst = arith.constant dense<0.000000e+00> : vector<128x256xf32>
    %4 = tpu.matmul %2, %3, %cst {dimension_numbers = #tpu.dot_dimension_numbers<[1], [0], [0], [1], [0, 0, 1, 1], [], []>} : vector<128x16xf32>, vector<16x256xf32>, vector<128x256xf32> -> vector<128x256xf32>
    %c0_3 = arith.constant 0 : index
    %c0_4 = arith.constant 0 : index
    %5 = vector.load %arg6[%c0_3, %c0_4] : memref<128x1xf32, #tpu.memory_space<vmem>>, vector<128x1xf32>
    %c0_5 = arith.constant 0 : index
    %c0_6 = arith.constant 0 : index
    %6 = vector.load %arg7[%c0_5, %c0_6] : memref<1x256xf32, #tpu.memory_space<vmem>>, vector<1x256xf32>
    %7 = vector.broadcast %5 : vector<128x1xf32> to vector<128x256xf32>
    %8 = vector.broadcast %6 : vector<1x256xf32> to vector<128x256xf32>
    %9 = arith.addf %7, %8 : vector<128x256xf32>
    %cst_7 = arith.constant 2.000000e+00 : f32
    %10 = vector.broadcast %cst_7 : f32 to vector<128x256xf32>
    %11 = arith.mulf %10, %4 : vector<128x256xf32>
    %12 = arith.subf %9, %11 : vector<128x256xf32>
    %cst_8 = arith.constant 9.99999996E-13 : f32
    %13 = vector.broadcast %cst_8 : f32 to vector<128x256xf32>
    %14 = arith.maximumf %12, %13 : vector<128x256xf32>
    %c0_9 = arith.constant 0 : index
    %c0_10 = arith.constant 0 : index
    %15 = vector.load %arg10[%c0_9, %c0_10] : memref<1x256xf32, #tpu.memory_space<vmem>>, vector<1x256xf32>
    %16 = vector.broadcast %15 : vector<1x256xf32> to vector<128x256xf32>
    %17 = arith.subf %14, %16 : vector<128x256xf32>
    %c0_11 = arith.constant 0 : index
    %c0_12 = arith.constant 0 : index
    %18 = vector.load %arg11[%c0_11, %c0_12] : memref<1x256xf32, #tpu.memory_space<vmem>>, vector<1x256xf32>
    %19 = vector.broadcast %18 : vector<1x256xf32> to vector<128x256xf32>
    %20 = arith.mulf %17, %19 : vector<128x256xf32>
    %cst_13 = arith.constant 0.000000e+00 : f32
    %21 = vector.broadcast %cst_13 : f32 to vector<128x256xf32>
    %22 = arith.maximumf %20, %21 : vector<128x256xf32>
    %cst_14 = arith.constant 0.00999999977 : f32
    %23 = vector.broadcast %cst_14 : f32 to vector<128x256xf32>
    %24 = arith.mulf %22, %23 : vector<128x256xf32>
    %25 = math.log1p %24 : vector<128x256xf32>
    %cst_15 = arith.constant -5.050000e+01 : f32
    %26 = vector.broadcast %cst_15 : f32 to vector<128x256xf32>
    %27 = arith.mulf %26, %25 : vector<128x256xf32>
    %cst_16 = arith.constant 0.915931463 : f32
    %28 = vector.broadcast %cst_16 : f32 to vector<128x256xf32>
    %29 = arith.addf %28, %27 : vector<128x256xf32>
    %30 = math.exp %29 : vector<128x256xf32>
    %c0_17 = arith.constant 0 : index
    %c0_18 = arith.constant 0 : index
    %c0_19 = arith.constant 0 : index
    %31 = vector.load %arg4[%c0_17, %c0_18, %c0_19] : memref<2x128x1xf32, #tpu.memory_space<vmem>>, vector<1x128x1xf32>
    %32 = vector.shape_cast %31 : vector<1x128x1xf32> to vector<128x1xf32>
    %c0_20 = arith.constant 0 : index
    %c0_21 = arith.constant 0 : index
    %c0_22 = arith.constant 0 : index
    %33 = vector.load %arg5[%c0_20, %c0_21, %c0_22] : memref<2x1x256xf32, #tpu.memory_space<vmem>>, vector<1x1x256xf32>
    %34 = vector.shape_cast %33 : vector<1x1x256xf32> to vector<1x256xf32>
    %35 = vector.broadcast %32 : vector<128x1xf32> to vector<128x256xf32>
    %36 = vector.broadcast %34 : vector<1x256xf32> to vector<128x256xf32>
    %37 = arith.mulf %35, %36 : vector<128x256xf32>
    %c1 = arith.constant 1 : index
    %c0_23 = arith.constant 0 : index
    %c0_24 = arith.constant 0 : index
    %38 = vector.load %arg4[%c1, %c0_23, %c0_24] : memref<2x128x1xf32, #tpu.memory_space<vmem>>, vector<1x128x1xf32>
    %39 = vector.shape_cast %38 : vector<1x128x1xf32> to vector<128x1xf32>
    %c1_25 = arith.constant 1 : index
    %c0_26 = arith.constant 0 : index
    %c0_27 = arith.constant 0 : index
    %40 = vector.load %arg5[%c1_25, %c0_26, %c0_27] : memref<2x1x256xf32, #tpu.memory_space<vmem>>, vector<1x1x256xf32>
    %41 = vector.shape_cast %40 : vector<1x1x256xf32> to vector<1x256xf32>
    %42 = vector.broadcast %39 : vector<128x1xf32> to vector<128x256xf32>
    %43 = vector.broadcast %41 : vector<1x256xf32> to vector<128x256xf32>
    %44 = arith.mulf %42, %43 : vector<128x256xf32>
    %45 = arith.addf %37, %44 : vector<128x256xf32>
    %c0_28 = arith.constant 0 : index
    %c0_29 = arith.constant 0 : index
    %46 = vector.load %arg8[%c0_28, %c0_29] : memref<128x1xf32, #tpu.memory_space<vmem>>, vector<128x1xf32>
    %c0_30 = arith.constant 0 : index
    %c0_31 = arith.constant 0 : index
    %47 = vector.load %arg9[%c0_30, %c0_31] : memref<1x256xf32, #tpu.memory_space<vmem>>, vector<1x256xf32>
    %48 = vector.broadcast %46 : vector<128x1xf32> to vector<128x256xf32>
    %49 = vector.broadcast %47 : vector<1x256xf32> to vector<128x256xf32>
    %50 = arith.addf %48, %49 : vector<128x256xf32>
    %cst_32 = arith.constant 2.000000e+00 : f32
    %51 = vector.broadcast %cst_32 : f32 to vector<128x256xf32>
    %52 = arith.mulf %51, %45 : vector<128x256xf32>
    %53 = arith.subf %50, %52 : vector<128x256xf32>
    %cst_33 = arith.constant 9.99999996E-13 : f32
    %54 = vector.broadcast %cst_33 : f32 to vector<128x256xf32>
    %55 = arith.maximumf %53, %54 : vector<128x256xf32>
    %cst_34 = arith.constant 1.000000e+02 : f32
    %56 = vector.broadcast %cst_34 : f32 to vector<128x256xf32>
    %57 = arith.mulf %55, %56 : vector<128x256xf32>
    %58 = math.log1p %57 : vector<128x256xf32>
    %cst_35 = arith.constant -5.050000e-01 : f32
    %59 = vector.broadcast %cst_35 : f32 to vector<128x256xf32>
    %60 = arith.mulf %59, %58 : vector<128x256xf32>
    %cst_36 = arith.constant -1.16525292 : f32
    %61 = vector.broadcast %cst_36 : f32 to vector<128x256xf32>
    %62 = arith.addf %61, %60 : vector<128x256xf32>
    %63 = math.exp %62 : vector<128x256xf32>
    %cst_37 = arith.constant 9.99999996E-13 : f32
    %64 = vector.broadcast %cst_37 : f32 to vector<128x256xf32>
    %65 = arith.addf %30, %64 : vector<128x256xf32>
    %cst_38 = arith.constant 0.000000e+00 : f32
    %66 = vector.broadcast %cst_38 : f32 to vector<128x256xf32>
    %67 = arith.subf %66, %63 : vector<128x256xf32>
    %68 = math.log1p %67 : vector<128x256xf32>
    %69 = arith.subf %62, %68 : vector<128x256xf32>
    %70 = arith.mulf %65, %69 : vector<128x256xf32>
    %71 = arith.addf %68, %70 : vector<128x256xf32>
    %72 = tpu.iota {dimensions = array<i32: 0>} : vector<128x1xi32>
    %73 = vector.broadcast %0 : i32 to vector<128x1xi32>
    %74 = arith.addi %73, %72 : vector<128x1xi32>
    %75 = tpu.iota {dimensions = array<i32: 1>} : vector<1x256xi32>
    %76 = vector.broadcast %1 : i32 to vector<1x256xi32>
    %77 = arith.addi %76, %75 : vector<1x256xi32>
    %cst_39 = arith.constant dense<0.000000e+00> : vector<256xf32>
    %78 = vector.multi_reduction <add>, %71, %cst_39 [0] : vector<128x256xf32> to vector<256xf32>
    %79 = vector.shape_cast %78 : vector<256xf32> to vector<1x256xf32>
    %c0_40 = arith.constant 0 : index
    %c0_41 = arith.constant 0 : index
    %c0_42 = arith.constant 0 : index
    %80 = vector.load %arg12[%c0_40, %c0_41, %c0_42] : memref<1x1x256xf32, #tpu.memory_space<vmem>>, vector<1x1x256xf32>
    %81 = vector.shape_cast %80 : vector<1x1x256xf32> to vector<1x256xf32>
    %82 = vector.shape_cast %79 : vector<1x256xf32> to vector<1x1x256xf32>
    tpu.vector_store %arg12[%c0_40, %c0_41, %c0_42], %82 {strides = array<i32>} : memref<1x1x256xf32, #tpu.memory_space<vmem>>, vector<1x1x256xf32>,
    %c256_i32_43 = arith.constant 256 : i32
    %83 = arith.addi %1, %c256_i32_43 : i32
    %84 = arith.cmpi slt, %0, %83 : i32
    %c128_i32_44 = arith.constant 128 : i32
    %85 = arith.addi %0, %c128_i32_44 : i32
    %86 = arith.cmpi slt, %1, %85 : i32
    %87 = arith.andi %84, %86 : i1
    %88 = arith.extui %87 : i1 to i32
    %c0_i32 = arith.constant 0 : i32
    %89 = arith.cmpi ne, %88, %c0_i32 : i32
    scf.if %89 {
      %90 = vector.broadcast %74 : vector<128x1xi32> to vector<128x256xi32>
      %91 = vector.broadcast %77 : vector<1x256xi32> to vector<128x256xi32>
      %92 = arith.cmpi eq, %90, %91 : vector<128x256xi32>
      %cst_45 = arith.constant 0.000000e+00 : f32
      %93 = vector.broadcast %cst_45 : f32 to vector<128x256xf32>
      %94 = arith.select %92, %71, %93 : vector<128x256xi1>, vector<128x256xf32>
      %cst_46 = arith.constant dense<0.000000e+00> : vector<256xf32>
      %95 = vector.multi_reduction <add>, %94, %cst_46 [0] : vector<128x256xf32> to vector<256xf32>
      %96 = vector.shape_cast %95 : vector<256xf32> to vector<1x256xf32>
      %c0_47 = arith.constant 0 : index
      %c0_48 = arith.constant 0 : index
      %c0_49 = arith.constant 0 : index
      %97 = vector.load %arg12[%c0_47, %c0_48, %c0_49] : memref<1x1x256xf32, #tpu.memory_space<vmem>>, vector<1x1x256xf32>
      %98 = vector.shape_cast %97 : vector<1x1x256xf32> to vector<1x256xf32>
      %99 = arith.subf %98, %96 : vector<1x256xf32>
      %c0_50 = arith.constant 0 : index
      %c0_51 = arith.constant 0 : index
      %c0_52 = arith.constant 0 : index
      %100 = vector.load %arg12[%c0_50, %c0_51, %c0_52] : memref<1x1x256xf32, #tpu.memory_space<vmem>>, vector<1x1x256xf32>
      %101 = vector.shape_cast %100 : vector<1x1x256xf32> to vector<1x256xf32>
      %102 = vector.shape_cast %99 : vector<1x256xf32> to vector<1x1x256xf32>
      tpu.vector_store %arg12[%c0_50, %c0_51, %c0_52], %102 {strides = array<i32>} : memref<1x1x256xf32, #tpu.memory_space<vmem>>, vector<1x1x256xf32>,
    } else {
    }
    return
  }
  func.func @transform_0(%arg0: i32, %arg1: i32) -> (i32, i32) {
    %c0_i32 = arith.constant 0 : i32
    %c0_i32_0 = arith.constant 0 : i32
    return %arg1, %c0_i32 : i32, i32
  }
  func.func @transform_1(%arg0: i32, %arg1: i32) -> (i32, i32) {
    %c0_i32 = arith.constant 0 : i32
    %c0_i32_0 = arith.constant 0 : i32
    return %c0_i32, %arg0 : i32, i32
  }
  func.func @transform_2(%arg0: i32, %arg1: i32) -> (i32, i32, i32) {
    %c0_i32 = arith.constant 0 : i32
    %c0_i32_0 = arith.constant 0 : i32
    %c0_i32_1 = arith.constant 0 : i32
    return %c0_i32, %arg1, %c0_i32_0 : i32, i32, i32
  }
  func.func @transform_3(%arg0: i32, %arg1: i32) -> (i32, i32, i32) {
    %c0_i32 = arith.constant 0 : i32
    %c0_i32_0 = arith.constant 0 : i32
    %c0_i32_1 = arith.constant 0 : i32
    return %c0_i32, %c0_i32_0, %arg0 : i32, i32, i32
  }
  func.func @transform_4(%arg0: i32, %arg1: i32) -> (i32, i32) {
    %c0_i32 = arith.constant 0 : i32
    %c0_i32_0 = arith.constant 0 : i32
    return %arg1, %c0_i32 : i32, i32
  }
  func.func @transform_5(%arg0: i32, %arg1: i32) -> (i32, i32) {
    %c0_i32 = arith.constant 0 : i32
    %c0_i32_0 = arith.constant 0 : i32
    return %c0_i32, %arg0 : i32, i32
  }
  func.func @transform_6(%arg0: i32, %arg1: i32) -> (i32, i32) {
    %c0_i32 = arith.constant 0 : i32
    %c0_i32_0 = arith.constant 0 : i32
    return %arg1, %c0_i32 : i32, i32
  }
  func.func @transform_7(%arg0: i32, %arg1: i32) -> (i32, i32) {
    %c0_i32 = arith.constant 0 : i32
    %c0_i32_0 = arith.constant 0 : i32
    return %c0_i32, %arg0 : i32, i32
  }
  func.func @transform_8(%arg0: i32, %arg1: i32) -> (i32, i32) {
    %c0_i32 = arith.constant 0 : i32
    %c0_i32_0 = arith.constant 0 : i32
    return %c0_i32, %arg0 : i32, i32
  }
  func.func @transform_9(%arg0: i32, %arg1: i32) -> (i32, i32) {
    %c0_i32 = arith.constant 0 : i32
    %c0_i32_0 = arith.constant 0 : i32
    return %c0_i32, %arg0 : i32, i32
  }
  func.func @transform_10(%arg0: i32, %arg1: i32) -> (i32, i32, i32) {
    %c0_i32 = arith.constant 0 : i32
    %c0_i32_0 = arith.constant 0 : i32
    return %arg1, %c0_i32, %arg0 : i32, i32, i32
  }
}

</mosaic_0001>

<llo_original>
// kernel: tpu_custom_call.1
$region0: #{tpu_custom_call.1}
  #allocation0 [shape = 'u32[]', space=smem, size = 0x4, offset = 0x4, fixed_abs, tag = 'smem constant byte address 0x4 - core index']
  #allocation1 [shape = 'u32[72,128]{1,0:T(1,128)}', space=vmem, size = 0x9000, scoped, tag = 'internal scratch']
  %s0 = inlined_call_operand.vmem [shape: f32[256,16], index: 0, kind: input, shape index: {}]
  %s1 = inlined_call_operand.vmem [shape: f32[16,256], index: 1, kind: input, shape index: {}]
  %s2 = inlined_call_operand.vmem [shape: f32[2,256,1], index: 2, kind: input, shape index: {}]
  %s3 = inlined_call_operand.vmem [shape: f32[2,1,256], index: 3, kind: input, shape index: {}]
  %s4 = inlined_call_operand.vmem [shape: f32[256,1], index: 4, kind: input, shape index: {}]
  %s5 = inlined_call_operand.vmem [shape: f32[1,256], index: 5, kind: input, shape index: {}]
  %s6 = inlined_call_operand.vmem [shape: f32[256,1], index: 6, kind: input, shape index: {}]
  %s7 = inlined_call_operand.vmem [shape: f32[1,256], index: 7, kind: input, shape index: {}]
  %s8 = inlined_call_operand.vmem [shape: f32[1,256], index: 8, kind: input, shape index: {}]
  %s9 = inlined_call_operand.vmem [shape: f32[1,256], index: 9, kind: input, shape index: {}]
  %s10 = inlined_call_operand.hbm [shape: f32[2,1,256], index: 10, kind: output, shape index: {}]
  %s11 = sld [smem:[#allocation0]]
  $region115: #{tpu_custom_call.1} parent=0
    _
  %s13 = ssub.s32 1, %s11
  %s14 = scalar_select 0, %s13, %s11
  $region1: #{tpu_custom_call.1} parent=0
    #allocation2 [shape = 'u8[262144]{0}', space=vmem, size = 0x40000, scoped, tag = 'input window, operand 2']
    #allocation3 [shape = 'u8[2048]{0}', space=vmem, size = 0x800, scoped, tag = 'output window, operand 0']
    #allocation4 [shape = 's32[2]{0}', space=sflag, size = 0x8, scoped, tag = 'scoped memory for tpu_custom_call.1']
    %15 = vsyncpa [#allocation4], 0
    %s16 = scalar_lea.sflag [#allocation4], 1
    %17 = vsyncpa %s16, 0
    loop: start=0, step=1, limit=4
    $region2: #{tpu_custom_call.1} parent=1 // loop_pre_header
      _
    $region3: #{tpu_custom_call.1} parent=1 // loop_header
      %s19 = sphi 0, %s23
      %p20 = scmp.ge.s32.totalorder %s19, 4
      %s26 = sphi 0, %s38
      %s27 = sphi 0, %s34
      %s28 = sphi 0, %s26
      %s29 = sphi 0, %s27
      %s30 = sphi 0, %s28
      %s31 = sphi 0, %s29
      %s41 = sphi 0, %s43
      %s44 = sphi 0, %s41
      %s45 = sphi 0, %s44
      %s61 = sphi 0, %s45
      %s67 = sphi 0, %s69
      %s70 = sphi 0, %s67
      %s71 = sphi 0, %s70
      %s87 = sphi 0, %s71
      %s93 = sphi 0, %s95
      %s96 = sphi 0, %s93
      %s97 = sphi 0, %s96
      %s113 = sphi 0, %s97
      %s119 = sphi 0, %s121
      %s122 = sphi 0, %s119
      %s123 = sphi 0, %s122
      %s139 = sphi 0, %s123
      %s145 = sphi 0, %s147
      %s148 = sphi 0, %s145
      %s149 = sphi 0, %s148
      %s165 = sphi 0, %s149
      %s171 = sphi 0, %s173
      %s174 = sphi 0, %s171
      %s175 = sphi 0, %s174
      %s191 = sphi 0, %s175
      %s197 = sphi 0, %s199
      %s200 = sphi 0, %s197
      %s201 = sphi 0, %s200
      %s217 = sphi 0, %s201
      %s223 = sphi 0, %s225
      %s226 = sphi 0, %s223
      %s227 = sphi 0, %s226
      %s243 = sphi 0, %s227
      %s249 = sphi 0, %s251
      %s252 = sphi 0, %s249
      %s253 = sphi 0, %s252
      %s269 = sphi 0, %s253
      %s275 = sphi 0, %s277
      %s278 = sphi 0, %s275
      %s279 = sphi 0, %s278
      %s295 = sphi 0, %s279
      %s303 = sphi 0, %s305
      %s306 = sphi 0, %s303
      %s307 = sphi 0, %s306
      %s323 = sphi 0, %s307
    $region4: #{tpu_custom_call.1} parent=1 // loop_header_branch
      %22 = sbr.rel (%p20) target = $region8
    $region5: #{tpu_custom_call.1} parent=1 // loop_body
      %s24 = ssub.s32 %s19, 1
      %s25 = ssub.s32 %s19, 2
      %s32 = sadd.s32 1, %s27
      %p33 = scmp.ge.s32.totalorder %s32, 2
      %s34 = scalar_select %p33, 0, %s32
      %s35 = sadd.s32 1, %s26
      %s36 = scalar_select %p33, %s35, %s26
      %p37 = scmp.ge.s32.totalorder %s36, 1
      %s38 = scalar_select %p37, 0, %s36
      %s39 = ssub.s32 %s27, %s34
      %p40 = scmp.eq.s32.totalorder %s39, 0
      %s42 = sadd.s32 %s41, 1
      %s43 = scalar_select %p40, %s41, %s42
      %p46 = pneg %p40
      %p47 = scmp.eq.s32.totalorder %s19, 1
      %p48 = por %p46, %p47
      %p49 = scmp.ne.s32.totalorder %s41, %s44
      %p50 = scmp.eq.s32.totalorder %s19, 0
      %p51 = por %p49, %p50
      %p52 = scmp.ne.s32.totalorder %s41, %s44
      %p53 = scmp.eq.s32.totalorder %s24, 1
      %p54 = por %p52, %p53
      %p55 = scmp.ne.s32.totalorder %s44, %s45
      %p56 = scmp.eq.s32.totalorder %s24, 0
      %p57 = por %p55, %p56
      %p58 = scmp.ne.s32.totalorder %s44, %s45
      %p59 = scmp.eq.s32.totalorder %s25, 1
      %p60 = por %p58, %p59
      %p62 = scmp.ne.s32.totalorder %s45, %s61
      %p63 = scmp.eq.s32.totalorder %s25, 0
      %p64 = por %p62, %p63
      %s65 = ssub.s32 %s26, %s38
      %p66 = scmp.eq.s32.totalorder %s65, 0
      %s68 = sadd.s32 %s67, 1
      %s69 = scalar_select %p66, %s67, %s68
      %p72 = pneg %p66
      %p73 = scmp.eq.s32.totalorder %s19, 1
      %p74 = por %p72, %p73
      %p75 = scmp.ne.s32.totalorder %s67, %s70
      %p76 = scmp.eq.s32.totalorder %s19, 0
      %p77 = por %p75, %p76
      %p78 = scmp.ne.s32.totalorder %s67, %s70
      %p79 = scmp.eq.s32.totalorder %s24, 1
      %p80 = por %p78, %p79
      %p81 = scmp.ne.s32.totalorder %s70, %s71
      %p82 = scmp.eq.s32.totalorder %s24, 0
      %p83 = por %p81, %p82
      %p84 = scmp.ne.s32.totalorder %s70, %s71
      %p85 = scmp.eq.s32.totalorder %s25, 1
      %p86 = por %p84, %p85
      %p88 = scmp.ne.s32.totalorder %s71, %s87
      %p89 = scmp.eq.s32.totalorder %s25, 0
      %p90 = por %p88, %p89
      %s91 = ssub.s32 %s27, %s34
      %p92 = scmp.eq.s32.totalorder %s91, 0
      %s94 = sadd.s32 %s93, 1
      %s95 = scalar_select %p92, %s93, %s94
      %p98 = pneg %p92
      %p99 = scmp.eq.s32.totalorder %s19, 1
      %p100 = por %p98, %p99
      %p101 = scmp.ne.s32.totalorder %s93, %s96
      %p102 = scmp.eq.s32.totalorder %s19, 0
      %p103 = por %p101, %p102
      %p104 = scmp.ne.s32.totalorder %s93, %s96
      %p105 = scmp.eq.s32.totalorder %s24, 1
      %p106 = por %p104, %p105
      %p107 = scmp.ne.s32.totalorder %s96, %s97
      %p108 = scmp.eq.s32.totalorder %s24, 0
      %p109 = por %p107, %p108
      %p110 = scmp.ne.s32.totalorder %s96, %s97
      %p111 = scmp.eq.s32.totalorder %s25, 1
      %p112 = por %p110, %p111
      %p114 = scmp.ne.s32.totalorder %s97, %s113
      %p115 = scmp.eq.s32.totalorder %s25, 0
      %p116 = por %p114, %p115
      %s117 = ssub.s32 %s26, %s38
      %p118 = scmp.eq.s32.totalorder %s117, 0
      %s120 = sadd.s32 %s119, 1
      %s121 = scalar_select %p118, %s119, %s120
      %p124 = pneg %p118
      %p125 = scmp.eq.s32.totalorder %s19, 1
      %p126 = por %p124, %p125
      %p127 = scmp.ne.s32.totalorder %s119, %s122
      %p128 = scmp.eq.s32.totalorder %s19, 0
      %p129 = por %p127, %p128
      %p130 = scmp.ne.s32.totalorder %s119, %s122
      %p131 = scmp.eq.s32.totalorder %s24, 1
      %p132 = por %p130, %p131
      %p133 = scmp.ne.s32.totalorder %s122, %s123
      %p134 = scmp.eq.s32.totalorder %s24, 0
      %p135 = por %p133, %p134
      %p136 = scmp.ne.s32.totalorder %s122, %s123
      %p137 = scmp.eq.s32.totalorder %s25, 1
      %p138 = por %p136, %p137
      %p140 = scmp.ne.s32.totalorder %s123, %s139
      %p141 = scmp.eq.s32.totalorder %s25, 0
      %p142 = por %p140, %p141
      %s143 = ssub.s32 %s27, %s34
      %p144 = scmp.eq.s32.totalorder %s143, 0
      %s146 = sadd.s32 %s145, 1
      %s147 = scalar_select %p144, %s145, %s146
      %p150 = pneg %p144
      %p151 = scmp.eq.s32.totalorder %s19, 1
      %p152 = por %p150, %p151
      %p153 = scmp.ne.s32.totalorder %s145, %s148
      %p154 = scmp.eq.s32.totalorder %s19, 0
      %p155 = por %p153, %p154
      %p156 = scmp.ne.s32.totalorder %s145, %s148
      %p157 = scmp.eq.s32.totalorder %s24, 1
      %p158 = por %p156, %p157
      %p159 = scmp.ne.s32.totalorder %s148, %s149
      %p160 = scmp.eq.s32.totalorder %s24, 0
      %p161 = por %p159, %p160
      %p162 = scmp.ne.s32.totalorder %s148, %s149
      %p163 = scmp.eq.s32.totalorder %s25, 1
      %p164 = por %p162, %p163
      %p166 = scmp.ne.s32.totalorder %s149, %s165
      %p167 = scmp.eq.s32.totalorder %s25, 0
      %p168 = por %p166, %p167
      %s169 = ssub.s32 %s26, %s38
      %p170 = scmp.eq.s32.totalorder %s169, 0
      %s172 = sadd.s32 %s171, 1
      %s173 = scalar_select %p170, %s171, %s172
      %p176 = pneg %p170
      %p177 = scmp.eq.s32.totalorder %s19, 1
      %p178 = por %p176, %p177
      %p179 = scmp.ne.s32.totalorder %s171, %s174
      %p180 = scmp.eq.s32.totalorder %s19, 0
      %p181 = por %p179, %p180
      %p182 = scmp.ne.s32.totalorder %s171, %s174
      %p183 = scmp.eq.s32.totalorder %s24, 1
      %p184 = por %p182, %p183
      %p185 = scmp.ne.s32.totalorder %s174, %s175
      %p186 = scmp.eq.s32.totalorder %s24, 0
      %p187 = por %p185, %p186
      %p188 = scmp.ne.s32.totalorder %s174, %s175
      %p189 = scmp.eq.s32.totalorder %s25, 1
      %p190 = por %p188, %p189
      %p192 = scmp.ne.s32.totalorder %s175, %s191
      %p193 = scmp.eq.s32.totalorder %s25, 0
      %p194 = por %p192, %p193
      %s195 = ssub.s32 %s27, %s34
      %p196 = scmp.eq.s32.totalorder %s195, 0
      %s198 = sadd.s32 %s197, 1
      %s199 = scalar_select %p196, %s197, %s198
      %p202 = pneg %p196
      %p203 = scmp.eq.s32.totalorder %s19, 1
      %p204 = por %p202, %p203
      %p205 = scmp.ne.s32.totalorder %s197, %s200
      %p206 = scmp.eq.s32.totalorder %s19, 0
      %p207 = por %p205, %p206
      %p208 = scmp.ne.s32.totalorder %s197, %s200
      %p209 = scmp.eq.s32.totalorder %s24, 1
      %p210 = por %p208, %p209
      %p211 = scmp.ne.s32.totalorder %s200, %s201
      %p212 = scmp.eq.s32.totalorder %s24, 0
      %p213 = por %p211, %p212
      %p214 = scmp.ne.s32.totalorder %s200, %s201
      %p215 = scmp.eq.s32.totalorder %s25, 1
      %p216 = por %p214, %p215
      %p218 = scmp.ne.s32.totalorder %s201, %s217
      %p219 = scmp.eq.s32.totalorder %s25, 0
      %p220 = por %p218, %p219
      %s221 = ssub.s32 %s26, %s38
      %p222 = scmp.eq.s32.totalorder %s221, 0
      %s224 = sadd.s32 %s223, 1
      %s225 = scalar_select %p222, %s223, %s224
      %p228 = pneg %p222
      %p229 = scmp.eq.s32.totalorder %s19, 1
      %p230 = por %p228, %p229
      %p231 = scmp.ne.s32.totalorder %s223, %s226
      %p232 = scmp.eq.s32.totalorder %s19, 0
      %p233 = por %p231, %p232
      %p234 = scmp.ne.s32.totalorder %s223, %s226
      %p235 = scmp.eq.s32.totalorder %s24, 1
      %p236 = por %p234, %p235
      %p237 = scmp.ne.s32.totalorder %s226, %s227
      %p238 = scmp.eq.s32.totalorder %s24, 0
      %p239 = por %p237, %p238
      %p240 = scmp.ne.s32.totalorder %s226, %s227
      %p241 = scmp.eq.s32.totalorder %s25, 1
      %p242 = por %p240, %p241
      %p244 = scmp.ne.s32.totalorder %s227, %s243
      %p245 = scmp.eq.s32.totalorder %s25, 0
      %p246 = por %p244, %p245
      %s247 = ssub.s32 %s26, %s38
      %p248 = scmp.eq.s32.totalorder %s247, 0
      %s250 = sadd.s32 %s249, 1
      %s251 = scalar_select %p248, %s249, %s250
      %p254 = pneg %p248
      %p255 = scmp.eq.s32.totalorder %s19, 1
      %p256 = por %p254, %p255
      %p257 = scmp.ne.s32.totalorder %s249, %s252
      %p258 = scmp.eq.s32.totalorder %s19, 0
      %p259 = por %p257, %p258
      %p260 = scmp.ne.s32.totalorder %s249, %s252
      %p261 = scmp.eq.s32.totalorder %s24, 1
      %p262 = por %p260, %p261
      %p263 = scmp.ne.s32.totalorder %s252, %s253
      %p264 = scmp.eq.s32.totalorder %s24, 0
      %p265 = por %p263, %p264
      %p266 = scmp.ne.s32.totalorder %s252, %s253
      %p267 = scmp.eq.s32.totalorder %s25, 1
      %p268 = por %p266, %p267
      %p270 = scmp.ne.s32.totalorder %s253, %s269
      %p271 = scmp.eq.s32.totalorder %s25, 0
      %p272 = por %p270, %p271
      %s273 = ssub.s32 %s26, %s38
      %p274 = scmp.eq.s32.totalorder %s273, 0
      %s276 = sadd.s32 %s275, 1
      %s277 = scalar_select %p274, %s275, %s276
      %p280 = pneg %p274
      %p281 = scmp.eq.s32.totalorder %s19, 1
      %p282 = por %p280, %p281
      %p283 = scmp.ne.s32.totalorder %s275, %s278
      %p284 = scmp.eq.s32.totalorder %s19, 0
      %p285 = por %p283, %p284
      %p286 = scmp.ne.s32.totalorder %s275, %s278
      %p287 = scmp.eq.s32.totalorder %s24, 1
      %p288 = por %p286, %p287
      %p289 = scmp.ne.s32.totalorder %s278, %s279
      %p290 = scmp.eq.s32.totalorder %s24, 0
      %p291 = por %p289, %p290
      %p292 = scmp.ne.s32.totalorder %s278, %s279
      %p293 = scmp.eq.s32.totalorder %s25, 1
      %p294 = por %p292, %p293
      %p296 = scmp.ne.s32.totalorder %s279, %s295
      %p297 = scmp.eq.s32.totalorder %s25, 0
      %p298 = por %p296, %p297
      %s299 = ssub.s32 %s27, %s34
      %s300 = ssub.s32 %s26, %s38
      %s301 = sor.u32 %s299, %s300
      %p302 = scmp.eq.s32.totalorder %s301, 0
      %s304 = sadd.s32 %s303, 1
      %s305 = scalar_select %p302, %s303, %s304
      %p308 = pneg %p302
      %p309 = scmp.eq.s32.totalorder %s19, 1
      %p310 = por %p308, %p309
      %p311 = scmp.ne.s32.totalorder %s303, %s306
      %p312 = scmp.eq.s32.totalorder %s19, 0
      %p313 = por %p311, %p312
      %p314 = scmp.ne.s32.totalorder %s303, %s306
      %p315 = scmp.eq.s32.totalorder %s24, 1
      %p316 = por %p314, %p315
      %p317 = scmp.ne.s32.totalorder %s306, %s307
      %p318 = scmp.eq.s32.totalorder %s24, 0
      %p319 = por %p317, %p318
      %p320 = scmp.ne.s32.totalorder %s306, %s307
      %p321 = scmp.eq.s32.totalorder %s25, 1
      %p322 = por %p320, %p321
      %p324 = scmp.ne.s32.totalorder %s307, %s323
      %p325 = scmp.eq.s32.totalorder %s25, 0
      %p326 = por %p324, %p325
      %p327 = scmp.le.s32.totalorder 1, %s19
      %p328 = scmp.lt.s32.totalorder %s19, 3
      %p329 = pnand %p327, %p328
      %p330 = pneg %p329
      // Predicated region
      $region9: #{tpu_custom_call.1} parent=5 // pred_check
        _
      $region10: #{tpu_custom_call.1} parent=5 // pred_check_branch
        %332 = sbr.rel (%p329) target = $region12
      $region11: #{tpu_custom_call.1} parent=5 // pred_region
        %s333 = ssub.s32 %s19, 1
        // Predicated region
        $region13: #{tpu_custom_call.1} parent=11 // pred_check
          %p334 = pneg %p83
        $region14: #{tpu_custom_call.1} parent=11 // pred_check_branch
          %336 = sbr.rel (%p334) target = $region16
        $region15: #{tpu_custom_call.1} parent=11 // pred_region
          %s337 = smul.u32 2, %s28
          %p338 = scmp.lt.s32.totalorder %s337, 1
          %s339 = scalar_select %p338, %s337, 1
          %s340 = smul.addr %s339, 8
          %s341 = scalar_lea.vmem %s1, %s340
          %s342 = smul.u32 2, %s28
        $region16: #{tpu_custom_call.1} parent=11 // pred_fallthru
          _
        // Predicated region
        $region17: #{tpu_custom_call.1} parent=11 // pred_check
          %p343 = pneg %p135
        $region18: #{tpu_custom_call.1} parent=11 // pred_check_branch
          %345 = sbr.rel (%p343) target = $region20
        $region19: #{tpu_custom_call.1} parent=11 // pred_region
          %s346 = smul.u32 2, %s28
          %p347 = scmp.lt.s32.totalorder %s346, 1
          %s348 = scalar_select %p347, %s346, 1
          %s349 = scalar_lea.vmem %s3, %s348
          %s350 = smul.u32 2, %s28
        $region20: #{tpu_custom_call.1} parent=11 // pred_fallthru
          _
        // Predicated region
        $region21: #{tpu_custom_call.1} parent=11 // pred_check
          %p351 = pneg %p187
        $region22: #{tpu_custom_call.1} parent=11 // pred_check_branch
          %353 = sbr.rel (%p351) target = $region24
        $region23: #{tpu_custom_call.1} parent=11 // pred_region
          %s354 = smul.u32 2, %s28
          %p355 = scmp.lt.s32.totalorder %s354, 1
          %s356 = scalar_select %p355, %s354, 1
          %s357 = scalar_lea.vmem %s5, %s356
          %s358 = smul.u32 2, %s28
        $region24: #{tpu_custom_call.1} parent=11 // pred_fallthru
          _
        // Predicated region
        $region25: #{tpu_custom_call.1} parent=11 // pred_check
          %p359 = pneg %p239
        $region26: #{tpu_custom_call.1} parent=11 // pred_check_branch
          %361 = sbr.rel (%p359) target = $region28
        $region27: #{tpu_custom_call.1} parent=11 // pred_region
          %s362 = smul.u32 2, %s28
          %p363 = scmp.lt.s32.totalorder %s362, 1
          %s364 = scalar_select %p363, %s362, 1
          %s365 = scalar_lea.vmem %s7, %s364
          %s366 = smul.u32 2, %s28
        $region28: #{tpu_custom_call.1} parent=11 // pred_fallthru
          _
        // Predicated region
        $region29: #{tpu_custom_call.1} parent=11 // pred_check
          %p367 = pneg %p265
        $region30: #{tpu_custom_call.1} parent=11 // pred_check_branch
          %369 = sbr.rel (%p367) target = $region32
        $region31: #{tpu_custom_call.1} parent=11 // pred_region
          %s370 = smul.u32 2, %s28
          %p371 = scmp.lt.s32.totalorder %s370, 1
          %s372 = scalar_select %p371, %s370, 1
          %s373 = scalar_lea.vmem %s8, %s372
          %s374 = smul.u32 2, %s28
        $region32: #{tpu_custom_call.1} parent=11 // pred_fallthru
          _
        // Predicated region
        $region33: #{tpu_custom_call.1} parent=11 // pred_check
          %p375 = pneg %p291
        $region34: #{tpu_custom_call.1} parent=11 // pred_check_branch
          %377 = sbr.rel (%p375) target = $region36
        $region35: #{tpu_custom_call.1} parent=11 // pred_region
          %s378 = smul.u32 2, %s28
          %p379 = scmp.lt.s32.totalorder %s378, 1
          %s380 = scalar_select %p379, %s378, 1
          %s381 = scalar_lea.vmem %s9, %s380
          %s382 = smul.u32 2, %s28
        $region36: #{tpu_custom_call.1} parent=11 // pred_fallthru
          _
      $region12: #{tpu_custom_call.1} parent=5 // pred_fallthru
        _
      %p383 = scmp.lt.s32.totalorder %s19, 2
      // Predicated region
      $region37: #{tpu_custom_call.1} parent=5 // pred_check
        %p384 = pneg %p383
      $region38: #{tpu_custom_call.1} parent=5 // pred_check_branch
        %386 = sbr.rel (%p384) target = $region40
      $region39: #{tpu_custom_call.1} parent=5 // pred_region
        // Predicated region
        $region41: #{tpu_custom_call.1} parent=39 // pred_check
          %p387 = pneg %p51
        $region42: #{tpu_custom_call.1} parent=39 // pred_check_branch
          %389 = sbr.rel (%p387) target = $region44
        $region43: #{tpu_custom_call.1} parent=39 // pred_region
          %s390 = smul.u32 16, %s27
          %p391 = scmp.lt.s32.totalorder %s390, 31
          %s392 = scalar_select %p391, %s390, 31
          %s393 = smul.addr %s392, 8
          %s394 = scalar_lea.vmem %s0, %s393
          %s395 = smul.u32 16, %s27
        $region44: #{tpu_custom_call.1} parent=39 // pred_fallthru
          _
        // Predicated region
        $region45: #{tpu_custom_call.1} parent=39 // pred_check
          %p396 = pneg %p103
        $region46: #{tpu_custom_call.1} parent=39 // pred_check_branch
          %398 = sbr.rel (%p396) target = $region48
        $region47: #{tpu_custom_call.1} parent=39 // pred_region
          %s399 = sand.u32 %s93, 1
          %s400 = sand.u32 %s93, 1
          %s401 = smul.addr %s400, 256
          %s402 = scalar_lea.vmem [#allocation2], %s401
          %s403 = smul.u32 16, %s27
          %s404 = smul.addr %s403, 8
          %s405 = scalar_lea.vmem %s2, %s404
          // Predicated region
          $region49: #{tpu_custom_call.1} parent=47 // pred_check
            _
          $region50: #{tpu_custom_call.1} parent=47 // pred_check_branch
            %407 = sbr.rel (0) target = $region52
          $region51: #{tpu_custom_call.1} parent=47 // pred_region
            // Predicated region
            $region53: #{tpu_custom_call.1} parent=51 // pred_check
              _
            $region54: #{tpu_custom_call.1} parent=51 // pred_check_branch
              %409 = sbr.rel (0) target = $region56
            $region55: #{tpu_custom_call.1} parent=51 // pred_region
              // Predicated region
              $region68: #{tpu_custom_call.1} parent=55 // pred_check
                _
              $region69: #{tpu_custom_call.1} parent=55 // pred_check_branch
                %487 = sbr.rel (0) target = $region71
              $region70: #{tpu_custom_call.1} parent=55 // pred_region
                loop: start=0, step=1, limit=1
                $region72: #{tpu_custom_call.1} parent=70 // loop_pre_header
                  _
                $region73: #{tpu_custom_call.1} parent=70 // loop_header
                  %s489 = sphi 0, %s493
                  %p490 = scmp.ge.s32.totalorder %s489, 1
                  %s494 = sphi %s405, %s405
                  %s495 = sphi %s402, %s402
                $region74: #{tpu_custom_call.1} parent=70 // loop_header_branch
                  %492 = sbr.rel (%p490) target = $region78
                $region75: #{tpu_custom_call.1} parent=70 // loop_body
                  %v496 = vld [vmem:[%s494] sm:$0xff]
                  %497 = vst [vmem:[%s495] sm:$0xff] %v496
                  %v498 = vld [vmem:[%s494 + $0x8] sm:$0xff]
                  %499 = vst [vmem:[%s495 + $0x8] sm:$0xff] %v498
                  %v500 = vld [vmem:[%s494 + $0x10] sm:$0xff]
                  %501 = vst [vmem:[%s495 + $0x10] sm:$0xff] %v500
                  %v502 = vld [vmem:[%s494 + $0x18] sm:$0xff]
                  %503 = vst [vmem:[%s495 + $0x18] sm:$0xff] %v502
                  %v504 = vld [vmem:[%s494 + $0x20] sm:$0xff]
                  %505 = vst [vmem:[%s495 + $0x20] sm:$0xff] %v504
                  %v506 = vld [vmem:[%s494 + $0x28] sm:$0xff]
                  %507 = vst [vmem:[%s495 + $0x28] sm:$0xff] %v506
                  %v508 = vld [vmem:[%s494 + $0x30] sm:$0xff]
                  %509 = vst [vmem:[%s495 + $0x30] sm:$0xff] %v508
                  %v510 = vld [vmem:[%s494 + $0x38] sm:$0xff]
                  %511 = vst [vmem:[%s495 + $0x38] sm:$0xff] %v510
                  %v512 = vld [vmem:[%s494 + $0x40] sm:$0xff]
                  %513 = vst [vmem:[%s495 + $0x40] sm:$0xff] %v512
                  %v514 = vld [vmem:[%s494 + $0x48] sm:$0xff]
                  %515 = vst [vmem:[%s495 + $0x48] sm:$0xff] %v514
                  %v516 = vld [vmem:[%s494 + $0x50] sm:$0xff]
                  %517 = vst [vmem:[%s495 + $0x50] sm:$0xff] %v516
                  %v518 = vld [vmem:[%s494 + $0x58] sm:$0xff]
                  %519 = vst [vmem:[%s495 + $0x58] sm:$0xff] %v518
                  %v520 = vld [vmem:[%s494 + $0x60] sm:$0xff]
                  %521 = vst [vmem:[%s495 + $0x60] sm:$0xff] %v520
                  %v522 = vld [vmem:[%s494 + $0x68] sm:$0xff]
                  %523 = vst [vmem:[%s495 + $0x68] sm:$0xff] %v522
                  %v524 = vld [vmem:[%s494 + $0x70] sm:$0xff]
                  %525 = vst [vmem:[%s495 + $0x70] sm:$0xff] %v524
                  %v526 = vld [vmem:[%s494 + $0x78] sm:$0xff]
                  %527 = vst [vmem:[%s495 + $0x78] sm:$0xff] %v526
                  %v528 = vld [vmem:[%s494 + $0x100] sm:$0xff]
                  %529 = vst [vmem:[%s495 + $0x80] sm:$0xff] %v528
                  %v530 = vld [vmem:[%s494 + $0x108] sm:$0xff]
                  %531 = vst [vmem:[%s495 + $0x88] sm:$0xff] %v530
                  %v532 = vld [vmem:[%s494 + $0x110] sm:$0xff]
                  %533 = vst [vmem:[%s495 + $0x90] sm:$0xff] %v532
                  %v534 = vld [vmem:[%s494 + $0x118] sm:$0xff]
                  %535 = vst [vmem:[%s495 + $0x98] sm:$0xff] %v534
                  %v536 = vld [vmem:[%s494 + $0x120] sm:$0xff]
                  %537 = vst [vmem:[%s495 + $0xa0] sm:$0xff] %v536
                  %v538 = vld [vmem:[%s494 + $0x128] sm:$0xff]
                  %539 = vst [vmem:[%s495 + $0xa8] sm:$0xff] %v538
                  %v540 = vld [vmem:[%s494 + $0x130] sm:$0xff]
                  %541 = vst [vmem:[%s495 + $0xb0] sm:$0xff] %v540
                  %v542 = vld [vmem:[%s494 + $0x138] sm:$0xff]
                  %543 = vst [vmem:[%s495 + $0xb8] sm:$0xff] %v542
                  %v544 = vld [vmem:[%s494 + $0x140] sm:$0xff]
                  %545 = vst [vmem:[%s495 + $0xc0] sm:$0xff] %v544
                  %v546 = vld [vmem:[%s494 + $0x148] sm:$0xff]
                  %547 = vst [vmem:[%s495 + $0xc8] sm:$0xff] %v546
                  %v548 = vld [vmem:[%s494 + $0x150] sm:$0xff]
                  %549 = vst [vmem:[%s495 + $0xd0] sm:$0xff] %v548
                  %v550 = vld [vmem:[%s494 + $0x158] sm:$0xff]
                  %551 = vst [vmem:[%s495 + $0xd8] sm:$0xff] %v550
                  %v552 = vld [vmem:[%s494 + $0x160] sm:$0xff]
                  %553 = vst [vmem:[%s495 + $0xe0] sm:$0xff] %v552
                  %v554 = vld [vmem:[%s494 + $0x168] sm:$0xff]
                  %555 = vst [vmem:[%s495 + $0xe8] sm:$0xff] %v554
                  %v556 = vld [vmem:[%s494 + $0x170] sm:$0xff]
                  %557 = vst [vmem:[%s495 + $0xf0] sm:$0xff] %v556
                  %v558 = vld [vmem:[%s494 + $0x178] sm:$0xff]
                  %559 = vst [vmem:[%s495 + $0xf8] sm:$0xff] %v558
                $region76: #{tpu_custom_call.1} parent=70 // loop_footer
                  %s493 = sadd.s32 1, %s489
                $region77: #{tpu_custom_call.1} parent=70 // loop_footer_branch
                  %488 = sbr.rel target = $region73
                $region78: #{tpu_custom_call.1} parent=70 // loop_exit
                  _
              $region71: #{tpu_custom_call.1} parent=55 // pred_fallthru
                _
              // Predicated region
              $region79: #{tpu_custom_call.1} parent=55 // pred_check
                _
              $region80: #{tpu_custom_call.1} parent=55 // pred_check_branch
                %561 = sbr.rel target = $region82
              $region81: #{tpu_custom_call.1} parent=55 // pred_region
                _
              $region82: #{tpu_custom_call.1} parent=55 // pred_fallthru
                _
            $region56: #{tpu_custom_call.1} parent=51 // pred_fallthru
              _
            // Predicated region
            $region57: #{tpu_custom_call.1} parent=51 // pred_check
              _
            $region58: #{tpu_custom_call.1} parent=51 // pred_check_branch
              %411 = sbr.rel target = $region60
            $region59: #{tpu_custom_call.1} parent=51 // pred_region
              %s413 = ssub.s32 256, 1
              loop: start=0, step=1, limit=1
              $region61: #{tpu_custom_call.1} parent=59 // loop_pre_header
                _
              $region62: #{tpu_custom_call.1} parent=59 // loop_header
                %s415 = sphi 0, %s419
                %p416 = scmp.ge.s32.totalorder %s415, 1
                %s420 = sphi %s405, %s405
                %s421 = sphi %s402, %s402
              $region63: #{tpu_custom_call.1} parent=59 // loop_header_branch
                %418 = sbr.rel (%p416) target = $region67
              $region64: #{tpu_custom_call.1} parent=59 // loop_body
                %v422 = vld [vmem:[%s420] sm:%s413]
                %423 = vst [vmem:[%s421] sm:%s413] %v422
                %v424 = vld [vmem:[%s420 + $0x8] sm:%s413]
                %425 = vst [vmem:[%s421 + $0x8] sm:%s413] %v424
                %v426 = vld [vmem:[%s420 + $0x10] sm:%s413]
                %427 = vst [vmem:[%s421 + $0x10] sm:%s413] %v426
                %v428 = vld [vmem:[%s420 + $0x18] sm:%s413]
                %429 = vst [vmem:[%s421 + $0x18] sm:%s413] %v428
                %v430 = vld [vmem:[%s420 + $0x20] sm:%s413]
                %431 = vst [vmem:[%s421 + $0x20] sm:%s413] %v430
                %v432 = vld [vmem:[%s420 + $0x28] sm:%s413]
                %433 = vst [vmem:[%s421 + $0x28] sm:%s413] %v432
                %v434 = vld [vmem:[%s420 + $0x30] sm:%s413]
                %435 = vst [vmem:[%s421 + $0x30] sm:%s413] %v434
                %v436 = vld [vmem:[%s420 + $0x38] sm:%s413]
                %437 = vst [vmem:[%s421 + $0x38] sm:%s413] %v436
                %v438 = vld [vmem:[%s420 + $0x40] sm:%s413]
                %439 = vst [vmem:[%s421 + $0x40] sm:%s413] %v438
                %v440 = vld [vmem:[%s420 + $0x48] sm:%s413]
                %441 = vst [vmem:[%s421 + $0x48] sm:%s413] %v440
                %v442 = vld [vmem:[%s420 + $0x50] sm:%s413]
                %443 = vst [vmem:[%s421 + $0x50] sm:%s413] %v442
                %v444 = vld [vmem:[%s420 + $0x58] sm:%s413]
                %445 = vst [vmem:[%s421 + $0x58] sm:%s413] %v444
                %v446 = vld [vmem:[%s420 + $0x60] sm:%s413]
                %447 = vst [vmem:[%s421 + $0x60] sm:%s413] %v446
                %v448 = vld [vmem:[%s420 + $0x68] sm:%s413]
                %449 = vst [vmem:[%s421 + $0x68] sm:%s413] %v448
                %v450 = vld [vmem:[%s420 + $0x70] sm:%s413]
                %451 = vst [vmem:[%s421 + $0x70] sm:%s413] %v450
                %v452 = vld [vmem:[%s420 + $0x78] sm:%s413]
                %453 = vst [vmem:[%s421 + $0x78] sm:%s413] %v452
                %v454 = vld [vmem:[%s420 + $0x100] sm:%s413]
                %455 = vst [vmem:[%s421 + $0x80] sm:%s413] %v454
                %v456 = vld [vmem:[%s420 + $0x108] sm:%s413]
                %457 = vst [vmem:[%s421 + $0x88] sm:%s413] %v456
                %v458 = vld [vmem:[%s420 + $0x110] sm:%s413]
                %459 = vst [vmem:[%s421 + $0x90] sm:%s413] %v458
                %v460 = vld [vmem:[%s420 + $0x118] sm:%s413]
                %461 = vst [vmem:[%s421 + $0x98] sm:%s413] %v460
                %v462 = vld [vmem:[%s420 + $0x120] sm:%s413]
                %463 = vst [vmem:[%s421 + $0xa0] sm:%s413] %v462
                %v464 = vld [vmem:[%s420 + $0x128] sm:%s413]
                %465 = vst [vmem:[%s421 + $0xa8] sm:%s413] %v464
                %v466 = vld [vmem:[%s420 + $0x130] sm:%s413]
                %467 = vst [vmem:[%s421 + $0xb0] sm:%s413] %v466
                %v468 = vld [vmem:[%s420 + $0x138] sm:%s413]
                %469 = vst [vmem:[%s421 + $0xb8] sm:%s413] %v468
                %v470 = vld [vmem:[%s420 + $0x140] sm:%s413]
                %471 = vst [vmem:[%s421 + $0xc0] sm:%s413] %v470
                %v472 = vld [vmem:[%s420 + $0x148] sm:%s413]
                %473 = vst [vmem:[%s421 + $0xc8] sm:%s413] %v472
                %v474 = vld [vmem:[%s420 + $0x150] sm:%s413]
                %475 = vst [vmem:[%s421 + $0xd0] sm:%s413] %v474
                %v476 = vld [vmem:[%s420 + $0x158] sm:%s413]
                %477 = vst [vmem:[%s421 + $0xd8] sm:%s413] %v476
                %v478 = vld [vmem:[%s420 + $0x160] sm:%s413]
                %479 = vst [vmem:[%s421 + $0xe0] sm:%s413] %v478
                %v480 = vld [vmem:[%s420 + $0x168] sm:%s413]
                %481 = vst [vmem:[%s421 + $0xe8] sm:%s413] %v480
                %v482 = vld [vmem:[%s420 + $0x170] sm:%s413]
                %483 = vst [vmem:[%s421 + $0xf0] sm:%s413] %v482
                %v484 = vld [vmem:[%s420 + $0x178] sm:%s413]
                %485 = vst [vmem:[%s421 + $0xf8] sm:%s413] %v484
              $region65: #{tpu_custom_call.1} parent=59 // loop_footer
                %s419 = sadd.s32 1, %s415
              $region66: #{tpu_custom_call.1} parent=59 // loop_footer_branch
                %414 = sbr.rel target = $region62
              $region67: #{tpu_custom_call.1} parent=59 // loop_exit
                _
            $region60: #{tpu_custom_call.1} parent=51 // pred_fallthru
              _
          $region52: #{tpu_custom_call.1} parent=47 // pred_fallthru
            _
          %562 = vnop
        $region48: #{tpu_custom_call.1} parent=39 // pred_fallthru
          _
        // Predicated region
        $region83: #{tpu_custom_call.1} parent=39 // pred_check
          %p563 = pneg %p155
        $region84: #{tpu_custom_call.1} parent=39 // pred_check_branch
          %565 = sbr.rel (%p563) target = $region86
        $region85: #{tpu_custom_call.1} parent=39 // pred_region
          %s566 = smul.u32 16, %s27
          %p567 = scmp.lt.s32.totalorder %s566, 31
          %s568 = scalar_select %p567, %s566, 31
          %s569 = smul.addr %s568, 8
          %s570 = scalar_lea.vmem %s4, %s569
          %s571 = smul.u32 16, %s27
        $region86: #{tpu_custom_call.1} parent=39 // pred_fallthru
          _
        // Predicated region
        $region87: #{tpu_custom_call.1} parent=39 // pred_check
          %p572 = pneg %p207
        $region88: #{tpu_custom_call.1} parent=39 // pred_check_branch
          %574 = sbr.rel (%p572) target = $region90
        $region89: #{tpu_custom_call.1} parent=39 // pred_region
          %s575 = smul.u32 16, %s27
          %p576 = scmp.lt.s32.totalorder %s575, 31
          %s577 = scalar_select %p576, %s575, 31
          %s578 = smul.addr %s577, 8
          %s579 = scalar_lea.vmem %s6, %s578
          %s580 = smul.u32 16, %s27
        $region90: #{tpu_custom_call.1} parent=39 // pred_fallthru
          _
      $region40: #{tpu_custom_call.1} parent=5 // pred_fallthru
        _
      %p581 = scmp.le.s32.totalorder 1, %s19
      %p582 = scmp.lt.s32.totalorder %s19, 3
      %p583 = pnand %p581, %p582
      %p584 = pneg %p583
      // Predicated region
      $region91: #{tpu_custom_call.1} parent=5 // pred_check
        _
      $region92: #{tpu_custom_call.1} parent=5 // pred_check_branch
        %586 = sbr.rel (%p583) target = $region94
      $region93: #{tpu_custom_call.1} parent=5 // pred_region
        %s587 = ssub.s32 %s19, 1
        %s588 = sand.u32 %s96, 1
        %s589 = sand.u32 %s96, 1
        %s590 = smul.addr %s589, 256
        %s591 = scalar_lea.vmem [#allocation2], %s590
        // Predicated region
        $region95: #{tpu_custom_call.1} parent=93 // pred_check
          %p592 = pneg %p109
        $region96: #{tpu_custom_call.1} parent=93 // pred_check_branch
          %594 = sbr.rel (%p592) target = $region98
        $region97: #{tpu_custom_call.1} parent=93 // pred_region
          _
        $region98: #{tpu_custom_call.1} parent=93 // pred_fallthru
          _
        %s595 = smul.u32 16, %s29
        %p596 = scmp.lt.s32.totalorder %s595, 31
        %s597 = scalar_select %p596, %s595, 31
        %s598 = smul.addr %s597, 8
        %s599 = scalar_lea.vmem %s0, %s598
        %p600 = pneg %p57
        %p601 = pneg %p54
        %s602 = smul.u32 2, %s28
        %p603 = scmp.lt.s32.totalorder %s602, 1
        %s604 = scalar_select %p603, %s602, 1
        %s605 = smul.addr %s604, 8
        %s606 = scalar_lea.vmem %s1, %s605
        %p607 = pneg %p83
        %p608 = pneg %p80
        %s609 = sand.u32 %s96, 1
        %s610 = sand.u32 %s96, 1
        %s611 = smul.addr %s610, 256
        %s612 = scalar_lea.vmem [#allocation2], %s611
        %p613 = pneg %p109
        %p614 = pneg %p106
        %s615 = smul.u32 2, %s28
        %p616 = scmp.lt.s32.totalorder %s615, 1
        %s617 = scalar_select %p616, %s615, 1
        %s618 = scalar_lea.vmem %s3, %s617
        %p619 = pneg %p135
        %p620 = pneg %p132
        %s621 = smul.u32 16, %s29
        %p622 = scmp.lt.s32.totalorder %s621, 31
        %s623 = scalar_select %p622, %s621, 31
        %s624 = smul.addr %s623, 8
        %s625 = scalar_lea.vmem %s4, %s624
        %p626 = pneg %p161
        %p627 = pneg %p158
        %s628 = smul.u32 2, %s28
        %p629 = scmp.lt.s32.totalorder %s628, 1
        %s630 = scalar_select %p629, %s628, 1
        %s631 = scalar_lea.vmem %s5, %s630
        %p632 = pneg %p187
        %p633 = pneg %p184
        %s634 = smul.u32 16, %s29
        %p635 = scmp.lt.s32.totalorder %s634, 31
        %s636 = scalar_select %p635, %s634, 31
        %s637 = smul.addr %s636, 8
        %s638 = scalar_lea.vmem %s6, %s637
        %p639 = pneg %p213
        %p640 = pneg %p210
        %s641 = smul.u32 2, %s28
        %p642 = scmp.lt.s32.totalorder %s641, 1
        %s643 = scalar_select %p642, %s641, 1
        %s644 = scalar_lea.vmem %s7, %s643
        %p645 = pneg %p239
        %p646 = pneg %p236
        %s647 = smul.u32 2, %s28
        %p648 = scmp.lt.s32.totalorder %s647, 1
        %s649 = scalar_select %p648, %s647, 1
        %s650 = scalar_lea.vmem %s8, %s649
        %p651 = pneg %p265
        %p652 = pneg %p262
        %s653 = smul.u32 2, %s28
        %p654 = scmp.lt.s32.totalorder %s653, 1
        %s655 = scalar_select %p654, %s653, 1
        %s656 = scalar_lea.vmem %s9, %s655
        %p657 = pneg %p291
        %p658 = pneg %p288
        %p659 = pneg %p319
        %p660 = pneg %p316
        %s661 = sand.u32 %s306, 1
        %s662 = scalar_lea.sflag [#allocation4], %s661
        %s663 = sand.u32 %s306, 1
        %s664 = smul.addr %s663, 2
        %s665 = scalar_lea.vmem [#allocation3], %s664
        %s666 = smul.u32 16, %s29
        %p667 = scmp.lt.s32.totalorder %s666, 31
        %s668 = scalar_select %p667, %s666, 31
        %s669 = smul.addr %s668, 8
        %s670 = scalar_lea.vmem %s0, %s669
        %s671 = smul.u32 16, %s29
        %s672 = smul.u32 2, %s28
        %p673 = scmp.lt.s32.totalorder %s672, 1
        %s674 = scalar_select %p673, %s672, 1
        %s675 = smul.addr %s674, 8
        %s676 = scalar_lea.vmem %s1, %s675
        %s677 = smul.u32 2, %s28
        %s678 = smul.u32 16, %s29
        %s679 = smul.u32 2, %s28
        %p680 = scmp.lt.s32.totalorder %s679, 1
        %s681 = scalar_select %p680, %s679, 1
        %s682 = scalar_lea.vmem %s3, %s681
        %s683 = smul.u32 2, %s28
        %s684 = smul.u32 16, %s29
        %p685 = scmp.lt.s32.totalorder %s684, 31
        %s686 = scalar_select %p685, %s684, 31
        %s687 = smul.addr %s686, 8
        %s688 = scalar_lea.vmem %s4, %s687
        %s689 = smul.u32 16, %s29
        %s690 = smul.u32 2, %s28
        %p691 = scmp.lt.s32.totalorder %s690, 1
        %s692 = scalar_select %p691, %s690, 1
        %s693 = scalar_lea.vmem %s5, %s692
        %s694 = smul.u32 2, %s28
        %s695 = smul.u32 16, %s29
        %p696 = scmp.lt.s32.totalorder %s695, 31
        %s697 = scalar_select %p696, %s695, 31
        %s698 = smul.addr %s697, 8
        %s699 = scalar_lea.vmem %s6, %s698
        %s700 = smul.u32 16, %s29
        %s701 = smul.u32 2, %s28
        %p702 = scmp.lt.s32.totalorder %s701, 1
        %s703 = scalar_select %p702, %s701, 1
        %s704 = scalar_lea.vmem %s7, %s703
        %s705 = smul.u32 2, %s28
        %s706 = smul.u32 2, %s28
        %p707 = scmp.lt.s32.totalorder %s706, 1
        %s708 = scalar_select %p707, %s706, 1
        %s709 = scalar_lea.vmem %s8, %s708
        %s710 = smul.u32 2, %s28
        %s711 = smul.u32 2, %s28
        %p712 = scmp.lt.s32.totalorder %s711, 1
        %s713 = scalar_select %p712, %s711, 1
        %s714 = scalar_lea.vmem %s9, %s713
        %s715 = smul.u32 2, %s28
        %s716 = smul.u32 2, %s28
        %s717 = smul.u32 %s29, 128
        %s718 = smul.u32 %s28, 256
        %v719 = vld [vmem:[%s670] sm:$0xff]
        %v720 = vld [vmem:[%s670 + $0x8] sm:$0xff]
        %v721 = vld [vmem:[%s670 + $0x10] sm:$0xff]
        %v722 = vld [vmem:[%s670 + $0x18] sm:$0xff]
        %v723 = vld [vmem:[%s670 + $0x20] sm:$0xff]
        %v724 = vld [vmem:[%s670 + $0x28] sm:$0xff]
        %v725 = vld [vmem:[%s670 + $0x30] sm:$0xff]
        %v726 = vld [vmem:[%s670 + $0x38] sm:$0xff]
        %v727 = vld [vmem:[%s670 + $0x40] sm:$0xff]
        %v728 = vld [vmem:[%s670 + $0x48] sm:$0xff]
        %v729 = vld [vmem:[%s670 + $0x50] sm:$0xff]
        %v730 = vld [vmem:[%s670 + $0x58] sm:$0xff]
        %v731 = vld [vmem:[%s670 + $0x60] sm:$0xff]
        %v732 = vld [vmem:[%s670 + $0x68] sm:$0xff]
        %v733 = vld [vmem:[%s670 + $0x70] sm:$0xff]
        %v734 = vld [vmem:[%s670 + $0x78] sm:$0xff]
        %v735 = vld [vmem:[%s676] sm:$0xff]
        %v736 = vld [vmem:[%s676 + $0x8] sm:$0xff]
        %v737 = vld [vmem:[%s676 + $0x10] sm:$0xff]
        %v738 = vld [vmem:[%s676 + $0x18] sm:$0xff]
        %vm739 = vcmask 130048
        %v741 = vsel %vm739, %v719, 0
        %v744 = vsel %vm739, %v720, 0
        %v747 = vsel %vm739, %v721, 0
        %v750 = vsel %vm739, %v722, 0
        %v753 = vsel %vm739, %v723, 0
        %v756 = vsel %vm739, %v724, 0
        %v759 = vsel %vm739, %v725, 0
        %v762 = vsel %vm739, %v726, 0
        %v765 = vsel %vm739, %v727, 0
        %v768 = vsel %vm739, %v728, 0
        %v771 = vsel %vm739, %v729, 0
        %v774 = vsel %vm739, %v730, 0
        %v777 = vsel %vm739, %v731, 0
        %v780 = vsel %vm739, %v732, 0
        %v783 = vsel %vm739, %v733, 0
        %v786 = vsel %vm739, %v734, 0
        %788 = vmatpush.msra.mxu0 0.0
        %789 = vmatpush.msra.mxu0 0.0
        %790 = vmatpush.msra.mxu0 0.0
        %791 = vmatpush.msra.mxu0 0.0
        %792 = vmatpush.msra.mxu0 0.0
        %793 = vmatpush.msra.mxu0 0.0
        %794 = vmatpush.msra.mxu0 0.0
        %795 = vmatpush.msra.mxu0 0.0
        %796 = vmatpush.msra.mxu0 0.0
        %797 = vmatpush.msra.mxu0 0.0
        %798 = vmatpush.msra.mxu0 0.0
        %799 = vmatpush.msra.mxu0 0.0
        %800 = vmatpush.msra.mxu0 0.0
        %801 = vmatpush.msra.mxu0 0.0
        %802 = vmatpush.msra.mxu0 %v737
        %803 = vmatpush.msra.mxu0 %v735
        %804 = vmatmul.f32.gmra.mxu0 %v741
        %v805 = vpop.f32.mrf.mxu0
        %v806 = vadd.f32 0.0, %v805
        %807 = vmatmul.f32.gmra.mxu0 %v744
        %v808 = vpop.f32.mrf.mxu0
        %v809 = vadd.f32 0.0, %v808
        %810 = vmatmul.f32.gmra.mxu0 %v747
        %v811 = vpop.f32.mrf.mxu0
        %v812 = vadd.f32 0.0, %v811
        %813 = vmatmul.f32.gmra.mxu0 %v750
        %v814 = vpop.f32.mrf.mxu0
        %v815 = vadd.f32 0.0, %v814
        %816 = vmatmul.f32.gmra.mxu0 %v753
        %v817 = vpop.f32.mrf.mxu0
        %v818 = vadd.f32 0.0, %v817
        %819 = vmatmul.f32.gmra.mxu0 %v756
        %v820 = vpop.f32.mrf.mxu0
        %v821 = vadd.f32 0.0, %v820
        %822 = vmatmul.f32.gmra.mxu0 %v759
        %v823 = vpop.f32.mrf.mxu0
        %v824 = vadd.f32 0.0, %v823
        %825 = vmatmul.f32.gmra.mxu0 %v762
        %v826 = vpop.f32.mrf.mxu0
        %v827 = vadd.f32 0.0, %v826
        %828 = vmatmul.f32.gmra.mxu0 %v765
        %v829 = vpop.f32.mrf.mxu0
        %v830 = vadd.f32 0.0, %v829
        %831 = vmatmul.f32.gmra.mxu0 %v768
        %v832 = vpop.f32.mrf.mxu0
        %v833 = vadd.f32 0.0, %v832
        %834 = vmatmul.f32.gmra.mxu0 %v771
        %v835 = vpop.f32.mrf.mxu0
        %v836 = vadd.f32 0.0, %v835
        %837 = vmatmul.f32.gmra.mxu0 %v774
        %v838 = vpop.f32.mrf.mxu0
        %v839 = vadd.f32 0.0, %v838
        %840 = vmatmul.f32.gmra.mxu0 %v777
        %v841 = vpop.f32.mrf.mxu0
        %v842 = vadd.f32 0.0, %v841
        %843 = vmatmul.f32.gmra.mxu0 %v780
        %v844 = vpop.f32.mrf.mxu0
        %v845 = vadd.f32 0.0, %v844
        %846 = vmatmul.f32.gmra.mxu0 %v783
        %v847 = vpop.f32.mrf.mxu0
        %v848 = vadd.f32 0.0, %v847
        %849 = vmatmul.f32.gmra.mxu0 %v786
        %v850 = vpop.f32.mrf.mxu0
        %v851 = vadd.f32 0.0, %v850
        %852 = vdwg.mxu0
        %853 = vmatpush.msra.mxu0 0.0
        %854 = vmatpush.msra.mxu0 0.0
        %855 = vmatpush.msra.mxu0 0.0
        %856 = vmatpush.msra.mxu0 0.0
        %857 = vmatpush.msra.mxu0 0.0
        %858 = vmatpush.msra.mxu0 0.0
        %859 = vmatpush.msra.mxu0 0.0
        %860 = vmatpush.msra.mxu0 0.0
        %861 = vmatpush.msra.mxu0 0.0
        %862 = vmatpush.msra.mxu0 0.0
        %863 = vmatpush.msra.mxu0 0.0
        %864 = vmatpush.msra.mxu0 0.0
        %865 = vmatpush.msra.mxu0 0.0
        %866 = vmatpush.msra.mxu0 0.0
        %867 = vmatpush.msra.mxu0 %v738
        %868 = vmatpush.msra.mxu0 %v736
        %869 = vmatmul.f32.gmra.mxu0 %v741
        %v870 = vpop.f32.mrf.mxu0
        %v871 = vadd.f32 0.0, %v870
        %872 = vmatmul.f32.gmra.mxu0 %v744
        %v873 = vpop.f32.mrf.mxu0
        %v874 = vadd.f32 0.0, %v873
        %875 = vmatmul.f32.gmra.mxu0 %v747
        %v876 = vpop.f32.mrf.mxu0
        %v877 = vadd.f32 0.0, %v876
        %878 = vmatmul.f32.gmra.mxu0 %v750
        %v879 = vpop.f32.mrf.mxu0
        %v880 = vadd.f32 0.0, %v879
        %881 = vmatmul.f32.gmra.mxu0 %v753
        %v882 = vpop.f32.mrf.mxu0
        %v883 = vadd.f32 0.0, %v882
        %884 = vmatmul.f32.gmra.mxu0 %v756
        %v885 = vpop.f32.mrf.mxu0
        %v886 = vadd.f32 0.0, %v885
        %887 = vmatmul.f32.gmra.mxu0 %v759
        %v888 = vpop.f32.mrf.mxu0
        %v889 = vadd.f32 0.0, %v888
        %890 = vmatmul.f32.gmra.mxu0 %v762
        %v891 = vpop.f32.mrf.mxu0
        %v892 = vadd.f32 0.0, %v891
        %893 = vmatmul.f32.gmra.mxu0 %v765
        %v894 = vpop.f32.mrf.mxu0
        %v895 = vadd.f32 0.0, %v894
        %896 = vmatmul.f32.gmra.mxu0 %v768
        %v897 = vpop.f32.mrf.mxu0
        %v898 = vadd.f32 0.0, %v897
        %899 = vmatmul.f32.gmra.mxu0 %v771
        %v900 = vpop.f32.mrf.mxu0
        %v901 = vadd.f32 0.0, %v900
        %902 = vmatmul.f32.gmra.mxu0 %v774
        %v903 = vpop.f32.mrf.mxu0
        %v904 = vadd.f32 0.0, %v903
        %905 = vmatmul.f32.gmra.mxu0 %v777
        %v906 = vpop.f32.mrf.mxu0
        %v907 = vadd.f32 0.0, %v906
        %908 = vmatmul.f32.gmra.mxu0 %v780
        %v909 = vpop.f32.mrf.mxu0
        %v910 = vadd.f32 0.0, %v909
        %911 = vmatmul.f32.gmra.mxu0 %v783
        %v912 = vpop.f32.mrf.mxu0
        %v913 = vadd.f32 0.0, %v912
        %914 = vmatmul.f32.gmra.mxu0 %v786
        %v915 = vpop.f32.mrf.mxu0
        %v916 = vadd.f32 0.0, %v915
        %917 = vdwg.mxu0
        %v918 = vld [vmem:[%s688] sm:$0xff]
        %v919 = vld [vmem:[%s688 + $0x8] sm:$0xff]
        %v920 = vld [vmem:[%s688 + $0x10] sm:$0xff]
        %v921 = vld [vmem:[%s688 + $0x18] sm:$0xff]
        %v922 = vld [vmem:[%s688 + $0x20] sm:$0xff]
        %v923 = vld [vmem:[%s688 + $0x28] sm:$0xff]
        %v924 = vld [vmem:[%s688 + $0x30] sm:$0xff]
        %v925 = vld [vmem:[%s688 + $0x38] sm:$0xff]
        %v926 = vld [vmem:[%s688 + $0x40] sm:$0xff]
        %v927 = vld [vmem:[%s688 + $0x48] sm:$0xff]
        %v928 = vld [vmem:[%s688 + $0x50] sm:$0xff]
        %v929 = vld [vmem:[%s688 + $0x58] sm:$0xff]
        %v930 = vld [vmem:[%s688 + $0x60] sm:$0xff]
        %v931 = vld [vmem:[%s688 + $0x68] sm:$0xff]
        %v932 = vld [vmem:[%s688 + $0x70] sm:$0xff]
        %v933 = vld [vmem:[%s688 + $0x78] sm:$0xff]
        %v934 = vld [vmem:[%s693] sm:$0x3]
        %936 = vset.pattern.permute.xlu0 0
        %937 = vperm.xlu0 %936, %v918
        %v938 = vpop.permute.xlu0 %937
        %941 = vset.pattern.permute.xlu0 0
        %942 = vperm.xlu0 %941, %v919
        %v943 = vpop.permute.xlu0 %942
        %946 = vset.pattern.permute.xlu0 0
        %947 = vperm.xlu0 %946, %v920
        %v948 = vpop.permute.xlu0 %947
        %951 = vset.pattern.permute.xlu0 0
        %952 = vperm.xlu0 %951, %v921
        %v953 = vpop.permute.xlu0 %952
        %956 = vset.pattern.permute.xlu0 0
        %957 = vperm.xlu0 %956, %v922
        %v958 = vpop.permute.xlu0 %957
        %961 = vset.pattern.permute.xlu0 0
        %962 = vperm.xlu0 %961, %v923
        %v963 = vpop.permute.xlu0 %962
        %966 = vset.pattern.permute.xlu0 0
        %967 = vperm.xlu0 %966, %v924
        %v968 = vpop.permute.xlu0 %967
        %971 = vset.pattern.permute.xlu0 0
        %972 = vperm.xlu0 %971, %v925
        %v973 = vpop.permute.xlu0 %972
        %976 = vset.pattern.permute.xlu0 0
        %977 = vperm.xlu0 %976, %v926
        %v978 = vpop.permute.xlu0 %977
        %981 = vset.pattern.permute.xlu0 0
        %982 = vperm.xlu0 %981, %v927
        %v983 = vpop.permute.xlu0 %982
        %986 = vset.pattern.permute.xlu0 0
        %987 = vperm.xlu0 %986, %v928
        %v988 = vpop.permute.xlu0 %987
        %991 = vset.pattern.permute.xlu0 0
        %992 = vperm.xlu0 %991, %v929
        %v993 = vpop.permute.xlu0 %992
        %996 = vset.pattern.permute.xlu0 0
        %997 = vperm.xlu0 %996, %v930
        %v998 = vpop.permute.xlu0 %997
        %1001 = vset.pattern.permute.xlu0 0
        %1002 = vperm.xlu0 %1001, %v931
        %v1003 = vpop.permute.xlu0 %1002
        %1006 = vset.pattern.permute.xlu0 0
        %1007 = vperm.xlu0 %1006, %v932
        %v1008 = vpop.permute.xlu0 %1007
        %1011 = vset.pattern.permute.xlu0 0
        %1012 = vperm.xlu0 %1011, %v933
        %v1013 = vpop.permute.xlu0 %1012
        %v1016 = vperm.slane %v934, 0
        %v1017 = vperm.slane %v934, 1
        %v1020 = vadd.f32 %v938, %v1016
        %v1021 = vadd.f32 %v938, %v1017
        %v1022 = vadd.f32 %v943, %v1016
        %v1023 = vadd.f32 %v943, %v1017
        %v1024 = vadd.f32 %v948, %v1016
        %v1025 = vadd.f32 %v948, %v1017
        %v1026 = vadd.f32 %v953, %v1016
        %v1027 = vadd.f32 %v953, %v1017
        %v1028 = vadd.f32 %v958, %v1016
        %v1029 = vadd.f32 %v958, %v1017
        %v1030 = vadd.f32 %v963, %v1016
        %v1031 = vadd.f32 %v963, %v1017
        %v1032 = vadd.f32 %v968, %v1016
        %v1033 = vadd.f32 %v968, %v1017
        %v1034 = vadd.f32 %v973, %v1016
        %v1035 = vadd.f32 %v973, %v1017
        %v1036 = vadd.f32 %v978, %v1016
        %v1037 = vadd.f32 %v978, %v1017
        %v1038 = vadd.f32 %v983, %v1016
        %v1039 = vadd.f32 %v983, %v1017
        %v1040 = vadd.f32 %v988, %v1016
        %v1041 = vadd.f32 %v988, %v1017
        %v1042 = vadd.f32 %v993, %v1016
        %v1043 = vadd.f32 %v993, %v1017
        %v1044 = vadd.f32 %v998, %v1016
        %v1045 = vadd.f32 %v998, %v1017
        %v1046 = vadd.f32 %v1003, %v1016
        %v1047 = vadd.f32 %v1003, %v1017
        %v1048 = vadd.f32 %v1008, %v1016
        %v1049 = vadd.f32 %v1008, %v1017
        %v1050 = vadd.f32 %v1013, %v1016
        %v1051 = vadd.f32 %v1013, %v1017
        %v1052 = vmul.f32 %v806, 2.0
        %v1053 = vmul.f32 %v871, 2.0
        %v1054 = vmul.f32 %v809, 2.0
        %v1055 = vmul.f32 %v874, 2.0
        %v1056 = vmul.f32 %v812, 2.0
        %v1057 = vmul.f32 %v877, 2.0
        %v1058 = vmul.f32 %v815, 2.0
        %v1059 = vmul.f32 %v880, 2.0
        %v1060 = vmul.f32 %v818, 2.0
        %v1061 = vmul.f32 %v883, 2.0
        %v1062 = vmul.f32 %v821, 2.0
        %v1063 = vmul.f32 %v886, 2.0
        %v1064 = vmul.f32 %v824, 2.0
        %v1065 = vmul.f32 %v889, 2.0
        %v1066 = vmul.f32 %v827, 2.0
        %v1067 = vmul.f32 %v892, 2.0
        %v1068 = vmul.f32 %v830, 2.0
        %v1069 = vmul.f32 %v895, 2.0
        %v1070 = vmul.f32 %v833, 2.0
        %v1071 = vmul.f32 %v898, 2.0
        %v1072 = vmul.f32 %v836, 2.0
        %v1073 = vmul.f32 %v901, 2.0
        %v1074 = vmul.f32 %v839, 2.0
        %v1075 = vmul.f32 %v904, 2.0
        %v1076 = vmul.f32 %v842, 2.0
        %v1077 = vmul.f32 %v907, 2.0
        %v1078 = vmul.f32 %v845, 2.0
        %v1079 = vmul.f32 %v910, 2.0
        %v1080 = vmul.f32 %v848, 2.0
        %v1081 = vmul.f32 %v913, 2.0
        %v1082 = vmul.f32 %v851, 2.0
        %v1083 = vmul.f32 %v916, 2.0
        %v1084 = vsub.f32 %v1020, %v1052
        %v1085 = vsub.f32 %v1021, %v1053
        %v1086 = vsub.f32 %v1022, %v1054
        %v1087 = vsub.f32 %v1023, %v1055
        %v1088 = vsub.f32 %v1024, %v1056
        %v1089 = vsub.f32 %v1025, %v1057
        %v1090 = vsub.f32 %v1026, %v1058
        %v1091 = vsub.f32 %v1027, %v1059
        %v1092 = vsub.f32 %v1028, %v1060
        %v1093 = vsub.f32 %v1029, %v1061
        %v1094 = vsub.f32 %v1030, %v1062
        %v1095 = vsub.f32 %v1031, %v1063
        %v1096 = vsub.f32 %v1032, %v1064
        %v1097 = vsub.f32 %v1033, %v1065
        %v1098 = vsub.f32 %v1034, %v1066
        %v1099 = vsub.f32 %v1035, %v1067
        %v1100 = vsub.f32 %v1036, %v1068
        %v1101 = vsub.f32 %v1037, %v1069
        %v1102 = vsub.f32 %v1038, %v1070
        %v1103 = vsub.f32 %v1039, %v1071
        %v1104 = vsub.f32 %v1040, %v1072
        %v1105 = vsub.f32 %v1041, %v1073
        %v1106 = vsub.f32 %v1042, %v1074
        %v1107 = vsub.f32 %v1043, %v1075
        %v1108 = vsub.f32 %v1044, %v1076
        %v1109 = vsub.f32 %v1045, %v1077
        %v1110 = vsub.f32 %v1046, %v1078
        %v1111 = vsub.f32 %v1047, %v1079
        %v1112 = vsub.f32 %v1048, %v1080
        %v1113 = vsub.f32 %v1049, %v1081
        %v1114 = vsub.f32 %v1050, %v1082
        %v1115 = vsub.f32 %v1051, %v1083
        %v1116 = vmax.f32 %v1084, 1e-12
        %v1117 = vmax.f32 %v1085, 1e-12
        %v1118 = vmax.f32 %v1086, 1e-12
        %v1119 = vmax.f32 %v1087, 1e-12
        %v1120 = vmax.f32 %v1088, 1e-12
        %v1121 = vmax.f32 %v1089, 1e-12
        %v1122 = vmax.f32 %v1090, 1e-12
        %v1123 = vmax.f32 %v1091, 1e-12
        %v1124 = vmax.f32 %v1092, 1e-12
        %v1125 = vmax.f32 %v1093, 1e-12
        %v1126 = vmax.f32 %v1094, 1e-12
        %v1127 = vmax.f32 %v1095, 1e-12
        %v1128 = vmax.f32 %v1096, 1e-12
        %v1129 = vmax.f32 %v1097, 1e-12
        %v1130 = vmax.f32 %v1098, 1e-12
        %v1131 = vmax.f32 %v1099, 1e-12
        %v1132 = vmax.f32 %v1100, 1e-12
        %v1133 = vmax.f32 %v1101, 1e-12
        %v1134 = vmax.f32 %v1102, 1e-12
        %v1135 = vmax.f32 %v1103, 1e-12
        %v1136 = vmax.f32 %v1104, 1e-12
        %v1137 = vmax.f32 %v1105, 1e-12
        %v1138 = vmax.f32 %v1106, 1e-12
        %v1139 = vmax.f32 %v1107, 1e-12
        %v1140 = vmax.f32 %v1108, 1e-12
        %v1141 = vmax.f32 %v1109, 1e-12
        %v1142 = vmax.f32 %v1110, 1e-12
        %v1143 = vmax.f32 %v1111, 1e-12
        %v1144 = vmax.f32 %v1112, 1e-12
        %v1145 = vmax.f32 %v1113, 1e-12
        %v1146 = vmax.f32 %v1114, 1e-12
        %v1147 = vmax.f32 %v1115, 1e-12
        %v1148 = vld [vmem:[%s709] sm:$0x3]
        %v1150 = vperm.slane %v1148, 0
        %v1151 = vperm.slane %v1148, 1
        %v1154 = vsub.f32 %v1116, %v1150
        %v1155 = vsub.f32 %v1117, %v1151
        %v1156 = vsub.f32 %v1118, %v1150
        %v1157 = vsub.f32 %v1119, %v1151
        %v1158 = vsub.f32 %v1120, %v1150
        %v1159 = vsub.f32 %v1121, %v1151
        %v1160 = vsub.f32 %v1122, %v1150
        %v1161 = vsub.f32 %v1123, %v1151
        %v1162 = vsub.f32 %v1124, %v1150
        %v1163 = vsub.f32 %v1125, %v1151
        %v1164 = vsub.f32 %v1126, %v1150
        %v1165 = vsub.f32 %v1127, %v1151
        %v1166 = vsub.f32 %v1128, %v1150
        %v1167 = vsub.f32 %v1129, %v1151
        %v1168 = vsub.f32 %v1130, %v1150
        %v1169 = vsub.f32 %v1131, %v1151
        %v1170 = vsub.f32 %v1132, %v1150
        %v1171 = vsub.f32 %v1133, %v1151
        %v1172 = vsub.f32 %v1134, %v1150
        %v1173 = vsub.f32 %v1135, %v1151
        %v1174 = vsub.f32 %v1136, %v1150
        %v1175 = vsub.f32 %v1137, %v1151
        %v1176 = vsub.f32 %v1138, %v1150
        %v1177 = vsub.f32 %v1139, %v1151
        %v1178 = vsub.f32 %v1140, %v1150
        %v1179 = vsub.f32 %v1141, %v1151
        %v1180 = vsub.f32 %v1142, %v1150
        %v1181 = vsub.f32 %v1143, %v1151
        %v1182 = vsub.f32 %v1144, %v1150
        %v1183 = vsub.f32 %v1145, %v1151
        %v1184 = vsub.f32 %v1146, %v1150
        %v1185 = vsub.f32 %v1147, %v1151
        %v1186 = vld [vmem:[%s714] sm:$0x3]
        %v1188 = vperm.slane %v1186, 0
        %v1189 = vperm.slane %v1186, 1
        %v1192 = vmul.f32 %v1154, %v1188
        %v1193 = vmul.f32 %v1155, %v1189
        %v1194 = vmul.f32 %v1156, %v1188
        %v1195 = vmul.f32 %v1157, %v1189
        %v1196 = vmul.f32 %v1158, %v1188
        %v1197 = vmul.f32 %v1159, %v1189
        %v1198 = vmul.f32 %v1160, %v1188
        %v1199 = vmul.f32 %v1161, %v1189
        %v1200 = vmul.f32 %v1162, %v1188
        %v1201 = vmul.f32 %v1163, %v1189
        %v1202 = vmul.f32 %v1164, %v1188
        %v1203 = vmul.f32 %v1165, %v1189
        %v1204 = vmul.f32 %v1166, %v1188
        %v1205 = vmul.f32 %v1167, %v1189
        %v1206 = vmul.f32 %v1168, %v1188
        %v1207 = vmul.f32 %v1169, %v1189
        %v1208 = vmul.f32 %v1170, %v1188
        %v1209 = vmul.f32 %v1171, %v1189
        %v1210 = vmul.f32 %v1172, %v1188
        %v1211 = vmul.f32 %v1173, %v1189
        %v1212 = vmul.f32 %v1174, %v1188
        %v1213 = vmul.f32 %v1175, %v1189
        %v1214 = vmul.f32 %v1176, %v1188
        %v1215 = vmul.f32 %v1177, %v1189
        %v1216 = vmul.f32 %v1178, %v1188
        %v1217 = vmul.f32 %v1179, %v1189
        %v1218 = vmul.f32 %v1180, %v1188
        %v1219 = vmul.f32 %v1181, %v1189
        %v1220 = vmul.f32 %v1182, %v1188
        %v1221 = vmul.f32 %v1183, %v1189
        %v1222 = vmul.f32 %v1184, %v1188
        %v1223 = vmul.f32 %v1185, %v1189
        %v1224 = vmax.f32 %v1192, 0.0
        %v1225 = vmax.f32 %v1193, 0.0
        %v1226 = vmax.f32 %v1194, 0.0
        %v1227 = vmax.f32 %v1195, 0.0
        %v1228 = vmax.f32 %v1196, 0.0
        %v1229 = vmax.f32 %v1197, 0.0
        %v1230 = vmax.f32 %v1198, 0.0
        %v1231 = vmax.f32 %v1199, 0.0
        %v1232 = vmax.f32 %v1200, 0.0
        %v1233 = vmax.f32 %v1201, 0.0
        %v1234 = vmax.f32 %v1202, 0.0
        %v1235 = vmax.f32 %v1203, 0.0
        %v1236 = vmax.f32 %v1204, 0.0
        %v1237 = vmax.f32 %v1205, 0.0
        %v1238 = vmax.f32 %v1206, 0.0
        %v1239 = vmax.f32 %v1207, 0.0
        %v1240 = vmax.f32 %v1208, 0.0
        %v1241 = vmax.f32 %v1209, 0.0
        %v1242 = vmax.f32 %v1210, 0.0
        %v1243 = vmax.f32 %v1211, 0.0
        %v1244 = vmax.f32 %v1212, 0.0
        %v1245 = vmax.f32 %v1213, 0.0
        %v1246 = vmax.f32 %v1214, 0.0
        %v1247 = vmax.f32 %v1215, 0.0
        %v1248 = vmax.f32 %v1216, 0.0
        %v1249 = vmax.f32 %v1217, 0.0
        %v1250 = vmax.f32 %v1218, 0.0
        %v1251 = vmax.f32 %v1219, 0.0
        %v1252 = vmax.f32 %v1220, 0.0
        %v1253 = vmax.f32 %v1221, 0.0
        %v1254 = vmax.f32 %v1222, 0.0
        %v1255 = vmax.f32 %v1223, 0.0
        %v1256 = vmul.f32 %v1224, 0.01
        %v1257 = vmul.f32 %v1225, 0.01
        %v1258 = vmul.f32 %v1226, 0.01
        %v1259 = vmul.f32 %v1227, 0.01
        %v1260 = vmul.f32 %v1228, 0.01
        %v1261 = vmul.f32 %v1229, 0.01
        %v1262 = vmul.f32 %v1230, 0.01
        %v1263 = vmul.f32 %v1231, 0.01
        %v1264 = vmul.f32 %v1232, 0.01
        %v1265 = vmul.f32 %v1233, 0.01
        %v1266 = vmul.f32 %v1234, 0.01
        %v1267 = vmul.f32 %v1235, 0.01
        %v1268 = vmul.f32 %v1236, 0.01
        %v1269 = vmul.f32 %v1237, 0.01
        %v1270 = vmul.f32 %v1238, 0.01
        %v1271 = vmul.f32 %v1239, 0.01
        %v1272 = vmul.f32 %v1240, 0.01
        %v1273 = vmul.f32 %v1241, 0.01
        %v1274 = vmul.f32 %v1242, 0.01
        %v1275 = vmul.f32 %v1243, 0.01
        %v1276 = vmul.f32 %v1244, 0.01
        %v1277 = vmul.f32 %v1245, 0.01
        %v1278 = vmul.f32 %v1246, 0.01
        %v1279 = vmul.f32 %v1247, 0.01
        %v1280 = vmul.f32 %v1248, 0.01
        %v1281 = vmul.f32 %v1249, 0.01
        %v1282 = vmul.f32 %v1250, 0.01
        %v1283 = vmul.f32 %v1251, 0.01
        %v1284 = vmul.f32 %v1252, 0.01
        %v1285 = vmul.f32 %v1253, 0.01
        %v1286 = vmul.f32 %v1254, 0.01
        %v1287 = vmul.f32 %v1255, 0.01
        %v1288 = vadd.f32 %v1256, 1.0
        %v1289 = vlog2.pop %v1288
        %v1290 = vmul.f32 %v1289, 0.6931472
        %v1291 = vmul.f32 -0.5, %v1256
        %v1292 = vadd.f32 %v1291, 1.0
        %v1293 = vmul.f32 %v1292, %v1256
        %v1294 = vand.u32 2147483647, %v1256
        %vm1295 = vcmp.lt.f32.partialorder %v1294, 0.0004427343
        %v1296 = vsel %vm1295, %v1293, %v1290
        %v1297 = vadd.f32 %v1257, 1.0
        %v1298 = vlog2.pop %v1297
        %v1299 = vmul.f32 %v1298, 0.6931472
        %v1300 = vmul.f32 -0.5, %v1257
        %v1301 = vadd.f32 %v1300, 1.0
        %v1302 = vmul.f32 %v1301, %v1257
        %v1303 = vand.u32 2147483647, %v1257
        %vm1304 = vcmp.lt.f32.partialorder %v1303, 0.0004427343
        %v1305 = vsel %vm1304, %v1302, %v1299
        %v1306 = vadd.f32 %v1258, 1.0
        %v1307 = vlog2.pop %v1306
        %v1308 = vmul.f32 %v1307, 0.6931472
        %v1309 = vmul.f32 -0.5, %v1258
        %v1310 = vadd.f32 %v1309, 1.0
        %v1311 = vmul.f32 %v1310, %v1258
        %v1312 = vand.u32 2147483647, %v1258
        %vm1313 = vcmp.lt.f32.partialorder %v1312, 0.0004427343
        %v1314 = vsel %vm1313, %v1311, %v1308
        %v1315 = vadd.f32 %v1259, 1.0
        %v1316 = vlog2.pop %v1315
        %v1317 = vmul.f32 %v1316, 0.6931472
        %v1318 = vmul.f32 -0.5, %v1259
        %v1319 = vadd.f32 %v1318, 1.0
        %v1320 = vmul.f32 %v1319, %v1259
        %v1321 = vand.u32 2147483647, %v1259
        %vm1322 = vcmp.lt.f32.partialorder %v1321, 0.0004427343
        %v1323 = vsel %vm1322, %v1320, %v1317
        %v1324 = vadd.f32 %v1260, 1.0
        %v1325 = vlog2.pop %v1324
        %v1326 = vmul.f32 %v1325, 0.6931472
        %v1327 = vmul.f32 -0.5, %v1260
        %v1328 = vadd.f32 %v1327, 1.0
        %v1329 = vmul.f32 %v1328, %v1260
        %v1330 = vand.u32 2147483647, %v1260
        %vm1331 = vcmp.lt.f32.partialorder %v1330, 0.0004427343
        %v1332 = vsel %vm1331, %v1329, %v1326
        %v1333 = vadd.f32 %v1261, 1.0
        %v1334 = vlog2.pop %v1333
        %v1335 = vmul.f32 %v1334, 0.6931472
        %v1336 = vmul.f32 -0.5, %v1261
        %v1337 = vadd.f32 %v1336, 1.0
        %v1338 = vmul.f32 %v1337, %v1261
        %v1339 = vand.u32 2147483647, %v1261
        %vm1340 = vcmp.lt.f32.partialorder %v1339, 0.0004427343
        %v1341 = vsel %vm1340, %v1338, %v1335
        %v1342 = vadd.f32 %v1262, 1.0
        %v1343 = vlog2.pop %v1342
        %v1344 = vmul.f32 %v1343, 0.6931472
        %v1345 = vmul.f32 -0.5, %v1262
        %v1346 = vadd.f32 %v1345, 1.0
        %v1347 = vmul.f32 %v1346, %v1262
        %v1348 = vand.u32 2147483647, %v1262
        %vm1349 = vcmp.lt.f32.partialorder %v1348, 0.0004427343
        %v1350 = vsel %vm1349, %v1347, %v1344
        %v1351 = vadd.f32 %v1263, 1.0
        %v1352 = vlog2.pop %v1351
        %v1353 = vmul.f32 %v1352, 0.6931472
        %v1354 = vmul.f32 -0.5, %v1263
        %v1355 = vadd.f32 %v1354, 1.0
        %v1356 = vmul.f32 %v1355, %v1263
        %v1357 = vand.u32 2147483647, %v1263
        %vm1358 = vcmp.lt.f32.partialorder %v1357, 0.0004427343
        %v1359 = vsel %vm1358, %v1356, %v1353
        %v1360 = vadd.f32 %v1264, 1.0
        %v1361 = vlog2.pop %v1360
        %v1362 = vmul.f32 %v1361, 0.6931472
        %v1363 = vmul.f32 -0.5, %v1264
        %v1364 = vadd.f32 %v1363, 1.0
        %v1365 = vmul.f32 %v1364, %v1264
        %v1366 = vand.u32 2147483647, %v1264
        %vm1367 = vcmp.lt.f32.partialorder %v1366, 0.0004427343
        %v1368 = vsel %vm1367, %v1365, %v1362
        %v1369 = vadd.f32 %v1265, 1.0
        %v1370 = vlog2.pop %v1369
        %v1371 = vmul.f32 %v1370, 0.6931472
        %v1372 = vmul.f32 -0.5, %v1265
        %v1373 = vadd.f32 %v1372, 1.0
        %v1374 = vmul.f32 %v1373, %v1265
        %v1375 = vand.u32 2147483647, %v1265
        %vm1376 = vcmp.lt.f32.partialorder %v1375, 0.0004427343
        %v1377 = vsel %vm1376, %v1374, %v1371
        %v1378 = vadd.f32 %v1266, 1.0
        %v1379 = vlog2.pop %v1378
        %v1380 = vmul.f32 %v1379, 0.6931472
        %v1381 = vmul.f32 -0.5, %v1266
        %v1382 = vadd.f32 %v1381, 1.0
        %v1383 = vmul.f32 %v1382, %v1266
        %v1384 = vand.u32 2147483647, %v1266
        %vm1385 = vcmp.lt.f32.partialorder %v1384, 0.0004427343
        %v1386 = vsel %vm1385, %v1383, %v1380
        %v1387 = vadd.f32 %v1267, 1.0
        %v1388 = vlog2.pop %v1387
        %v1389 = vmul.f32 %v1388, 0.6931472
        %v1390 = vmul.f32 -0.5, %v1267
        %v1391 = vadd.f32 %v1390, 1.0
        %v1392 = vmul.f32 %v1391, %v1267
        %v1393 = vand.u32 2147483647, %v1267
        %vm1394 = vcmp.lt.f32.partialorder %v1393, 0.0004427343
        %v1395 = vsel %vm1394, %v1392, %v1389
        %v1396 = vadd.f32 %v1268, 1.0
        %v1397 = vlog2.pop %v1396
        %v1398 = vmul.f32 %v1397, 0.6931472
        %v1399 = vmul.f32 -0.5, %v1268
        %v1400 = vadd.f32 %v1399, 1.0
        %v1401 = vmul.f32 %v1400, %v1268
        %v1402 = vand.u32 2147483647, %v1268
        %vm1403 = vcmp.lt.f32.partialorder %v1402, 0.0004427343
        %v1404 = vsel %vm1403, %v1401, %v1398
        %v1405 = vadd.f32 %v1269, 1.0
        %v1406 = vlog2.pop %v1405
        %v1407 = vmul.f32 %v1406, 0.6931472
        %v1408 = vmul.f32 -0.5, %v1269
        %v1409 = vadd.f32 %v1408, 1.0
        %v1410 = vmul.f32 %v1409, %v1269
        %v1411 = vand.u32 2147483647, %v1269
        %vm1412 = vcmp.lt.f32.partialorder %v1411, 0.0004427343
        %v1413 = vsel %vm1412, %v1410, %v1407
        %v1414 = vadd.f32 %v1270, 1.0
        %v1415 = vlog2.pop %v1414
        %v1416 = vmul.f32 %v1415, 0.6931472
        %v1417 = vmul.f32 -0.5, %v1270
        %v1418 = vadd.f32 %v1417, 1.0
        %v1419 = vmul.f32 %v1418, %v1270
        %v1420 = vand.u32 2147483647, %v1270
        %vm1421 = vcmp.lt.f32.partialorder %v1420, 0.0004427343
        %v1422 = vsel %vm1421, %v1419, %v1416
        %v1423 = vadd.f32 %v1271, 1.0
        %v1424 = vlog2.pop %v1423
        %v1425 = vmul.f32 %v1424, 0.6931472
        %v1426 = vmul.f32 -0.5, %v1271
        %v1427 = vadd.f32 %v1426, 1.0
        %v1428 = vmul.f32 %v1427, %v1271
        %v1429 = vand.u32 2147483647, %v1271
        %vm1430 = vcmp.lt.f32.partialorder %v1429, 0.0004427343
        %v1431 = vsel %vm1430, %v1428, %v1425
        %v1432 = vadd.f32 %v1272, 1.0
        %v1433 = vlog2.pop %v1432
        %v1434 = vmul.f32 %v1433, 0.6931472
        %v1435 = vmul.f32 -0.5, %v1272
        %v1436 = vadd.f32 %v1435, 1.0
        %v1437 = vmul.f32 %v1436, %v1272
        %v1438 = vand.u32 2147483647, %v1272
        %vm1439 = vcmp.lt.f32.partialorder %v1438, 0.0004427343
        %v1440 = vsel %vm1439, %v1437, %v1434
        %v1441 = vadd.f32 %v1273, 1.0
        %v1442 = vlog2.pop %v1441
        %v1443 = vmul.f32 %v1442, 0.6931472
        %v1444 = vmul.f32 -0.5, %v1273
        %v1445 = vadd.f32 %v1444, 1.0
        %v1446 = vmul.f32 %v1445, %v1273
        %v1447 = vand.u32 2147483647, %v1273
        %vm1448 = vcmp.lt.f32.partialorder %v1447, 0.0004427343
        %v1449 = vsel %vm1448, %v1446, %v1443
        %v1450 = vadd.f32 %v1274, 1.0
        %v1451 = vlog2.pop %v1450
        %v1452 = vmul.f32 %v1451, 0.6931472
        %v1453 = vmul.f32 -0.5, %v1274
        %v1454 = vadd.f32 %v1453, 1.0
        %v1455 = vmul.f32 %v1454, %v1274
        %v1456 = vand.u32 2147483647, %v1274
        %vm1457 = vcmp.lt.f32.partialorder %v1456, 0.0004427343
        %v1458 = vsel %vm1457, %v1455, %v1452
        %v1459 = vadd.f32 %v1275, 1.0
        %v1460 = vlog2.pop %v1459
        %v1461 = vmul.f32 %v1460, 0.6931472
        %v1462 = vmul.f32 -0.5, %v1275
        %v1463 = vadd.f32 %v1462, 1.0
        %v1464 = vmul.f32 %v1463, %v1275
        %v1465 = vand.u32 2147483647, %v1275
        %vm1466 = vcmp.lt.f32.partialorder %v1465, 0.0004427343
        %v1467 = vsel %vm1466, %v1464, %v1461
        %v1468 = vadd.f32 %v1276, 1.0
        %v1469 = vlog2.pop %v1468
        %v1470 = vmul.f32 %v1469, 0.6931472
        %v1471 = vmul.f32 -0.5, %v1276
        %v1472 = vadd.f32 %v1471, 1.0
        %v1473 = vmul.f32 %v1472, %v1276
        %v1474 = vand.u32 2147483647, %v1276
        %vm1475 = vcmp.lt.f32.partialorder %v1474, 0.0004427343
        %v1476 = vsel %vm1475, %v1473, %v1470
        %v1477 = vadd.f32 %v1277, 1.0
        %v1478 = vlog2.pop %v1477
        %v1479 = vmul.f32 %v1478, 0.6931472
        %v1480 = vmul.f32 -0.5, %v1277
        %v1481 = vadd.f32 %v1480, 1.0
        %v1482 = vmul.f32 %v1481, %v1277
        %v1483 = vand.u32 2147483647, %v1277
        %vm1484 = vcmp.lt.f32.partialorder %v1483, 0.0004427343
        %v1485 = vsel %vm1484, %v1482, %v1479
        %v1486 = vadd.f32 %v1278, 1.0
        %v1487 = vlog2.pop %v1486
        %v1488 = vmul.f32 %v1487, 0.6931472
        %v1489 = vmul.f32 -0.5, %v1278
        %v1490 = vadd.f32 %v1489, 1.0
        %v1491 = vmul.f32 %v1490, %v1278
        %v1492 = vand.u32 2147483647, %v1278
        %vm1493 = vcmp.lt.f32.partialorder %v1492, 0.0004427343
        %v1494 = vsel %vm1493, %v1491, %v1488
        %v1495 = vadd.f32 %v1279, 1.0
        %v1496 = vlog2.pop %v1495
        %v1497 = vmul.f32 %v1496, 0.6931472
        %v1498 = vmul.f32 -0.5, %v1279
        %v1499 = vadd.f32 %v1498, 1.0
        %v1500 = vmul.f32 %v1499, %v1279
        %v1501 = vand.u32 2147483647, %v1279
        %vm1502 = vcmp.lt.f32.partialorder %v1501, 0.0004427343
        %v1503 = vsel %vm1502, %v1500, %v1497
        %v1504 = vadd.f32 %v1280, 1.0
        %v1505 = vlog2.pop %v1504
        %v1506 = vmul.f32 %v1505, 0.6931472
        %v1507 = vmul.f32 -0.5, %v1280
        %v1508 = vadd.f32 %v1507, 1.0
        %v1509 = vmul.f32 %v1508, %v1280
        %v1510 = vand.u32 2147483647, %v1280
        %vm1511 = vcmp.lt.f32.partialorder %v1510, 0.0004427343
        %v1512 = vsel %vm1511, %v1509, %v1506
        %v1513 = vadd.f32 %v1281, 1.0
        %v1514 = vlog2.pop %v1513
        %v1515 = vmul.f32 %v1514, 0.6931472
        %v1516 = vmul.f32 -0.5, %v1281
        %v1517 = vadd.f32 %v1516, 1.0
        %v1518 = vmul.f32 %v1517, %v1281
        %v1519 = vand.u32 2147483647, %v1281
        %vm1520 = vcmp.lt.f32.partialorder %v1519, 0.0004427343
        %v1521 = vsel %vm1520, %v1518, %v1515
        %v1522 = vadd.f32 %v1282, 1.0
        %v1523 = vlog2.pop %v1522
        %v1524 = vmul.f32 %v1523, 0.6931472
        %v1525 = vmul.f32 -0.5, %v1282
        %v1526 = vadd.f32 %v1525, 1.0
        %v1527 = vmul.f32 %v1526, %v1282
        %v1528 = vand.u32 2147483647, %v1282
        %vm1529 = vcmp.lt.f32.partialorder %v1528, 0.0004427343
        %v1530 = vsel %vm1529, %v1527, %v1524
        %v1531 = vadd.f32 %v1283, 1.0
        %v1532 = vlog2.pop %v1531
        %v1533 = vmul.f32 %v1532, 0.6931472
        %v1534 = vmul.f32 -0.5, %v1283
        %v1535 = vadd.f32 %v1534, 1.0
        %v1536 = vmul.f32 %v1535, %v1283
        %v1537 = vand.u32 2147483647, %v1283
        %vm1538 = vcmp.lt.f32.partialorder %v1537, 0.0004427343
        %v1539 = vsel %vm1538, %v1536, %v1533
        %v1540 = vadd.f32 %v1284, 1.0
        %v1541 = vlog2.pop %v1540
        %v1542 = vmul.f32 %v1541, 0.6931472
        %v1543 = vmul.f32 -0.5, %v1284
        %v1544 = vadd.f32 %v1543, 1.0
        %v1545 = vmul.f32 %v1544, %v1284
        %v1546 = vand.u32 2147483647, %v1284
        %vm1547 = vcmp.lt.f32.partialorder %v1546, 0.0004427343
        %v1548 = vsel %vm1547, %v1545, %v1542
        %v1549 = vadd.f32 %v1285, 1.0
        %v1550 = vlog2.pop %v1549
        %v1551 = vmul.f32 %v1550, 0.6931472
        %v1552 = vmul.f32 -0.5, %v1285
        %v1553 = vadd.f32 %v1552, 1.0
        %v1554 = vmul.f32 %v1553, %v1285
        %v1555 = vand.u32 2147483647, %v1285
        %vm1556 = vcmp.lt.f32.partialorder %v1555, 0.0004427343
        %v1557 = vsel %vm1556, %v1554, %v1551
        %v1558 = vadd.f32 %v1286, 1.0
        %v1559 = vlog2.pop %v1558
        %v1560 = vmul.f32 %v1559, 0.6931472
        %v1561 = vmul.f32 -0.5, %v1286
        %v1562 = vadd.f32 %v1561, 1.0
        %v1563 = vmul.f32 %v1562, %v1286
        %v1564 = vand.u32 2147483647, %v1286
        %vm1565 = vcmp.lt.f32.partialorder %v1564, 0.0004427343
        %v1566 = vsel %vm1565, %v1563, %v1560
        %v1567 = vadd.f32 %v1287, 1.0
        %v1568 = vlog2.pop %v1567
        %v1569 = vmul.f32 %v1568, 0.6931472
        %v1570 = vmul.f32 -0.5, %v1287
        %v1571 = vadd.f32 %v1570, 1.0
        %v1572 = vmul.f32 %v1571, %v1287
        %v1573 = vand.u32 2147483647, %v1287
        %vm1574 = vcmp.lt.f32.partialorder %v1573, 0.0004427343
        %v1575 = vsel %vm1574, %v1572, %v1569
        %v1576 = vmul.f32 %v1296, -50.5
        %v1577 = vmul.f32 %v1305, -50.5
        %v1578 = vmul.f32 %v1314, -50.5
        %v1579 = vmul.f32 %v1323, -50.5
        %v1580 = vmul.f32 %v1332, -50.5
        %v1581 = vmul.f32 %v1341, -50.5
        %v1582 = vmul.f32 %v1350, -50.5
        %v1583 = vmul.f32 %v1359, -50.5
        %v1584 = vmul.f32 %v1368, -50.5
        %v1585 = vmul.f32 %v1377, -50.5
        %v1586 = vmul.f32 %v1386, -50.5
        %v1587 = vmul.f32 %v1395, -50.5
        %v1588 = vmul.f32 %v1404, -50.5
        %v1589 = vmul.f32 %v1413, -50.5
        %v1590 = vmul.f32 %v1422, -50.5
        %v1591 = vmul.f32 %v1431, -50.5
        %v1592 = vmul.f32 %v1440, -50.5
        %v1593 = vmul.f32 %v1449, -50.5
        %v1594 = vmul.f32 %v1458, -50.5
        %v1595 = vmul.f32 %v1467, -50.5
        %v1596 = vmul.f32 %v1476, -50.5
        %v1597 = vmul.f32 %v1485, -50.5
        %v1598 = vmul.f32 %v1494, -50.5
        %v1599 = vmul.f32 %v1503, -50.5
        %v1600 = vmul.f32 %v1512, -50.5
        %v1601 = vmul.f32 %v1521, -50.5
        %v1602 = vmul.f32 %v1530, -50.5
        %v1603 = vmul.f32 %v1539, -50.5
        %v1604 = vmul.f32 %v1548, -50.5
        %v1605 = vmul.f32 %v1557, -50.5
        %v1606 = vmul.f32 %v1566, -50.5
        %v1607 = vmul.f32 %v1575, -50.5
        %v1608 = vadd.f32 %v1576, 0.91593146
        %v1609 = vadd.f32 %v1577, 0.91593146
        %v1610 = vadd.f32 %v1578, 0.91593146
        %v1611 = vadd.f32 %v1579, 0.91593146
        %v1612 = vadd.f32 %v1580, 0.91593146
        %v1613 = vadd.f32 %v1581, 0.91593146
        %v1614 = vadd.f32 %v1582, 0.91593146
        %v1615 = vadd.f32 %v1583, 0.91593146
        %v1616 = vadd.f32 %v1584, 0.91593146
        %v1617 = vadd.f32 %v1585, 0.91593146
        %v1618 = vadd.f32 %v1586, 0.91593146
        %v1619 = vadd.f32 %v1587, 0.91593146
        %v1620 = vadd.f32 %v1588, 0.91593146
        %v1621 = vadd.f32 %v1589, 0.91593146
        %v1622 = vadd.f32 %v1590, 0.91593146
        %v1623 = vadd.f32 %v1591, 0.91593146
        %v1624 = vadd.f32 %v1592, 0.91593146
        %v1625 = vadd.f32 %v1593, 0.91593146
        %v1626 = vadd.f32 %v1594, 0.91593146
        %v1627 = vadd.f32 %v1595, 0.91593146
        %v1628 = vadd.f32 %v1596, 0.91593146
        %v1629 = vadd.f32 %v1597, 0.91593146
        %v1630 = vadd.f32 %v1598, 0.91593146
        %v1631 = vadd.f32 %v1599, 0.91593146
        %v1632 = vadd.f32 %v1600, 0.91593146
        %v1633 = vadd.f32 %v1601, 0.91593146
        %v1634 = vadd.f32 %v1602, 0.91593146
        %v1635 = vadd.f32 %v1603, 0.91593146
        %v1636 = vadd.f32 %v1604, 0.91593146
        %v1637 = vadd.f32 %v1605, 0.91593146
        %v1638 = vadd.f32 %v1606, 0.91593146
        %v1639 = vadd.f32 %v1607, 0.91593146
        %v1640 = vmul.f32 %v1608, 1.442695
        %v1641 = vpow.pop %v1640
        %v1642 = vmul.f32 %v1609, 1.442695
        %v1643 = vpow.pop %v1642
        %v1644 = vmul.f32 %v1610, 1.442695
        %v1645 = vpow.pop %v1644
        %v1646 = vmul.f32 %v1611, 1.442695
        %v1647 = vpow.pop %v1646
        %v1648 = vmul.f32 %v1612, 1.442695
        %v1649 = vpow.pop %v1648
        %v1650 = vmul.f32 %v1613, 1.442695
        %v1651 = vpow.pop %v1650
        %v1652 = vmul.f32 %v1614, 1.442695
        %v1653 = vpow.pop %v1652
        %v1654 = vmul.f32 %v1615, 1.442695
        %v1655 = vpow.pop %v1654
        %v1656 = vmul.f32 %v1616, 1.442695
        %v1657 = vpow.pop %v1656
        %v1658 = vmul.f32 %v1617, 1.442695
        %v1659 = vpow.pop %v1658
        %v1660 = vmul.f32 %v1618, 1.442695
        %v1661 = vpow.pop %v1660
        %v1662 = vmul.f32 %v1619, 1.442695
        %v1663 = vpow.pop %v1662
        %v1664 = vmul.f32 %v1620, 1.442695
        %v1665 = vpow.pop %v1664
        %v1666 = vmul.f32 %v1621, 1.442695
        %v1667 = vpow.pop %v1666
        %v1668 = vmul.f32 %v1622, 1.442695
        %v1669 = vpow.pop %v1668
        %v1670 = vmul.f32 %v1623, 1.442695
        %v1671 = vpow.pop %v1670
        %v1672 = vmul.f32 %v1624, 1.442695
        %v1673 = vpow.pop %v1672
        %v1674 = vmul.f32 %v1625, 1.442695
        %v1675 = vpow.pop %v1674
        %v1676 = vmul.f32 %v1626, 1.442695
        %v1677 = vpow.pop %v1676
        %v1678 = vmul.f32 %v1627, 1.442695
        %v1679 = vpow.pop %v1678
        %v1680 = vmul.f32 %v1628, 1.442695
        %v1681 = vpow.pop %v1680
        %v1682 = vmul.f32 %v1629, 1.442695
        %v1683 = vpow.pop %v1682
        %v1684 = vmul.f32 %v1630, 1.442695
        %v1685 = vpow.pop %v1684
        %v1686 = vmul.f32 %v1631, 1.442695
        %v1687 = vpow.pop %v1686
        %v1688 = vmul.f32 %v1632, 1.442695
        %v1689 = vpow.pop %v1688
        %v1690 = vmul.f32 %v1633, 1.442695
        %v1691 = vpow.pop %v1690
        %v1692 = vmul.f32 %v1634, 1.442695
        %v1693 = vpow.pop %v1692
        %v1694 = vmul.f32 %v1635, 1.442695
        %v1695 = vpow.pop %v1694
        %v1696 = vmul.f32 %v1636, 1.442695
        %v1697 = vpow.pop %v1696
        %v1698 = vmul.f32 %v1637, 1.442695
        %v1699 = vpow.pop %v1698
        %v1700 = vmul.f32 %v1638, 1.442695
        %v1701 = vpow.pop %v1700
        %v1702 = vmul.f32 %v1639, 1.442695
        %v1703 = vpow.pop %v1702
        %v1704 = vld [vmem:[%s591] sm:$0xff]
        %v1705 = vld [vmem:[%s591 + $0x8] sm:$0xff]
        %v1706 = vld [vmem:[%s591 + $0x10] sm:$0xff]
        %v1707 = vld [vmem:[%s591 + $0x18] sm:$0xff]
        %v1708 = vld [vmem:[%s591 + $0x20] sm:$0xff]
        %v1709 = vld [vmem:[%s591 + $0x28] sm:$0xff]
        %v1710 = vld [vmem:[%s591 + $0x30] sm:$0xff]
        %v1711 = vld [vmem:[%s591 + $0x38] sm:$0xff]
        %v1712 = vld [vmem:[%s591 + $0x40] sm:$0xff]
        %v1713 = vld [vmem:[%s591 + $0x48] sm:$0xff]
        %v1714 = vld [vmem:[%s591 + $0x50] sm:$0xff]
        %v1715 = vld [vmem:[%s591 + $0x58] sm:$0xff]
        %v1716 = vld [vmem:[%s591 + $0x60] sm:$0xff]
        %v1717 = vld [vmem:[%s591 + $0x68] sm:$0xff]
        %v1718 = vld [vmem:[%s591 + $0x70] sm:$0xff]
        %v1719 = vld [vmem:[%s591 + $0x78] sm:$0xff]
        %v1720 = vld [vmem:[%s682] sm:$0x3]
        %1722 = vset.pattern.permute.xlu0 0
        %1723 = vperm.xlu0 %1722, %v1704
        %v1724 = vpop.permute.xlu0 %1723
        %1727 = vset.pattern.permute.xlu0 0
        %1728 = vperm.xlu0 %1727, %v1705
        %v1729 = vpop.permute.xlu0 %1728
        %1732 = vset.pattern.permute.xlu0 0
        %1733 = vperm.xlu0 %1732, %v1706
        %v1734 = vpop.permute.xlu0 %1733
        %1737 = vset.pattern.permute.xlu0 0
        %1738 = vperm.xlu0 %1737, %v1707
        %v1739 = vpop.permute.xlu0 %1738
        %1742 = vset.pattern.permute.xlu0 0
        %1743 = vperm.xlu0 %1742, %v1708
        %v1744 = vpop.permute.xlu0 %1743
        %1747 = vset.pattern.permute.xlu0 0
        %1748 = vperm.xlu0 %1747, %v1709
        %v1749 = vpop.permute.xlu0 %1748
        %1752 = vset.pattern.permute.xlu0 0
        %1753 = vperm.xlu0 %1752, %v1710
        %v1754 = vpop.permute.xlu0 %1753
        %1757 = vset.pattern.permute.xlu0 0
        %1758 = vperm.xlu0 %1757, %v1711
        %v1759 = vpop.permute.xlu0 %1758
        %1762 = vset.pattern.permute.xlu0 0
        %1763 = vperm.xlu0 %1762, %v1712
        %v1764 = vpop.permute.xlu0 %1763
        %1767 = vset.pattern.permute.xlu0 0
        %1768 = vperm.xlu0 %1767, %v1713
        %v1769 = vpop.permute.xlu0 %1768
        %1772 = vset.pattern.permute.xlu0 0
        %1773 = vperm.xlu0 %1772, %v1714
        %v1774 = vpop.permute.xlu0 %1773
        %1777 = vset.pattern.permute.xlu0 0
        %1778 = vperm.xlu0 %1777, %v1715
        %v1779 = vpop.permute.xlu0 %1778
        %1782 = vset.pattern.permute.xlu0 0
        %1783 = vperm.xlu0 %1782, %v1716
        %v1784 = vpop.permute.xlu0 %1783
        %1787 = vset.pattern.permute.xlu0 0
        %1788 = vperm.xlu0 %1787, %v1717
        %v1789 = vpop.permute.xlu0 %1788
        %1792 = vset.pattern.permute.xlu0 0
        %1793 = vperm.xlu0 %1792, %v1718
        %v1794 = vpop.permute.xlu0 %1793
        %1797 = vset.pattern.permute.xlu0 0
        %1798 = vperm.xlu0 %1797, %v1719
        %v1799 = vpop.permute.xlu0 %1798
        %v1802 = vperm.slane %v1720, 0
        %v1803 = vperm.slane %v1720, 1
        %v1806 = vmul.f32 %v1724, %v1802
        %v1807 = vmul.f32 %v1724, %v1803
        %v1808 = vmul.f32 %v1729, %v1802
        %v1809 = vmul.f32 %v1729, %v1803
        %v1810 = vmul.f32 %v1734, %v1802
        %v1811 = vmul.f32 %v1734, %v1803
        %v1812 = vmul.f32 %v1739, %v1802
        %v1813 = vmul.f32 %v1739, %v1803
        %v1814 = vmul.f32 %v1744, %v1802
        %v1815 = vmul.f32 %v1744, %v1803
        %v1816 = vmul.f32 %v1749, %v1802
        %v1817 = vmul.f32 %v1749, %v1803
        %v1818 = vmul.f32 %v1754, %v1802
        %v1819 = vmul.f32 %v1754, %v1803
        %v1820 = vmul.f32 %v1759, %v1802
        %v1821 = vmul.f32 %v1759, %v1803
        %v1822 = vmul.f32 %v1764, %v1802
        %v1823 = vmul.f32 %v1764, %v1803
        %v1824 = vmul.f32 %v1769, %v1802
        %v1825 = vmul.f32 %v1769, %v1803
        %v1826 = vmul.f32 %v1774, %v1802
        %v1827 = vmul.f32 %v1774, %v1803
        %v1828 = vmul.f32 %v1779, %v1802
        %v1829 = vmul.f32 %v1779, %v1803
        %v1830 = vmul.f32 %v1784, %v1802
        %v1831 = vmul.f32 %v1784, %v1803
        %v1832 = vmul.f32 %v1789, %v1802
        %v1833 = vmul.f32 %v1789, %v1803
        %v1834 = vmul.f32 %v1794, %v1802
        %v1835 = vmul.f32 %v1794, %v1803
        %v1836 = vmul.f32 %v1799, %v1802
        %v1837 = vmul.f32 %v1799, %v1803
        %s1838 = scalar_lea.vmem %s591, 128 [#allocation2]
        %v1839 = vld [vmem:[%s1838] sm:$0xff]
        %v1840 = vld [vmem:[%s1838 + $0x8] sm:$0xff]
        %v1841 = vld [vmem:[%s1838 + $0x10] sm:$0xff]
        %v1842 = vld [vmem:[%s1838 + $0x18] sm:$0xff]
        %v1843 = vld [vmem:[%s1838 + $0x20] sm:$0xff]
        %v1844 = vld [vmem:[%s1838 + $0x28] sm:$0xff]
        %v1845 = vld [vmem:[%s1838 + $0x30] sm:$0xff]
        %v1846 = vld [vmem:[%s1838 + $0x38] sm:$0xff]
        %v1847 = vld [vmem:[%s1838 + $0x40] sm:$0xff]
        %v1848 = vld [vmem:[%s1838 + $0x48] sm:$0xff]
        %v1849 = vld [vmem:[%s1838 + $0x50] sm:$0xff]
        %v1850 = vld [vmem:[%s1838 + $0x58] sm:$0xff]
        %v1851 = vld [vmem:[%s1838 + $0x60] sm:$0xff]
        %v1852 = vld [vmem:[%s1838 + $0x68] sm:$0xff]
        %v1853 = vld [vmem:[%s1838 + $0x70] sm:$0xff]
        %v1854 = vld [vmem:[%s1838 + $0x78] sm:$0xff]
        %s1855 = scalar_lea.vmem %s682, 2
        %v1856 = vld [vmem:[%s1855] sm:$0x3]
        %1858 = vset.pattern.permute.xlu0 0
        %1859 = vperm.xlu0 %1858, %v1839
        %v1860 = vpop.permute.xlu0 %1859
        %1863 = vset.pattern.permute.xlu0 0
        %1864 = vperm.xlu0 %1863, %v1840
        %v1865 = vpop.permute.xlu0 %1864
        %1868 = vset.pattern.permute.xlu0 0
        %1869 = vperm.xlu0 %1868, %v1841
        %v1870 = vpop.permute.xlu0 %1869
        %1873 = vset.pattern.permute.xlu0 0
        %1874 = vperm.xlu0 %1873, %v1842
        %v1875 = vpop.permute.xlu0 %1874
        %1878 = vset.pattern.permute.xlu0 0
        %1879 = vperm.xlu0 %1878, %v1843
        %v1880 = vpop.permute.xlu0 %1879
        %1883 = vset.pattern.permute.xlu0 0
        %1884 = vperm.xlu0 %1883, %v1844
        %v1885 = vpop.permute.xlu0 %1884
        %1888 = vset.pattern.permute.xlu0 0
        %1889 = vperm.xlu0 %1888, %v1845
        %v1890 = vpop.permute.xlu0 %1889
        %1893 = vset.pattern.permute.xlu0 0
        %1894 = vperm.xlu0 %1893, %v1846
        %v1895 = vpop.permute.xlu0 %1894
        %1898 = vset.pattern.permute.xlu0 0
        %1899 = vperm.xlu0 %1898, %v1847
        %v1900 = vpop.permute.xlu0 %1899
        %1903 = vset.pattern.permute.xlu0 0
        %1904 = vperm.xlu0 %1903, %v1848
        %v1905 = vpop.permute.xlu0 %1904
        %1908 = vset.pattern.permute.xlu0 0
        %1909 = vperm.xlu0 %1908, %v1849
        %v1910 = vpop.permute.xlu0 %1909
        %1913 = vset.pattern.permute.xlu0 0
        %1914 = vperm.xlu0 %1913, %v1850
        %v1915 = vpop.permute.xlu0 %1914
        %1918 = vset.pattern.permute.xlu0 0
        %1919 = vperm.xlu0 %1918, %v1851
        %v1920 = vpop.permute.xlu0 %1919
        %1923 = vset.pattern.permute.xlu0 0
        %1924 = vperm.xlu0 %1923, %v1852
        %v1925 = vpop.permute.xlu0 %1924
        %1928 = vset.pattern.permute.xlu0 0
        %1929 = vperm.xlu0 %1928, %v1853
        %v1930 = vpop.permute.xlu0 %1929
        %1933 = vset.pattern.permute.xlu0 0
        %1934 = vperm.xlu0 %1933, %v1854
        %v1935 = vpop.permute.xlu0 %1934
        %v1938 = vperm.slane %v1856, 0
        %v1939 = vperm.slane %v1856, 1
        %v1942 = vmul.f32 %v1860, %v1938
        %v1943 = vmul.f32 %v1860, %v1939
        %v1944 = vmul.f32 %v1865, %v1938
        %v1945 = vmul.f32 %v1865, %v1939
        %v1946 = vmul.f32 %v1870, %v1938
        %v1947 = vmul.f32 %v1870, %v1939
        %v1948 = vmul.f32 %v1875, %v1938
        %v1949 = vmul.f32 %v1875, %v1939
        %v1950 = vmul.f32 %v1880, %v1938
        %v1951 = vmul.f32 %v1880, %v1939
        %v1952 = vmul.f32 %v1885, %v1938
        %v1953 = vmul.f32 %v1885, %v1939
        %v1954 = vmul.f32 %v1890, %v1938
        %v1955 = vmul.f32 %v1890, %v1939
        %v1956 = vmul.f32 %v1895, %v1938
        %v1957 = vmul.f32 %v1895, %v1939
        %v1958 = vmul.f32 %v1900, %v1938
        %v1959 = vmul.f32 %v1900, %v1939
        %v1960 = vmul.f32 %v1905, %v1938
        %v1961 = vmul.f32 %v1905, %v1939
        %v1962 = vmul.f32 %v1910, %v1938
        %v1963 = vmul.f32 %v1910, %v1939
        %v1964 = vmul.f32 %v1915, %v1938
        %v1965 = vmul.f32 %v1915, %v1939
        %v1966 = vmul.f32 %v1920, %v1938
        %v1967 = vmul.f32 %v1920, %v1939
        %v1968 = vmul.f32 %v1925, %v1938
        %v1969 = vmul.f32 %v1925, %v1939
        %v1970 = vmul.f32 %v1930, %v1938
        %v1971 = vmul.f32 %v1930, %v1939
        %v1972 = vmul.f32 %v1935, %v1938
        %v1973 = vmul.f32 %v1935, %v1939
        %v1974 = vadd.f32 %v1806, %v1942
        %v1975 = vadd.f32 %v1807, %v1943
        %v1976 = vadd.f32 %v1808, %v1944
        %v1977 = vadd.f32 %v1809, %v1945
        %v1978 = vadd.f32 %v1810, %v1946
        %v1979 = vadd.f32 %v1811, %v1947
        %v1980 = vadd.f32 %v1812, %v1948
        %v1981 = vadd.f32 %v1813, %v1949
        %v1982 = vadd.f32 %v1814, %v1950
        %v1983 = vadd.f32 %v1815, %v1951
        %v1984 = vadd.f32 %v1816, %v1952
        %v1985 = vadd.f32 %v1817, %v1953
        %v1986 = vadd.f32 %v1818, %v1954
        %v1987 = vadd.f32 %v1819, %v1955
        %v1988 = vadd.f32 %v1820, %v1956
        %v1989 = vadd.f32 %v1821, %v1957
        %v1990 = vadd.f32 %v1822, %v1958
        %v1991 = vadd.f32 %v1823, %v1959
        %v1992 = vadd.f32 %v1824, %v1960
        %v1993 = vadd.f32 %v1825, %v1961
        %v1994 = vadd.f32 %v1826, %v1962
        %v1995 = vadd.f32 %v1827, %v1963
        %v1996 = vadd.f32 %v1828, %v1964
        %v1997 = vadd.f32 %v1829, %v1965
        %v1998 = vadd.f32 %v1830, %v1966
        %v1999 = vadd.f32 %v1831, %v1967
        %v2000 = vadd.f32 %v1832, %v1968
        %v2001 = vadd.f32 %v1833, %v1969
        %v2002 = vadd.f32 %v1834, %v1970
        %v2003 = vadd.f32 %v1835, %v1971
        %v2004 = vadd.f32 %v1836, %v1972
        %v2005 = vadd.f32 %v1837, %v1973
        %v2006 = vld [vmem:[%s699] sm:$0xff]
        %v2007 = vld [vmem:[%s699 + $0x8] sm:$0xff]
        %v2008 = vld [vmem:[%s699 + $0x10] sm:$0xff]
        %v2009 = vld [vmem:[%s699 + $0x18] sm:$0xff]
        %v2010 = vld [vmem:[%s699 + $0x20] sm:$0xff]
        %v2011 = vld [vmem:[%s699 + $0x28] sm:$0xff]
        %v2012 = vld [vmem:[%s699 + $0x30] sm:$0xff]
        %v2013 = vld [vmem:[%s699 + $0x38] sm:$0xff]
        %v2014 = vld [vmem:[%s699 + $0x40] sm:$0xff]
        %v2015 = vld [vmem:[%s699 + $0x48] sm:$0xff]
        %v2016 = vld [vmem:[%s699 + $0x50] sm:$0xff]
        %v2017 = vld [vmem:[%s699 + $0x58] sm:$0xff]
        %v2018 = vld [vmem:[%s699 + $0x60] sm:$0xff]
        %v2019 = vld [vmem:[%s699 + $0x68] sm:$0xff]
        %v2020 = vld [vmem:[%s699 + $0x70] sm:$0xff]
        %v2021 = vld [vmem:[%s699 + $0x78] sm:$0xff]
        %v2022 = vld [vmem:[%s704] sm:$0x3]
        %2024 = vset.pattern.permute.xlu0 0
        %2025 = vperm.xlu0 %2024, %v2006
        %v2026 = vpop.permute.xlu0 %2025
        %2029 = vset.pattern.permute.xlu0 0
        %2030 = vperm.xlu0 %2029, %v2007
        %v2031 = vpop.permute.xlu0 %2030
        %2034 = vset.pattern.permute.xlu0 0
        %2035 = vperm.xlu0 %2034, %v2008
        %v2036 = vpop.permute.xlu0 %2035
        %2039 = vset.pattern.permute.xlu0 0
        %2040 = vperm.xlu0 %2039, %v2009
        %v2041 = vpop.permute.xlu0 %2040
        %2044 = vset.pattern.permute.xlu0 0
        %2045 = vperm.xlu0 %2044, %v2010
        %v2046 = vpop.permute.xlu0 %2045
        %2049 = vset.pattern.permute.xlu0 0
        %2050 = vperm.xlu0 %2049, %v2011
        %v2051 = vpop.permute.xlu0 %2050
        %2054 = vset.pattern.permute.xlu0 0
        %2055 = vperm.xlu0 %2054, %v2012
        %v2056 = vpop.permute.xlu0 %2055
        %2059 = vset.pattern.permute.xlu0 0
        %2060 = vperm.xlu0 %2059, %v2013
        %v2061 = vpop.permute.xlu0 %2060
        %2064 = vset.pattern.permute.xlu0 0
        %2065 = vperm.xlu0 %2064, %v2014
        %v2066 = vpop.permute.xlu0 %2065
        %2069 = vset.pattern.permute.xlu0 0
        %2070 = vperm.xlu0 %2069, %v2015
        %v2071 = vpop.permute.xlu0 %2070
        %2074 = vset.pattern.permute.xlu0 0
        %2075 = vperm.xlu0 %2074, %v2016
        %v2076 = vpop.permute.xlu0 %2075
        %2079 = vset.pattern.permute.xlu0 0
        %2080 = vperm.xlu0 %2079, %v2017
        %v2081 = vpop.permute.xlu0 %2080
        %2084 = vset.pattern.permute.xlu0 0
        %2085 = vperm.xlu0 %2084, %v2018
        %v2086 = vpop.permute.xlu0 %2085
        %2089 = vset.pattern.permute.xlu0 0
        %2090 = vperm.xlu0 %2089, %v2019
        %v2091 = vpop.permute.xlu0 %2090
        %2094 = vset.pattern.permute.xlu0 0
        %2095 = vperm.xlu0 %2094, %v2020
        %v2096 = vpop.permute.xlu0 %2095
        %2099 = vset.pattern.permute.xlu0 0
        %2100 = vperm.xlu0 %2099, %v2021
        %v2101 = vpop.permute.xlu0 %2100
        %v2104 = vperm.slane %v2022, 0
        %v2105 = vperm.slane %v2022, 1
        %v2108 = vadd.f32 %v2026, %v2104
        %v2109 = vadd.f32 %v2026, %v2105
        %v2110 = vadd.f32 %v2031, %v2104
        %v2111 = vadd.f32 %v2031, %v2105
        %v2112 = vadd.f32 %v2036, %v2104
        %v2113 = vadd.f32 %v2036, %v2105
        %v2114 = vadd.f32 %v2041, %v2104
        %v2115 = vadd.f32 %v2041, %v2105
        %v2116 = vadd.f32 %v2046, %v2104
        %v2117 = vadd.f32 %v2046, %v2105
        %v2118 = vadd.f32 %v2051, %v2104
        %v2119 = vadd.f32 %v2051, %v2105
        %v2120 = vadd.f32 %v2056, %v2104
        %v2121 = vadd.f32 %v2056, %v2105
        %v2122 = vadd.f32 %v2061, %v2104
        %v2123 = vadd.f32 %v2061, %v2105
        %v2124 = vadd.f32 %v2066, %v2104
        %v2125 = vadd.f32 %v2066, %v2105
        %v2126 = vadd.f32 %v2071, %v2104
        %v2127 = vadd.f32 %v2071, %v2105
        %v2128 = vadd.f32 %v2076, %v2104
        %v2129 = vadd.f32 %v2076, %v2105
        %v2130 = vadd.f32 %v2081, %v2104
        %v2131 = vadd.f32 %v2081, %v2105
        %v2132 = vadd.f32 %v2086, %v2104
        %v2133 = vadd.f32 %v2086, %v2105
        %v2134 = vadd.f32 %v2091, %v2104
        %v2135 = vadd.f32 %v2091, %v2105
        %v2136 = vadd.f32 %v2096, %v2104
        %v2137 = vadd.f32 %v2096, %v2105
        %v2138 = vadd.f32 %v2101, %v2104
        %v2139 = vadd.f32 %v2101, %v2105
        %v2140 = vmul.f32 %v1974, 2.0
        %v2141 = vmul.f32 %v1975, 2.0
        %v2142 = vmul.f32 %v1976, 2.0
        %v2143 = vmul.f32 %v1977, 2.0
        %v2144 = vmul.f32 %v1978, 2.0
        %v2145 = vmul.f32 %v1979, 2.0
        %v2146 = vmul.f32 %v1980, 2.0
        %v2147 = vmul.f32 %v1981, 2.0
        %v2148 = vmul.f32 %v1982, 2.0
        %v2149 = vmul.f32 %v1983, 2.0
        %v2150 = vmul.f32 %v1984, 2.0
        %v2151 = vmul.f32 %v1985, 2.0
        %v2152 = vmul.f32 %v1986, 2.0
        %v2153 = vmul.f32 %v1987, 2.0
        %v2154 = vmul.f32 %v1988, 2.0
        %v2155 = vmul.f32 %v1989, 2.0
        %v2156 = vmul.f32 %v1990, 2.0
        %v2157 = vmul.f32 %v1991, 2.0
        %v2158 = vmul.f32 %v1992, 2.0
        %v2159 = vmul.f32 %v1993, 2.0
        %v2160 = vmul.f32 %v1994, 2.0
        %v2161 = vmul.f32 %v1995, 2.0
        %v2162 = vmul.f32 %v1996, 2.0
        %v2163 = vmul.f32 %v1997, 2.0
        %v2164 = vmul.f32 %v1998, 2.0
        %v2165 = vmul.f32 %v1999, 2.0
        %v2166 = vmul.f32 %v2000, 2.0
        %v2167 = vmul.f32 %v2001, 2.0
        %v2168 = vmul.f32 %v2002, 2.0
        %v2169 = vmul.f32 %v2003, 2.0
        %v2170 = vmul.f32 %v2004, 2.0
        %v2171 = vmul.f32 %v2005, 2.0
        %v2172 = vsub.f32 %v2108, %v2140
        %v2173 = vsub.f32 %v2109, %v2141
        %v2174 = vsub.f32 %v2110, %v2142
        %v2175 = vsub.f32 %v2111, %v2143
        %v2176 = vsub.f32 %v2112, %v2144
        %v2177 = vsub.f32 %v2113, %v2145
        %v2178 = vsub.f32 %v2114, %v2146
        %v2179 = vsub.f32 %v2115, %v2147
        %v2180 = vsub.f32 %v2116, %v2148
        %v2181 = vsub.f32 %v2117, %v2149
        %v2182 = vsub.f32 %v2118, %v2150
        %v2183 = vsub.f32 %v2119, %v2151
        %v2184 = vsub.f32 %v2120, %v2152
        %v2185 = vsub.f32 %v2121, %v2153
        %v2186 = vsub.f32 %v2122, %v2154
        %v2187 = vsub.f32 %v2123, %v2155
        %v2188 = vsub.f32 %v2124, %v2156
        %v2189 = vsub.f32 %v2125, %v2157
        %v2190 = vsub.f32 %v2126, %v2158
        %v2191 = vsub.f32 %v2127, %v2159
        %v2192 = vsub.f32 %v2128, %v2160
        %v2193 = vsub.f32 %v2129, %v2161
        %v2194 = vsub.f32 %v2130, %v2162
        %v2195 = vsub.f32 %v2131, %v2163
        %v2196 = vsub.f32 %v2132, %v2164
        %v2197 = vsub.f32 %v2133, %v2165
        %v2198 = vsub.f32 %v2134, %v2166
        %v2199 = vsub.f32 %v2135, %v2167
        %v2200 = vsub.f32 %v2136, %v2168
        %v2201 = vsub.f32 %v2137, %v2169
        %v2202 = vsub.f32 %v2138, %v2170
        %v2203 = vsub.f32 %v2139, %v2171
        %v2204 = vmax.f32 %v2172, 1e-12
        %v2205 = vmax.f32 %v2173, 1e-12
        %v2206 = vmax.f32 %v2174, 1e-12
        %v2207 = vmax.f32 %v2175, 1e-12
        %v2208 = vmax.f32 %v2176, 1e-12
        %v2209 = vmax.f32 %v2177, 1e-12
        %v2210 = vmax.f32 %v2178, 1e-12
        %v2211 = vmax.f32 %v2179, 1e-12
        %v2212 = vmax.f32 %v2180, 1e-12
        %v2213 = vmax.f32 %v2181, 1e-12
        %v2214 = vmax.f32 %v2182, 1e-12
        %v2215 = vmax.f32 %v2183, 1e-12
        %v2216 = vmax.f32 %v2184, 1e-12
        %v2217 = vmax.f32 %v2185, 1e-12
        %v2218 = vmax.f32 %v2186, 1e-12
        %v2219 = vmax.f32 %v2187, 1e-12
        %v2220 = vmax.f32 %v2188, 1e-12
        %v2221 = vmax.f32 %v2189, 1e-12
        %v2222 = vmax.f32 %v2190, 1e-12
        %v2223 = vmax.f32 %v2191, 1e-12
        %v2224 = vmax.f32 %v2192, 1e-12
        %v2225 = vmax.f32 %v2193, 1e-12
        %v2226 = vmax.f32 %v2194, 1e-12
        %v2227 = vmax.f32 %v2195, 1e-12
        %v2228 = vmax.f32 %v2196, 1e-12
        %v2229 = vmax.f32 %v2197, 1e-12
        %v2230 = vmax.f32 %v2198, 1e-12
        %v2231 = vmax.f32 %v2199, 1e-12
        %v2232 = vmax.f32 %v2200, 1e-12
        %v2233 = vmax.f32 %v2201, 1e-12
        %v2234 = vmax.f32 %v2202, 1e-12
        %v2235 = vmax.f32 %v2203, 1e-12
        %v2236 = vmul.f32 %v2204, 100.0
        %v2237 = vmul.f32 %v2205, 100.0
        %v2238 = vmul.f32 %v2206, 100.0
        %v2239 = vmul.f32 %v2207, 100.0
        %v2240 = vmul.f32 %v2208, 100.0
        %v2241 = vmul.f32 %v2209, 100.0
        %v2242 = vmul.f32 %v2210, 100.0
        %v2243 = vmul.f32 %v2211, 100.0
        %v2244 = vmul.f32 %v2212, 100.0
        %v2245 = vmul.f32 %v2213, 100.0
        %v2246 = vmul.f32 %v2214, 100.0
        %v2247 = vmul.f32 %v2215, 100.0
        %v2248 = vmul.f32 %v2216, 100.0
        %v2249 = vmul.f32 %v2217, 100.0
        %v2250 = vmul.f32 %v2218, 100.0
        %v2251 = vmul.f32 %v2219, 100.0
        %v2252 = vmul.f32 %v2220, 100.0
        %v2253 = vmul.f32 %v2221, 100.0
        %v2254 = vmul.f32 %v2222, 100.0
        %v2255 = vmul.f32 %v2223, 100.0
        %v2256 = vmul.f32 %v2224, 100.0
        %v2257 = vmul.f32 %v2225, 100.0
        %v2258 = vmul.f32 %v2226, 100.0
        %v2259 = vmul.f32 %v2227, 100.0
        %v2260 = vmul.f32 %v2228, 100.0
        %v2261 = vmul.f32 %v2229, 100.0
        %v2262 = vmul.f32 %v2230, 100.0
        %v2263 = vmul.f32 %v2231, 100.0
        %v2264 = vmul.f32 %v2232, 100.0
        %v2265 = vmul.f32 %v2233, 100.0
        %v2266 = vmul.f32 %v2234, 100.0
        %v2267 = vmul.f32 %v2235, 100.0
        %v2268 = vadd.f32 %v2236, 1.0
        %v2269 = vlog2.pop %v2268
        %v2270 = vmul.f32 %v2269, 0.6931472
        %v2271 = vmul.f32 -0.5, %v2236
        %v2272 = vadd.f32 %v2271, 1.0
        %v2273 = vmul.f32 %v2272, %v2236
        %v2274 = vand.u32 2147483647, %v2236
        %vm2275 = vcmp.lt.f32.partialorder %v2274, 0.0004427343
        %v2276 = vsel %vm2275, %v2273, %v2270
        %v2277 = vadd.f32 %v2237, 1.0
        %v2278 = vlog2.pop %v2277
        %v2279 = vmul.f32 %v2278, 0.6931472
        %v2280 = vmul.f32 -0.5, %v2237
        %v2281 = vadd.f32 %v2280, 1.0
        %v2282 = vmul.f32 %v2281, %v2237
        %v2283 = vand.u32 2147483647, %v2237
        %vm2284 = vcmp.lt.f32.partialorder %v2283, 0.0004427343
        %v2285 = vsel %vm2284, %v2282, %v2279
        %v2286 = vadd.f32 %v2238, 1.0
        %v2287 = vlog2.pop %v2286
        %v2288 = vmul.f32 %v2287, 0.6931472
        %v2289 = vmul.f32 -0.5, %v2238
        %v2290 = vadd.f32 %v2289, 1.0
        %v2291 = vmul.f32 %v2290, %v2238
        %v2292 = vand.u32 2147483647, %v2238
        %vm2293 = vcmp.lt.f32.partialorder %v2292, 0.0004427343
        %v2294 = vsel %vm2293, %v2291, %v2288
        %v2295 = vadd.f32 %v2239, 1.0
        %v2296 = vlog2.pop %v2295
        %v2297 = vmul.f32 %v2296, 0.6931472
        %v2298 = vmul.f32 -0.5, %v2239
        %v2299 = vadd.f32 %v2298, 1.0
        %v2300 = vmul.f32 %v2299, %v2239
        %v2301 = vand.u32 2147483647, %v2239
        %vm2302 = vcmp.lt.f32.partialorder %v2301, 0.0004427343
        %v2303 = vsel %vm2302, %v2300, %v2297
        %v2304 = vadd.f32 %v2240, 1.0
        %v2305 = vlog2.pop %v2304
        %v2306 = vmul.f32 %v2305, 0.6931472
        %v2307 = vmul.f32 -0.5, %v2240
        %v2308 = vadd.f32 %v2307, 1.0
        %v2309 = vmul.f32 %v2308, %v2240
        %v2310 = vand.u32 2147483647, %v2240
        %vm2311 = vcmp.lt.f32.partialorder %v2310, 0.0004427343
        %v2312 = vsel %vm2311, %v2309, %v2306
        %v2313 = vadd.f32 %v2241, 1.0
        %v2314 = vlog2.pop %v2313
        %v2315 = vmul.f32 %v2314, 0.6931472
        %v2316 = vmul.f32 -0.5, %v2241
        %v2317 = vadd.f32 %v2316, 1.0
        %v2318 = vmul.f32 %v2317, %v2241
        %v2319 = vand.u32 2147483647, %v2241
        %vm2320 = vcmp.lt.f32.partialorder %v2319, 0.0004427343
        %v2321 = vsel %vm2320, %v2318, %v2315
        %v2322 = vadd.f32 %v2242, 1.0
        %v2323 = vlog2.pop %v2322
        %v2324 = vmul.f32 %v2323, 0.6931472
        %v2325 = vmul.f32 -0.5, %v2242
        %v2326 = vadd.f32 %v2325, 1.0
        %v2327 = vmul.f32 %v2326, %v2242
        %v2328 = vand.u32 2147483647, %v2242
        %vm2329 = vcmp.lt.f32.partialorder %v2328, 0.0004427343
        %v2330 = vsel %vm2329, %v2327, %v2324
        %v2331 = vadd.f32 %v2243, 1.0
        %v2332 = vlog2.pop %v2331
        %v2333 = vmul.f32 %v2332, 0.6931472
        %v2334 = vmul.f32 -0.5, %v2243
        %v2335 = vadd.f32 %v2334, 1.0
        %v2336 = vmul.f32 %v2335, %v2243
        %v2337 = vand.u32 2147483647, %v2243
        %vm2338 = vcmp.lt.f32.partialorder %v2337, 0.0004427343
        %v2339 = vsel %vm2338, %v2336, %v2333
        %v2340 = vadd.f32 %v2244, 1.0
        %v2341 = vlog2.pop %v2340
        %v2342 = vmul.f32 %v2341, 0.6931472
        %v2343 = vmul.f32 -0.5, %v2244
        %v2344 = vadd.f32 %v2343, 1.0
        %v2345 = vmul.f32 %v2344, %v2244
        %v2346 = vand.u32 2147483647, %v2244
        %vm2347 = vcmp.lt.f32.partialorder %v2346, 0.0004427343
        %v2348 = vsel %vm2347, %v2345, %v2342
        %v2349 = vadd.f32 %v2245, 1.0
        %v2350 = vlog2.pop %v2349
        %v2351 = vmul.f32 %v2350, 0.6931472
        %v2352 = vmul.f32 -0.5, %v2245
        %v2353 = vadd.f32 %v2352, 1.0
        %v2354 = vmul.f32 %v2353, %v2245
        %v2355 = vand.u32 2147483647, %v2245
        %vm2356 = vcmp.lt.f32.partialorder %v2355, 0.0004427343
        %v2357 = vsel %vm2356, %v2354, %v2351
        %v2358 = vadd.f32 %v2246, 1.0
        %v2359 = vlog2.pop %v2358
        %v2360 = vmul.f32 %v2359, 0.6931472
        %v2361 = vmul.f32 -0.5, %v2246
        %v2362 = vadd.f32 %v2361, 1.0
        %v2363 = vmul.f32 %v2362, %v2246
        %v2364 = vand.u32 2147483647, %v2246
        %vm2365 = vcmp.lt.f32.partialorder %v2364, 0.0004427343
        %v2366 = vsel %vm2365, %v2363, %v2360
        %v2367 = vadd.f32 %v2247, 1.0
        %v2368 = vlog2.pop %v2367
        %v2369 = vmul.f32 %v2368, 0.6931472
        %v2370 = vmul.f32 -0.5, %v2247
        %v2371 = vadd.f32 %v2370, 1.0
        %v2372 = vmul.f32 %v2371, %v2247
        %v2373 = vand.u32 2147483647, %v2247
        %vm2374 = vcmp.lt.f32.partialorder %v2373, 0.0004427343
        %v2375 = vsel %vm2374, %v2372, %v2369
        %v2376 = vadd.f32 %v2248, 1.0
        %v2377 = vlog2.pop %v2376
        %v2378 = vmul.f32 %v2377, 0.6931472
        %v2379 = vmul.f32 -0.5, %v2248
        %v2380 = vadd.f32 %v2379, 1.0
        %v2381 = vmul.f32 %v2380, %v2248
        %v2382 = vand.u32 2147483647, %v2248
        %vm2383 = vcmp.lt.f32.partialorder %v2382, 0.0004427343
        %v2384 = vsel %vm2383, %v2381, %v2378
        %v2385 = vadd.f32 %v2249, 1.0
        %v2386 = vlog2.pop %v2385
        %v2387 = vmul.f32 %v2386, 0.6931472
        %v2388 = vmul.f32 -0.5, %v2249
        %v2389 = vadd.f32 %v2388, 1.0
        %v2390 = vmul.f32 %v2389, %v2249
        %v2391 = vand.u32 2147483647, %v2249
        %vm2392 = vcmp.lt.f32.partialorder %v2391, 0.0004427343
        %v2393 = vsel %vm2392, %v2390, %v2387
        %v2394 = vadd.f32 %v2250, 1.0
        %v2395 = vlog2.pop %v2394
        %v2396 = vmul.f32 %v2395, 0.6931472
        %v2397 = vmul.f32 -0.5, %v2250
        %v2398 = vadd.f32 %v2397, 1.0
        %v2399 = vmul.f32 %v2398, %v2250
        %v2400 = vand.u32 2147483647, %v2250
        %vm2401 = vcmp.lt.f32.partialorder %v2400, 0.0004427343
        %v2402 = vsel %vm2401, %v2399, %v2396
        %v2403 = vadd.f32 %v2251, 1.0
        %v2404 = vlog2.pop %v2403
        %v2405 = vmul.f32 %v2404, 0.6931472
        %v2406 = vmul.f32 -0.5, %v2251
        %v2407 = vadd.f32 %v2406, 1.0
        %v2408 = vmul.f32 %v2407, %v2251
        %v2409 = vand.u32 2147483647, %v2251
        %vm2410 = vcmp.lt.f32.partialorder %v2409, 0.0004427343
        %v2411 = vsel %vm2410, %v2408, %v2405
        %v2412 = vadd.f32 %v2252, 1.0
        %v2413 = vlog2.pop %v2412
        %v2414 = vmul.f32 %v2413, 0.6931472
        %v2415 = vmul.f32 -0.5, %v2252
        %v2416 = vadd.f32 %v2415, 1.0
        %v2417 = vmul.f32 %v2416, %v2252
        %v2418 = vand.u32 2147483647, %v2252
        %vm2419 = vcmp.lt.f32.partialorder %v2418, 0.0004427343
        %v2420 = vsel %vm2419, %v2417, %v2414
        %v2421 = vadd.f32 %v2253, 1.0
        %v2422 = vlog2.pop %v2421
        %v2423 = vmul.f32 %v2422, 0.6931472
        %v2424 = vmul.f32 -0.5, %v2253
        %v2425 = vadd.f32 %v2424, 1.0
        %v2426 = vmul.f32 %v2425, %v2253
        %v2427 = vand.u32 2147483647, %v2253
        %vm2428 = vcmp.lt.f32.partialorder %v2427, 0.0004427343
        %v2429 = vsel %vm2428, %v2426, %v2423
        %v2430 = vadd.f32 %v2254, 1.0
        %v2431 = vlog2.pop %v2430
        %v2432 = vmul.f32 %v2431, 0.6931472
        %v2433 = vmul.f32 -0.5, %v2254
        %v2434 = vadd.f32 %v2433, 1.0
        %v2435 = vmul.f32 %v2434, %v2254
        %v2436 = vand.u32 2147483647, %v2254
        %vm2437 = vcmp.lt.f32.partialorder %v2436, 0.0004427343
        %v2438 = vsel %vm2437, %v2435, %v2432
        %v2439 = vadd.f32 %v2255, 1.0
        %v2440 = vlog2.pop %v2439
        %v2441 = vmul.f32 %v2440, 0.6931472
        %v2442 = vmul.f32 -0.5, %v2255
        %v2443 = vadd.f32 %v2442, 1.0
        %v2444 = vmul.f32 %v2443, %v2255
        %v2445 = vand.u32 2147483647, %v2255
        %vm2446 = vcmp.lt.f32.partialorder %v2445, 0.0004427343
        %v2447 = vsel %vm2446, %v2444, %v2441
        %v2448 = vadd.f32 %v2256, 1.0
        %v2449 = vlog2.pop %v2448
        %v2450 = vmul.f32 %v2449, 0.6931472
        %v2451 = vmul.f32 -0.5, %v2256
        %v2452 = vadd.f32 %v2451, 1.0
        %v2453 = vmul.f32 %v2452, %v2256
        %v2454 = vand.u32 2147483647, %v2256
        %vm2455 = vcmp.lt.f32.partialorder %v2454, 0.0004427343
        %v2456 = vsel %vm2455, %v2453, %v2450
        %v2457 = vadd.f32 %v2257, 1.0
        %v2458 = vlog2.pop %v2457
        %v2459 = vmul.f32 %v2458, 0.6931472
        %v2460 = vmul.f32 -0.5, %v2257
        %v2461 = vadd.f32 %v2460, 1.0
        %v2462 = vmul.f32 %v2461, %v2257
        %v2463 = vand.u32 2147483647, %v2257
        %vm2464 = vcmp.lt.f32.partialorder %v2463, 0.0004427343
        %v2465 = vsel %vm2464, %v2462, %v2459
        %v2466 = vadd.f32 %v2258, 1.0
        %v2467 = vlog2.pop %v2466
        %v2468 = vmul.f32 %v2467, 0.6931472
        %v2469 = vmul.f32 -0.5, %v2258
        %v2470 = vadd.f32 %v2469, 1.0
        %v2471 = vmul.f32 %v2470, %v2258
        %v2472 = vand.u32 2147483647, %v2258
        %vm2473 = vcmp.lt.f32.partialorder %v2472, 0.0004427343
        %v2474 = vsel %vm2473, %v2471, %v2468
        %v2475 = vadd.f32 %v2259, 1.0
        %v2476 = vlog2.pop %v2475
        %v2477 = vmul.f32 %v2476, 0.6931472
        %v2478 = vmul.f32 -0.5, %v2259
        %v2479 = vadd.f32 %v2478, 1.0
        %v2480 = vmul.f32 %v2479, %v2259
        %v2481 = vand.u32 2147483647, %v2259
        %vm2482 = vcmp.lt.f32.partialorder %v2481, 0.0004427343
        %v2483 = vsel %vm2482, %v2480, %v2477
        %v2484 = vadd.f32 %v2260, 1.0
        %v2485 = vlog2.pop %v2484
        %v2486 = vmul.f32 %v2485, 0.6931472
        %v2487 = vmul.f32 -0.5, %v2260
        %v2488 = vadd.f32 %v2487, 1.0
        %v2489 = vmul.f32 %v2488, %v2260
        %v2490 = vand.u32 2147483647, %v2260
        %vm2491 = vcmp.lt.f32.partialorder %v2490, 0.0004427343
        %v2492 = vsel %vm2491, %v2489, %v2486
        %v2493 = vadd.f32 %v2261, 1.0
        %v2494 = vlog2.pop %v2493
        %v2495 = vmul.f32 %v2494, 0.6931472
        %v2496 = vmul.f32 -0.5, %v2261
        %v2497 = vadd.f32 %v2496, 1.0
        %v2498 = vmul.f32 %v2497, %v2261
        %v2499 = vand.u32 2147483647, %v2261
        %vm2500 = vcmp.lt.f32.partialorder %v2499, 0.0004427343
        %v2501 = vsel %vm2500, %v2498, %v2495
        %v2502 = vadd.f32 %v2262, 1.0
        %v2503 = vlog2.pop %v2502
        %v2504 = vmul.f32 %v2503, 0.6931472
        %v2505 = vmul.f32 -0.5, %v2262
        %v2506 = vadd.f32 %v2505, 1.0
        %v2507 = vmul.f32 %v2506, %v2262
        %v2508 = vand.u32 2147483647, %v2262
        %vm2509 = vcmp.lt.f32.partialorder %v2508, 0.0004427343
        %v2510 = vsel %vm2509, %v2507, %v2504
        %v2511 = vadd.f32 %v2263, 1.0
        %v2512 = vlog2.pop %v2511
        %v2513 = vmul.f32 %v2512, 0.6931472
        %v2514 = vmul.f32 -0.5, %v2263
        %v2515 = vadd.f32 %v2514, 1.0
        %v2516 = vmul.f32 %v2515, %v2263
        %v2517 = vand.u32 2147483647, %v2263
        %vm2518 = vcmp.lt.f32.partialorder %v2517, 0.0004427343
        %v2519 = vsel %vm2518, %v2516, %v2513
        %v2520 = vadd.f32 %v2264, 1.0
        %v2521 = vlog2.pop %v2520
        %v2522 = vmul.f32 %v2521, 0.6931472
        %v2523 = vmul.f32 -0.5, %v2264
        %v2524 = vadd.f32 %v2523, 1.0
        %v2525 = vmul.f32 %v2524, %v2264
        %v2526 = vand.u32 2147483647, %v2264
        %vm2527 = vcmp.lt.f32.partialorder %v2526, 0.0004427343
        %v2528 = vsel %vm2527, %v2525, %v2522
        %v2529 = vadd.f32 %v2265, 1.0
        %v2530 = vlog2.pop %v2529
        %v2531 = vmul.f32 %v2530, 0.6931472
        %v2532 = vmul.f32 -0.5, %v2265
        %v2533 = vadd.f32 %v2532, 1.0
        %v2534 = vmul.f32 %v2533, %v2265
        %v2535 = vand.u32 2147483647, %v2265
        %vm2536 = vcmp.lt.f32.partialorder %v2535, 0.0004427343
        %v2537 = vsel %vm2536, %v2534, %v2531
        %v2538 = vadd.f32 %v2266, 1.0
        %v2539 = vlog2.pop %v2538
        %v2540 = vmul.f32 %v2539, 0.6931472
        %v2541 = vmul.f32 -0.5, %v2266
        %v2542 = vadd.f32 %v2541, 1.0
        %v2543 = vmul.f32 %v2542, %v2266
        %v2544 = vand.u32 2147483647, %v2266
        %vm2545 = vcmp.lt.f32.partialorder %v2544, 0.0004427343
        %v2546 = vsel %vm2545, %v2543, %v2540
        %v2547 = vadd.f32 %v2267, 1.0
        %v2548 = vlog2.pop %v2547
        %v2549 = vmul.f32 %v2548, 0.6931472
        %v2550 = vmul.f32 -0.5, %v2267
        %v2551 = vadd.f32 %v2550, 1.0
        %v2552 = vmul.f32 %v2551, %v2267
        %v2553 = vand.u32 2147483647, %v2267
        %vm2554 = vcmp.lt.f32.partialorder %v2553, 0.0004427343
        %v2555 = vsel %vm2554, %v2552, %v2549
        %v2556 = vmul.f32 %v2276, -0.505
        %v2557 = vmul.f32 %v2285, -0.505
        %v2558 = vmul.f32 %v2294, -0.505
        %v2559 = vmul.f32 %v2303, -0.505
        %v2560 = vmul.f32 %v2312, -0.505
        %v2561 = vmul.f32 %v2321, -0.505
        %v2562 = vmul.f32 %v2330, -0.505
        %v2563 = vmul.f32 %v2339, -0.505
        %v2564 = vmul.f32 %v2348, -0.505
        %v2565 = vmul.f32 %v2357, -0.505
        %v2566 = vmul.f32 %v2366, -0.505
        %v2567 = vmul.f32 %v2375, -0.505
        %v2568 = vmul.f32 %v2384, -0.505
        %v2569 = vmul.f32 %v2393, -0.505
        %v2570 = vmul.f32 %v2402, -0.505
        %v2571 = vmul.f32 %v2411, -0.505
        %v2572 = vmul.f32 %v2420, -0.505
        %v2573 = vmul.f32 %v2429, -0.505
        %v2574 = vmul.f32 %v2438, -0.505
        %v2575 = vmul.f32 %v2447, -0.505
        %v2576 = vmul.f32 %v2456, -0.505
        %v2577 = vmul.f32 %v2465, -0.505
        %v2578 = vmul.f32 %v2474, -0.505
        %v2579 = vmul.f32 %v2483, -0.505
        %v2580 = vmul.f32 %v2492, -0.505
        %v2581 = vmul.f32 %v2501, -0.505
        %v2582 = vmul.f32 %v2510, -0.505
        %v2583 = vmul.f32 %v2519, -0.505
        %v2584 = vmul.f32 %v2528, -0.505
        %v2585 = vmul.f32 %v2537, -0.505
        %v2586 = vmul.f32 %v2546, -0.505
        %v2587 = vmul.f32 %v2555, -0.505
        %v2588 = vadd.f32 %v2556, -1.1652529
        %v2589 = vadd.f32 %v2557, -1.1652529
        %v2590 = vadd.f32 %v2558, -1.1652529
        %v2591 = vadd.f32 %v2559, -1.1652529
        %v2592 = vadd.f32 %v2560, -1.1652529
        %v2593 = vadd.f32 %v2561, -1.1652529
        %v2594 = vadd.f32 %v2562, -1.1652529
        %v2595 = vadd.f32 %v2563, -1.1652529
        %v2596 = vadd.f32 %v2564, -1.1652529
        %v2597 = vadd.f32 %v2565, -1.1652529
        %v2598 = vadd.f32 %v2566, -1.1652529
        %v2599 = vadd.f32 %v2567, -1.1652529
        %v2600 = vadd.f32 %v2568, -1.1652529
        %v2601 = vadd.f32 %v2569, -1.1652529
        %v2602 = vadd.f32 %v2570, -1.1652529
        %v2603 = vadd.f32 %v2571, -1.1652529
        %v2604 = vadd.f32 %v2572, -1.1652529
        %v2605 = vadd.f32 %v2573, -1.1652529
        %v2606 = vadd.f32 %v2574, -1.1652529
        %v2607 = vadd.f32 %v2575, -1.1652529
        %v2608 = vadd.f32 %v2576, -1.1652529
        %v2609 = vadd.f32 %v2577, -1.1652529
        %v2610 = vadd.f32 %v2578, -1.1652529
        %v2611 = vadd.f32 %v2579, -1.1652529
        %v2612 = vadd.f32 %v2580, -1.1652529
        %v2613 = vadd.f32 %v2581, -1.1652529
        %v2614 = vadd.f32 %v2582, -1.1652529
        %v2615 = vadd.f32 %v2583, -1.1652529
        %v2616 = vadd.f32 %v2584, -1.1652529
        %v2617 = vadd.f32 %v2585, -1.1652529
        %v2618 = vadd.f32 %v2586, -1.1652529
        %v2619 = vadd.f32 %v2587, -1.1652529
        %v2620 = vmul.f32 %v2588, 1.442695
        %v2621 = vpow.pop %v2620
        %v2622 = vmul.f32 %v2589, 1.442695
        %v2623 = vpow.pop %v2622
        %v2624 = vmul.f32 %v2590, 1.442695
        %v2625 = vpow.pop %v2624
        %v2626 = vmul.f32 %v2591, 1.442695
        %v2627 = vpow.pop %v2626
        %v2628 = vmul.f32 %v2592, 1.442695
        %v2629 = vpow.pop %v2628
        %v2630 = vmul.f32 %v2593, 1.442695
        %v2631 = vpow.pop %v2630
        %v2632 = vmul.f32 %v2594, 1.442695
        %v2633 = vpow.pop %v2632
        %v2634 = vmul.f32 %v2595, 1.442695
        %v2635 = vpow.pop %v2634
        %v2636 = vmul.f32 %v2596, 1.442695
        %v2637 = vpow.pop %v2636
        %v2638 = vmul.f32 %v2597, 1.442695
        %v2639 = vpow.pop %v2638
        %v2640 = vmul.f32 %v2598, 1.442695
        %v2641 = vpow.pop %v2640
        %v2642 = vmul.f32 %v2599, 1.442695
        %v2643 = vpow.pop %v2642
        %v2644 = vmul.f32 %v2600, 1.442695
        %v2645 = vpow.pop %v2644
        %v2646 = vmul.f32 %v2601, 1.442695
        %v2647 = vpow.pop %v2646
        %v2648 = vmul.f32 %v2602, 1.442695
        %v2649 = vpow.pop %v2648
        %v2650 = vmul.f32 %v2603, 1.442695
        %v2651 = vpow.pop %v2650
        %v2652 = vmul.f32 %v2604, 1.442695
        %v2653 = vpow.pop %v2652
        %v2654 = vmul.f32 %v2605, 1.442695
        %v2655 = vpow.pop %v2654
        %v2656 = vmul.f32 %v2606, 1.442695
        %v2657 = vpow.pop %v2656
        %v2658 = vmul.f32 %v2607, 1.442695
        %v2659 = vpow.pop %v2658
        %v2660 = vmul.f32 %v2608, 1.442695
        %v2661 = vpow.pop %v2660
        %v2662 = vmul.f32 %v2609, 1.442695
        %v2663 = vpow.pop %v2662
        %v2664 = vmul.f32 %v2610, 1.442695
        %v2665 = vpow.pop %v2664
        %v2666 = vmul.f32 %v2611, 1.442695
        %v2667 = vpow.pop %v2666
        %v2668 = vmul.f32 %v2612, 1.442695
        %v2669 = vpow.pop %v2668
        %v2670 = vmul.f32 %v2613, 1.442695
        %v2671 = vpow.pop %v2670
        %v2672 = vmul.f32 %v2614, 1.442695
        %v2673 = vpow.pop %v2672
        %v2674 = vmul.f32 %v2615, 1.442695
        %v2675 = vpow.pop %v2674
        %v2676 = vmul.f32 %v2616, 1.442695
        %v2677 = vpow.pop %v2676
        %v2678 = vmul.f32 %v2617, 1.442695
        %v2679 = vpow.pop %v2678
        %v2680 = vmul.f32 %v2618, 1.442695
        %v2681 = vpow.pop %v2680
        %v2682 = vmul.f32 %v2619, 1.442695
        %v2683 = vpow.pop %v2682
        %v2684 = vadd.f32 %v1641, 1e-12
        %v2685 = vadd.f32 %v1643, 1e-12
        %v2686 = vadd.f32 %v1645, 1e-12
        %v2687 = vadd.f32 %v1647, 1e-12
        %v2688 = vadd.f32 %v1649, 1e-12
        %v2689 = vadd.f32 %v1651, 1e-12
        %v2690 = vadd.f32 %v1653, 1e-12
        %v2691 = vadd.f32 %v1655, 1e-12
        %v2692 = vadd.f32 %v1657, 1e-12
        %v2693 = vadd.f32 %v1659, 1e-12
        %v2694 = vadd.f32 %v1661, 1e-12
        %v2695 = vadd.f32 %v1663, 1e-12
        %v2696 = vadd.f32 %v1665, 1e-12
        %v2697 = vadd.f32 %v1667, 1e-12
        %v2698 = vadd.f32 %v1669, 1e-12
        %v2699 = vadd.f32 %v1671, 1e-12
        %v2700 = vadd.f32 %v1673, 1e-12
        %v2701 = vadd.f32 %v1675, 1e-12
        %v2702 = vadd.f32 %v1677, 1e-12
        %v2703 = vadd.f32 %v1679, 1e-12
        %v2704 = vadd.f32 %v1681, 1e-12
        %v2705 = vadd.f32 %v1683, 1e-12
        %v2706 = vadd.f32 %v1685, 1e-12
        %v2707 = vadd.f32 %v1687, 1e-12
        %v2708 = vadd.f32 %v1689, 1e-12
        %v2709 = vadd.f32 %v1691, 1e-12
        %v2710 = vadd.f32 %v1693, 1e-12
        %v2711 = vadd.f32 %v1695, 1e-12
        %v2712 = vadd.f32 %v1697, 1e-12
        %v2713 = vadd.f32 %v1699, 1e-12
        %v2714 = vadd.f32 %v1701, 1e-12
        %v2715 = vadd.f32 %v1703, 1e-12
        %v2716 = vsub.f32 0.0, %v2621
        %v2717 = vsub.f32 0.0, %v2623
        %v2718 = vsub.f32 0.0, %v2625
        %v2719 = vsub.f32 0.0, %v2627
        %v2720 = vsub.f32 0.0, %v2629
        %v2721 = vsub.f32 0.0, %v2631
        %v2722 = vsub.f32 0.0, %v2633
        %v2723 = vsub.f32 0.0, %v2635
        %v2724 = vsub.f32 0.0, %v2637
        %v2725 = vsub.f32 0.0, %v2639
        %v2726 = vsub.f32 0.0, %v2641
        %v2727 = vsub.f32 0.0, %v2643
        %v2728 = vsub.f32 0.0, %v2645
        %v2729 = vsub.f32 0.0, %v2647
        %v2730 = vsub.f32 0.0, %v2649
        %v2731 = vsub.f32 0.0, %v2651
        %v2732 = vsub.f32 0.0, %v2653
        %v2733 = vsub.f32 0.0, %v2655
        %v2734 = vsub.f32 0.0, %v2657
        %v2735 = vsub.f32 0.0, %v2659
        %v2736 = vsub.f32 0.0, %v2661
        %v2737 = vsub.f32 0.0, %v2663
        %v2738 = vsub.f32 0.0, %v2665
        %v2739 = vsub.f32 0.0, %v2667
        %v2740 = vsub.f32 0.0, %v2669
        %v2741 = vsub.f32 0.0, %v2671
        %v2742 = vsub.f32 0.0, %v2673
        %v2743 = vsub.f32 0.0, %v2675
        %v2744 = vsub.f32 0.0, %v2677
        %v2745 = vsub.f32 0.0, %v2679
        %v2746 = vsub.f32 0.0, %v2681
        %v2747 = vsub.f32 0.0, %v2683
        %v2748 = vadd.f32 %v2716, 1.0
        %v2749 = vlog2.pop %v2748
        %v2750 = vmul.f32 %v2749, 0.6931472
        %v2751 = vmul.f32 -0.5, %v2716
        %v2752 = vadd.f32 %v2751, 1.0
        %v2753 = vmul.f32 %v2752, %v2716
        %v2754 = vand.u32 2147483647, %v2716
        %vm2755 = vcmp.lt.f32.partialorder %v2754, 0.0004427343
        %v2756 = vsel %vm2755, %v2753, %v2750
        %v2757 = vadd.f32 %v2717, 1.0
        %v2758 = vlog2.pop %v2757
        %v2759 = vmul.f32 %v2758, 0.6931472
        %v2760 = vmul.f32 -0.5, %v2717
        %v2761 = vadd.f32 %v2760, 1.0
        %v2762 = vmul.f32 %v2761, %v2717
        %v2763 = vand.u32 2147483647, %v2717
        %vm2764 = vcmp.lt.f32.partialorder %v2763, 0.0004427343
        %v2765 = vsel %vm2764, %v2762, %v2759
        %v2766 = vadd.f32 %v2718, 1.0
        %v2767 = vlog2.pop %v2766
        %v2768 = vmul.f32 %v2767, 0.6931472
        %v2769 = vmul.f32 -0.5, %v2718
        %v2770 = vadd.f32 %v2769, 1.0
        %v2771 = vmul.f32 %v2770, %v2718
        %v2772 = vand.u32 2147483647, %v2718
        %vm2773 = vcmp.lt.f32.partialorder %v2772, 0.0004427343
        %v2774 = vsel %vm2773, %v2771, %v2768
        %v2775 = vadd.f32 %v2719, 1.0
        %v2776 = vlog2.pop %v2775
        %v2777 = vmul.f32 %v2776, 0.6931472
        %v2778 = vmul.f32 -0.5, %v2719
        %v2779 = vadd.f32 %v2778, 1.0
        %v2780 = vmul.f32 %v2779, %v2719
        %v2781 = vand.u32 2147483647, %v2719
        %vm2782 = vcmp.lt.f32.partialorder %v2781, 0.0004427343
        %v2783 = vsel %vm2782, %v2780, %v2777
        %v2784 = vadd.f32 %v2720, 1.0
        %v2785 = vlog2.pop %v2784
        %v2786 = vmul.f32 %v2785, 0.6931472
        %v2787 = vmul.f32 -0.5, %v2720
        %v2788 = vadd.f32 %v2787, 1.0
        %v2789 = vmul.f32 %v2788, %v2720
        %v2790 = vand.u32 2147483647, %v2720
        %vm2791 = vcmp.lt.f32.partialorder %v2790, 0.0004427343
        %v2792 = vsel %vm2791, %v2789, %v2786
        %v2793 = vadd.f32 %v2721, 1.0
        %v2794 = vlog2.pop %v2793
        %v2795 = vmul.f32 %v2794, 0.6931472
        %v2796 = vmul.f32 -0.5, %v2721
        %v2797 = vadd.f32 %v2796, 1.0
        %v2798 = vmul.f32 %v2797, %v2721
        %v2799 = vand.u32 2147483647, %v2721
        %vm2800 = vcmp.lt.f32.partialorder %v2799, 0.0004427343
        %v2801 = vsel %vm2800, %v2798, %v2795
        %v2802 = vadd.f32 %v2722, 1.0
        %v2803 = vlog2.pop %v2802
        %v2804 = vmul.f32 %v2803, 0.6931472
        %v2805 = vmul.f32 -0.5, %v2722
        %v2806 = vadd.f32 %v2805, 1.0
        %v2807 = vmul.f32 %v2806, %v2722
        %v2808 = vand.u32 2147483647, %v2722
        %vm2809 = vcmp.lt.f32.partialorder %v2808, 0.0004427343
        %v2810 = vsel %vm2809, %v2807, %v2804
        %v2811 = vadd.f32 %v2723, 1.0
        %v2812 = vlog2.pop %v2811
        %v2813 = vmul.f32 %v2812, 0.6931472
        %v2814 = vmul.f32 -0.5, %v2723
        %v2815 = vadd.f32 %v2814, 1.0
        %v2816 = vmul.f32 %v2815, %v2723
        %v2817 = vand.u32 2147483647, %v2723
        %vm2818 = vcmp.lt.f32.partialorder %v2817, 0.0004427343
        %v2819 = vsel %vm2818, %v2816, %v2813
        %v2820 = vadd.f32 %v2724, 1.0
        %v2821 = vlog2.pop %v2820
        %v2822 = vmul.f32 %v2821, 0.6931472
        %v2823 = vmul.f32 -0.5, %v2724
        %v2824 = vadd.f32 %v2823, 1.0
        %v2825 = vmul.f32 %v2824, %v2724
        %v2826 = vand.u32 2147483647, %v2724
        %vm2827 = vcmp.lt.f32.partialorder %v2826, 0.0004427343
        %v2828 = vsel %vm2827, %v2825, %v2822
        %v2829 = vadd.f32 %v2725, 1.0
        %v2830 = vlog2.pop %v2829
        %v2831 = vmul.f32 %v2830, 0.6931472
        %v2832 = vmul.f32 -0.5, %v2725
        %v2833 = vadd.f32 %v2832, 1.0
        %v2834 = vmul.f32 %v2833, %v2725
        %v2835 = vand.u32 2147483647, %v2725
        %vm2836 = vcmp.lt.f32.partialorder %v2835, 0.0004427343
        %v2837 = vsel %vm2836, %v2834, %v2831
        %v2838 = vadd.f32 %v2726, 1.0
        %v2839 = vlog2.pop %v2838
        %v2840 = vmul.f32 %v2839, 0.6931472
        %v2841 = vmul.f32 -0.5, %v2726
        %v2842 = vadd.f32 %v2841, 1.0
        %v2843 = vmul.f32 %v2842, %v2726
        %v2844 = vand.u32 2147483647, %v2726
        %vm2845 = vcmp.lt.f32.partialorder %v2844, 0.0004427343
        %v2846 = vsel %vm2845, %v2843, %v2840
        %v2847 = vadd.f32 %v2727, 1.0
        %v2848 = vlog2.pop %v2847
        %v2849 = vmul.f32 %v2848, 0.6931472
        %v2850 = vmul.f32 -0.5, %v2727
        %v2851 = vadd.f32 %v2850, 1.0
        %v2852 = vmul.f32 %v2851, %v2727
        %v2853 = vand.u32 2147483647, %v2727
        %vm2854 = vcmp.lt.f32.partialorder %v2853, 0.0004427343
        %v2855 = vsel %vm2854, %v2852, %v2849
        %v2856 = vadd.f32 %v2728, 1.0
        %v2857 = vlog2.pop %v2856
        %v2858 = vmul.f32 %v2857, 0.6931472
        %v2859 = vmul.f32 -0.5, %v2728
        %v2860 = vadd.f32 %v2859, 1.0
        %v2861 = vmul.f32 %v2860, %v2728
        %v2862 = vand.u32 2147483647, %v2728
        %vm2863 = vcmp.lt.f32.partialorder %v2862, 0.0004427343
        %v2864 = vsel %vm2863, %v2861, %v2858
        %v2865 = vadd.f32 %v2729, 1.0
        %v2866 = vlog2.pop %v2865
        %v2867 = vmul.f32 %v2866, 0.6931472
        %v2868 = vmul.f32 -0.5, %v2729
        %v2869 = vadd.f32 %v2868, 1.0
        %v2870 = vmul.f32 %v2869, %v2729
        %v2871 = vand.u32 2147483647, %v2729
        %vm2872 = vcmp.lt.f32.partialorder %v2871, 0.0004427343
        %v2873 = vsel %vm2872, %v2870, %v2867
        %v2874 = vadd.f32 %v2730, 1.0
        %v2875 = vlog2.pop %v2874
        %v2876 = vmul.f32 %v2875, 0.6931472
        %v2877 = vmul.f32 -0.5, %v2730
        %v2878 = vadd.f32 %v2877, 1.0
        %v2879 = vmul.f32 %v2878, %v2730
        %v2880 = vand.u32 2147483647, %v2730
        %vm2881 = vcmp.lt.f32.partialorder %v2880, 0.0004427343
        %v2882 = vsel %vm2881, %v2879, %v2876
        %v2883 = vadd.f32 %v2731, 1.0
        %v2884 = vlog2.pop %v2883
        %v2885 = vmul.f32 %v2884, 0.6931472
        %v2886 = vmul.f32 -0.5, %v2731
        %v2887 = vadd.f32 %v2886, 1.0
        %v2888 = vmul.f32 %v2887, %v2731
        %v2889 = vand.u32 2147483647, %v2731
        %vm2890 = vcmp.lt.f32.partialorder %v2889, 0.0004427343
        %v2891 = vsel %vm2890, %v2888, %v2885
        %v2892 = vadd.f32 %v2732, 1.0
        %v2893 = vlog2.pop %v2892
        %v2894 = vmul.f32 %v2893, 0.6931472
        %v2895 = vmul.f32 -0.5, %v2732
        %v2896 = vadd.f32 %v2895, 1.0
        %v2897 = vmul.f32 %v2896, %v2732
        %v2898 = vand.u32 2147483647, %v2732
        %vm2899 = vcmp.lt.f32.partialorder %v2898, 0.0004427343
        %v2900 = vsel %vm2899, %v2897, %v2894
        %v2901 = vadd.f32 %v2733, 1.0
        %v2902 = vlog2.pop %v2901
        %v2903 = vmul.f32 %v2902, 0.6931472
        %v2904 = vmul.f32 -0.5, %v2733
        %v2905 = vadd.f32 %v2904, 1.0
        %v2906 = vmul.f32 %v2905, %v2733
        %v2907 = vand.u32 2147483647, %v2733
        %vm2908 = vcmp.lt.f32.partialorder %v2907, 0.0004427343
        %v2909 = vsel %vm2908, %v2906, %v2903
        %v2910 = vadd.f32 %v2734, 1.0
        %v2911 = vlog2.pop %v2910
        %v2912 = vmul.f32 %v2911, 0.6931472
        %v2913 = vmul.f32 -0.5, %v2734
        %v2914 = vadd.f32 %v2913, 1.0
        %v2915 = vmul.f32 %v2914, %v2734
        %v2916 = vand.u32 2147483647, %v2734
        %vm2917 = vcmp.lt.f32.partialorder %v2916, 0.0004427343
        %v2918 = vsel %vm2917, %v2915, %v2912
        %v2919 = vadd.f32 %v2735, 1.0
        %v2920 = vlog2.pop %v2919
        %v2921 = vmul.f32 %v2920, 0.6931472
        %v2922 = vmul.f32 -0.5, %v2735
        %v2923 = vadd.f32 %v2922, 1.0
        %v2924 = vmul.f32 %v2923, %v2735
        %v2925 = vand.u32 2147483647, %v2735
        %vm2926 = vcmp.lt.f32.partialorder %v2925, 0.0004427343
        %v2927 = vsel %vm2926, %v2924, %v2921
        %v2928 = vadd.f32 %v2736, 1.0
        %v2929 = vlog2.pop %v2928
        %v2930 = vmul.f32 %v2929, 0.6931472
        %v2931 = vmul.f32 -0.5, %v2736
        %v2932 = vadd.f32 %v2931, 1.0
        %v2933 = vmul.f32 %v2932, %v2736
        %v2934 = vand.u32 2147483647, %v2736
        %vm2935 = vcmp.lt.f32.partialorder %v2934, 0.0004427343
        %v2936 = vsel %vm2935, %v2933, %v2930
        %v2937 = vadd.f32 %v2737, 1.0
        %v2938 = vlog2.pop %v2937
        %v2939 = vmul.f32 %v2938, 0.6931472
        %v2940 = vmul.f32 -0.5, %v2737
        %v2941 = vadd.f32 %v2940, 1.0
        %v2942 = vmul.f32 %v2941, %v2737
        %v2943 = vand.u32 2147483647, %v2737
        %vm2944 = vcmp.lt.f32.partialorder %v2943, 0.0004427343
        %v2945 = vsel %vm2944, %v2942, %v2939
        %v2946 = vadd.f32 %v2738, 1.0
        %v2947 = vlog2.pop %v2946
        %v2948 = vmul.f32 %v2947, 0.6931472
        %v2949 = vmul.f32 -0.5, %v2738
        %v2950 = vadd.f32 %v2949, 1.0
        %v2951 = vmul.f32 %v2950, %v2738
        %v2952 = vand.u32 2147483647, %v2738
        %vm2953 = vcmp.lt.f32.partialorder %v2952, 0.0004427343
        %v2954 = vsel %vm2953, %v2951, %v2948
        %v2955 = vadd.f32 %v2739, 1.0
        %v2956 = vlog2.pop %v2955
        %v2957 = vmul.f32 %v2956, 0.6931472
        %v2958 = vmul.f32 -0.5, %v2739
        %v2959 = vadd.f32 %v2958, 1.0
        %v2960 = vmul.f32 %v2959, %v2739
        %v2961 = vand.u32 2147483647, %v2739
        %vm2962 = vcmp.lt.f32.partialorder %v2961, 0.0004427343
        %v2963 = vsel %vm2962, %v2960, %v2957
        %v2964 = vadd.f32 %v2740, 1.0
        %v2965 = vlog2.pop %v2964
        %v2966 = vmul.f32 %v2965, 0.6931472
        %v2967 = vmul.f32 -0.5, %v2740
        %v2968 = vadd.f32 %v2967, 1.0
        %v2969 = vmul.f32 %v2968, %v2740
        %v2970 = vand.u32 2147483647, %v2740
        %vm2971 = vcmp.lt.f32.partialorder %v2970, 0.0004427343
        %v2972 = vsel %vm2971, %v2969, %v2966
        %v2973 = vadd.f32 %v2741, 1.0
        %v2974 = vlog2.pop %v2973
        %v2975 = vmul.f32 %v2974, 0.6931472
        %v2976 = vmul.f32 -0.5, %v2741
        %v2977 = vadd.f32 %v2976, 1.0
        %v2978 = vmul.f32 %v2977, %v2741
        %v2979 = vand.u32 2147483647, %v2741
        %vm2980 = vcmp.lt.f32.partialorder %v2979, 0.0004427343
        %v2981 = vsel %vm2980, %v2978, %v2975
        %v2982 = vadd.f32 %v2742, 1.0
        %v2983 = vlog2.pop %v2982
        %v2984 = vmul.f32 %v2983, 0.6931472
        %v2985 = vmul.f32 -0.5, %v2742
        %v2986 = vadd.f32 %v2985, 1.0
        %v2987 = vmul.f32 %v2986, %v2742
        %v2988 = vand.u32 2147483647, %v2742
        %vm2989 = vcmp.lt.f32.partialorder %v2988, 0.0004427343
        %v2990 = vsel %vm2989, %v2987, %v2984
        %v2991 = vadd.f32 %v2743, 1.0
        %v2992 = vlog2.pop %v2991
        %v2993 = vmul.f32 %v2992, 0.6931472
        %v2994 = vmul.f32 -0.5, %v2743
        %v2995 = vadd.f32 %v2994, 1.0
        %v2996 = vmul.f32 %v2995, %v2743
        %v2997 = vand.u32 2147483647, %v2743
        %vm2998 = vcmp.lt.f32.partialorder %v2997, 0.0004427343
        %v2999 = vsel %vm2998, %v2996, %v2993
        %v3000 = vadd.f32 %v2744, 1.0
        %v3001 = vlog2.pop %v3000
        %v3002 = vmul.f32 %v3001, 0.6931472
        %v3003 = vmul.f32 -0.5, %v2744
        %v3004 = vadd.f32 %v3003, 1.0
        %v3005 = vmul.f32 %v3004, %v2744
        %v3006 = vand.u32 2147483647, %v2744
        %vm3007 = vcmp.lt.f32.partialorder %v3006, 0.0004427343
        %v3008 = vsel %vm3007, %v3005, %v3002
        %v3009 = vadd.f32 %v2745, 1.0
        %v3010 = vlog2.pop %v3009
        %v3011 = vmul.f32 %v3010, 0.6931472
        %v3012 = vmul.f32 -0.5, %v2745
        %v3013 = vadd.f32 %v3012, 1.0
        %v3014 = vmul.f32 %v3013, %v2745
        %v3015 = vand.u32 2147483647, %v2745
        %vm3016 = vcmp.lt.f32.partialorder %v3015, 0.0004427343
        %v3017 = vsel %vm3016, %v3014, %v3011
        %v3018 = vadd.f32 %v2746, 1.0
        %v3019 = vlog2.pop %v3018
        %v3020 = vmul.f32 %v3019, 0.6931472
        %v3021 = vmul.f32 -0.5, %v2746
        %v3022 = vadd.f32 %v3021, 1.0
        %v3023 = vmul.f32 %v3022, %v2746
        %v3024 = vand.u32 2147483647, %v2746
        %vm3025 = vcmp.lt.f32.partialorder %v3024, 0.0004427343
        %v3026 = vsel %vm3025, %v3023, %v3020
        %v3027 = vadd.f32 %v2747, 1.0
        %v3028 = vlog2.pop %v3027
        %v3029 = vmul.f32 %v3028, 0.6931472
        %v3030 = vmul.f32 -0.5, %v2747
        %v3031 = vadd.f32 %v3030, 1.0
        %v3032 = vmul.f32 %v3031, %v2747
        %v3033 = vand.u32 2147483647, %v2747
        %vm3034 = vcmp.lt.f32.partialorder %v3033, 0.0004427343
        %v3035 = vsel %vm3034, %v3032, %v3029
        %v3036 = vsub.f32 %v2588, %v2756
        %v3037 = vsub.f32 %v2589, %v2765
        %v3038 = vsub.f32 %v2590, %v2774
        %v3039 = vsub.f32 %v2591, %v2783
        %v3040 = vsub.f32 %v2592, %v2792
        %v3041 = vsub.f32 %v2593, %v2801
        %v3042 = vsub.f32 %v2594, %v2810
        %v3043 = vsub.f32 %v2595, %v2819
        %v3044 = vsub.f32 %v2596, %v2828
        %v3045 = vsub.f32 %v2597, %v2837
        %v3046 = vsub.f32 %v2598, %v2846
        %v3047 = vsub.f32 %v2599, %v2855
        %v3048 = vsub.f32 %v2600, %v2864
        %v3049 = vsub.f32 %v2601, %v2873
        %v3050 = vsub.f32 %v2602, %v2882
        %v3051 = vsub.f32 %v2603, %v2891
        %v3052 = vsub.f32 %v2604, %v2900
        %v3053 = vsub.f32 %v2605, %v2909
        %v3054 = vsub.f32 %v2606, %v2918
        %v3055 = vsub.f32 %v2607, %v2927
        %v3056 = vsub.f32 %v2608, %v2936
        %v3057 = vsub.f32 %v2609, %v2945
        %v3058 = vsub.f32 %v2610, %v2954
        %v3059 = vsub.f32 %v2611, %v2963
        %v3060 = vsub.f32 %v2612, %v2972
        %v3061 = vsub.f32 %v2613, %v2981
        %v3062 = vsub.f32 %v2614, %v2990
        %v3063 = vsub.f32 %v2615, %v2999
        %v3064 = vsub.f32 %v2616, %v3008
        %v3065 = vsub.f32 %v2617, %v3017
        %v3066 = vsub.f32 %v2618, %v3026
        %v3067 = vsub.f32 %v2619, %v3035
        %v3068 = vmul.f32 %v2684, %v3036
        %v3069 = vmul.f32 %v2685, %v3037
        %v3070 = vmul.f32 %v2686, %v3038
        %v3071 = vmul.f32 %v2687, %v3039
        %v3072 = vmul.f32 %v2688, %v3040
        %v3073 = vmul.f32 %v2689, %v3041
        %v3074 = vmul.f32 %v2690, %v3042
        %v3075 = vmul.f32 %v2691, %v3043
        %v3076 = vmul.f32 %v2692, %v3044
        %v3077 = vmul.f32 %v2693, %v3045
        %v3078 = vmul.f32 %v2694, %v3046
        %v3079 = vmul.f32 %v2695, %v3047
        %v3080 = vmul.f32 %v2696, %v3048
        %v3081 = vmul.f32 %v2697, %v3049
        %v3082 = vmul.f32 %v2698, %v3050
        %v3083 = vmul.f32 %v2699, %v3051
        %v3084 = vmul.f32 %v2700, %v3052
        %v3085 = vmul.f32 %v2701, %v3053
        %v3086 = vmul.f32 %v2702, %v3054
        %v3087 = vmul.f32 %v2703, %v3055
        %v3088 = vmul.f32 %v2704, %v3056
        %v3089 = vmul.f32 %v2705, %v3057
        %v3090 = vmul.f32 %v2706, %v3058
        %v3091 = vmul.f32 %v2707, %v3059
        %v3092 = vmul.f32 %v2708, %v3060
        %v3093 = vmul.f32 %v2709, %v3061
        %v3094 = vmul.f32 %v2710, %v3062
        %v3095 = vmul.f32 %v2711, %v3063
        %v3096 = vmul.f32 %v2712, %v3064
        %v3097 = vmul.f32 %v2713, %v3065
        %v3098 = vmul.f32 %v2714, %v3066
        %v3099 = vmul.f32 %v2715, %v3067
        %v3100 = vadd.f32 %v2756, %v3068
        %v3101 = vadd.f32 %v2765, %v3069
        %v3102 = vadd.f32 %v2774, %v3070
        %v3103 = vadd.f32 %v2783, %v3071
        %v3104 = vadd.f32 %v2792, %v3072
        %v3105 = vadd.f32 %v2801, %v3073
        %v3106 = vadd.f32 %v2810, %v3074
        %v3107 = vadd.f32 %v2819, %v3075
        %v3108 = vadd.f32 %v2828, %v3076
        %v3109 = vadd.f32 %v2837, %v3077
        %v3110 = vadd.f32 %v2846, %v3078
        %v3111 = vadd.f32 %v2855, %v3079
        %v3112 = vadd.f32 %v2864, %v3080
        %v3113 = vadd.f32 %v2873, %v3081
        %v3114 = vadd.f32 %v2882, %v3082
        %v3115 = vadd.f32 %v2891, %v3083
        %v3116 = vadd.f32 %v2900, %v3084
        %v3117 = vadd.f32 %v2909, %v3085
        %v3118 = vadd.f32 %v2918, %v3086
        %v3119 = vadd.f32 %v2927, %v3087
        %v3120 = vadd.f32 %v2936, %v3088
        %v3121 = vadd.f32 %v2945, %v3089
        %v3122 = vadd.f32 %v2954, %v3090
        %v3123 = vadd.f32 %v2963, %v3091
        %v3124 = vadd.f32 %v2972, %v3092
        %v3125 = vadd.f32 %v2981, %v3093
        %v3126 = vadd.f32 %v2990, %v3094
        %v3127 = vadd.f32 %v2999, %v3095
        %v3128 = vadd.f32 %v3008, %v3096
        %v3129 = vadd.f32 %v3017, %v3097
        %v3130 = vadd.f32 %v3026, %v3098
        %v3131 = vadd.f32 %v3035, %v3099
        %v3132 = vlaneseq
        %v3133 = vshrl.u32 %v3132, 7
        %v3134 = vadd.s32 %v3133, 8
        %v3135 = vadd.s32 %v3133, 16
        %v3136 = vadd.s32 %v3133, 24
        %v3137 = vadd.s32 %v3133, 32
        %v3138 = vadd.s32 %v3133, 40
        %v3139 = vadd.s32 %v3133, 48
        %v3140 = vadd.s32 %v3133, 56
        %v3141 = vadd.s32 %v3133, 64
        %v3142 = vadd.s32 %v3133, 72
        %v3143 = vadd.s32 %v3133, 80
        %v3144 = vadd.s32 %v3133, 88
        %v3145 = vadd.s32 %v3133, 96
        %v3146 = vadd.s32 %v3133, 104
        %v3147 = vadd.s32 %v3133, 112
        %v3148 = vadd.s32 %v3133, 120
        %v3149 = vstv %s717
        %v3150 = vadd.s32 %v3149, %v3133
        %v3151 = vadd.s32 %v3149, %v3134
        %v3152 = vadd.s32 %v3149, %v3135
        %v3153 = vadd.s32 %v3149, %v3136
        %v3154 = vadd.s32 %v3149, %v3137
        %v3155 = vadd.s32 %v3149, %v3138
        %v3156 = vadd.s32 %v3149, %v3139
        %v3157 = vadd.s32 %v3149, %v3140
        %v3158 = vadd.s32 %v3149, %v3141
        %v3159 = vadd.s32 %v3149, %v3142
        %v3160 = vadd.s32 %v3149, %v3143
        %v3161 = vadd.s32 %v3149, %v3144
        %v3162 = vadd.s32 %v3149, %v3145
        %v3163 = vadd.s32 %v3149, %v3146
        %v3164 = vadd.s32 %v3149, %v3147
        %v3165 = vadd.s32 %v3149, %v3148
        %v3166 = vlaneseq
        %v3167 = vand.u32 %v3166, 127
        %v3168 = vadd.s32 %v3167, 128
        %v3169 = vstv %s718
        %v3170 = vadd.s32 %v3169, %v3167
        %v3171 = vadd.s32 %v3169, %v3168
        %v3172 = vadd.f32 %v3100, %v3102
        %v3173 = vadd.f32 %v3172, %v3104
        %v3174 = vadd.f32 %v3173, %v3106
        %v3175 = vadd.f32 %v3174, %v3108
        %v3176 = vadd.f32 %v3175, %v3110
        %v3177 = vadd.f32 %v3176, %v3112
        %v3178 = vadd.f32 %v3177, %v3114
        %v3179 = vadd.f32 %v3178, %v3116
        %v3180 = vadd.f32 %v3179, %v3118
        %v3181 = vadd.f32 %v3180, %v3120
        %v3182 = vadd.f32 %v3181, %v3122
        %v3183 = vadd.f32 %v3182, %v3124
        %v3184 = vadd.f32 %v3183, %v3126
        %v3185 = vadd.f32 %v3184, %v3128
        %v3186 = vadd.f32 %v3185, %v3130
        %v3187 = vrot.slane %v3186, 4
        %v3188 = vadd.f32 %v3186, %v3187
        %v3189 = vrot.slane %v3188, 2
        %v3190 = vadd.f32 %v3188, %v3189
        %v3191 = vrot.slane %v3190, 1
        %v3192 = vadd.f32 %v3190, %v3191
        %v3193 = vadd.f32 %v3101, %v3103
        %v3194 = vadd.f32 %v3193, %v3105
        %v3195 = vadd.f32 %v3194, %v3107
        %v3196 = vadd.f32 %v3195, %v3109
        %v3197 = vadd.f32 %v3196, %v3111
        %v3198 = vadd.f32 %v3197, %v3113
        %v3199 = vadd.f32 %v3198, %v3115
        %v3200 = vadd.f32 %v3199, %v3117
        %v3201 = vadd.f32 %v3200, %v3119
        %v3202 = vadd.f32 %v3201, %v3121
        %v3203 = vadd.f32 %v3202, %v3123
        %v3204 = vadd.f32 %v3203, %v3125
        %v3205 = vadd.f32 %v3204, %v3127
        %v3206 = vadd.f32 %v3205, %v3129
        %v3207 = vadd.f32 %v3206, %v3131
        %v3208 = vrot.slane %v3207, 4
        %v3209 = vadd.f32 %v3207, %v3208
        %v3210 = vrot.slane %v3209, 2
        %v3211 = vadd.f32 %v3209, %v3210
        %v3212 = vrot.slane %v3211, 1
        %v3213 = vadd.f32 %v3211, %v3212
        %v3216 = vrot.slane %v3213, 7
        %vm3217 = vcmask 1040384
        %v3218 = vsel %vm3217, %v3192, %v3216
        %v3220 = vlaneseq
        %vm3221 = vcmp.ge.s32.totalorder %v3220, 0
        %vm3222 = vcmp.lt.s32.totalorder %v3220, 256
        %vm3223 = vmand %vm3221, %vm3222
        %3224 = vst.msk [vmem:[%s665] sm:$0x3] %vm3223, %v3218
        %s3225 = sadd.s32 %s718, 256
        %p3226 = scmp.lt.s32.totalorder %s717, %s3225
        %s3227 = sadd.s32 %s717, 128
        %p3228 = scmp.lt.s32.totalorder %s718, %s3227
        %p3229 = pnand %p3226, %p3228
        %p3230 = pneg %p3229
        // Predicated region
        $region99: #{tpu_custom_call.1} parent=93 // pred_check
          _
        $region100: #{tpu_custom_call.1} parent=93 // pred_check_branch
          %3232 = sbr.rel (%p3229) target = $region102
        $region101: #{tpu_custom_call.1} parent=93 // pred_region
          %vm3233 = vcmp.eq.s32.totalorder %v3150, %v3170
          %vm3234 = vcmp.eq.s32.totalorder %v3150, %v3171
          %vm3235 = vcmp.eq.s32.totalorder %v3151, %v3170
          %vm3236 = vcmp.eq.s32.totalorder %v3151, %v3171
          %vm3237 = vcmp.eq.s32.totalorder %v3152, %v3170
          %vm3238 = vcmp.eq.s32.totalorder %v3152, %v3171
          %vm3239 = vcmp.eq.s32.totalorder %v3153, %v3170
          %vm3240 = vcmp.eq.s32.totalorder %v3153, %v3171
          %vm3241 = vcmp.eq.s32.totalorder %v3154, %v3170
          %vm3242 = vcmp.eq.s32.totalorder %v3154, %v3171
          %vm3243 = vcmp.eq.s32.totalorder %v3155, %v3170
          %vm3244 = vcmp.eq.s32.totalorder %v3155, %v3171
          %vm3245 = vcmp.eq.s32.totalorder %v3156, %v3170
          %vm3246 = vcmp.eq.s32.totalorder %v3156, %v3171
          %vm3247 = vcmp.eq.s32.totalorder %v3157, %v3170
          %vm3248 = vcmp.eq.s32.totalorder %v3157, %v3171
          %vm3249 = vcmp.eq.s32.totalorder %v3158, %v3170
          %vm3250 = vcmp.eq.s32.totalorder %v3158, %v3171
          %vm3251 = vcmp.eq.s32.totalorder %v3159, %v3170
          %vm3252 = vcmp.eq.s32.totalorder %v3159, %v3171
          %vm3253 = vcmp.eq.s32.totalorder %v3160, %v3170
          %vm3254 = vcmp.eq.s32.totalorder %v3160, %v3171
          %vm3255 = vcmp.eq.s32.totalorder %v3161, %v3170
          %vm3256 = vcmp.eq.s32.totalorder %v3161, %v3171
          %vm3257 = vcmp.eq.s32.totalorder %v3162, %v3170
          %vm3258 = vcmp.eq.s32.totalorder %v3162, %v3171
          %vm3259 = vcmp.eq.s32.totalorder %v3163, %v3170
          %vm3260 = vcmp.eq.s32.totalorder %v3163, %v3171
          %vm3261 = vcmp.eq.s32.totalorder %v3164, %v3170
          %vm3262 = vcmp.eq.s32.totalorder %v3164, %v3171
          %vm3263 = vcmp.eq.s32.totalorder %v3165, %v3170
          %vm3264 = vcmp.eq.s32.totalorder %v3165, %v3171
          %v3265 = vsel %vm3233, %v3100, 0.0
          %v3266 = vsel %vm3234, %v3101, 0.0
          %v3267 = vsel %vm3235, %v3102, 0.0
          %v3268 = vsel %vm3236, %v3103, 0.0
          %v3269 = vsel %vm3237, %v3104, 0.0
          %v3270 = vsel %vm3238, %v3105, 0.0
          %v3271 = vsel %vm3239, %v3106, 0.0
          %v3272 = vsel %vm3240, %v3107, 0.0
          %v3273 = vsel %vm3241, %v3108, 0.0
          %v3274 = vsel %vm3242, %v3109, 0.0
          %v3275 = vsel %vm3243, %v3110, 0.0
          %v3276 = vsel %vm3244, %v3111, 0.0
          %v3277 = vsel %vm3245, %v3112, 0.0
          %v3278 = vsel %vm3246, %v3113, 0.0
          %v3279 = vsel %vm3247, %v3114, 0.0
          %v3280 = vsel %vm3248, %v3115, 0.0
          %v3281 = vsel %vm3249, %v3116, 0.0
          %v3282 = vsel %vm3250, %v3117, 0.0
          %v3283 = vsel %vm3251, %v3118, 0.0
          %v3284 = vsel %vm3252, %v3119, 0.0
          %v3285 = vsel %vm3253, %v3120, 0.0
          %v3286 = vsel %vm3254, %v3121, 0.0
          %v3287 = vsel %vm3255, %v3122, 0.0
          %v3288 = vsel %vm3256, %v3123, 0.0
          %v3289 = vsel %vm3257, %v3124, 0.0
          %v3290 = vsel %vm3258, %v3125, 0.0
          %v3291 = vsel %vm3259, %v3126, 0.0
          %v3292 = vsel %vm3260, %v3127, 0.0
          %v3293 = vsel %vm3261, %v3128, 0.0
          %v3294 = vsel %vm3262, %v3129, 0.0
          %v3295 = vsel %vm3263, %v3130, 0.0
          %v3296 = vsel %vm3264, %v3131, 0.0
          %v3297 = vadd.f32 %v3265, %v3267
          %v3298 = vadd.f32 %v3297, %v3269
          %v3299 = vadd.f32 %v3298, %v3271
          %v3300 = vadd.f32 %v3299, %v3273
          %v3301 = vadd.f32 %v3300, %v3275
          %v3302 = vadd.f32 %v3301, %v3277
          %v3303 = vadd.f32 %v3302, %v3279
          %v3304 = vadd.f32 %v3303, %v3281
          %v3305 = vadd.f32 %v3304, %v3283
          %v3306 = vadd.f32 %v3305, %v3285
          %v3307 = vadd.f32 %v3306, %v3287
          %v3308 = vadd.f32 %v3307, %v3289
          %v3309 = vadd.f32 %v3308, %v3291
          %v3310 = vadd.f32 %v3309, %v3293
          %v3311 = vadd.f32 %v3310, %v3295
          %v3312 = vrot.slane %v3311, 4
          %v3313 = vadd.f32 %v3311, %v3312
          %v3314 = vrot.slane %v3313, 2
          %v3315 = vadd.f32 %v3313, %v3314
          %v3316 = vrot.slane %v3315, 1
          %v3317 = vadd.f32 %v3315, %v3316
          %v3318 = vadd.f32 %v3266, %v3268
          %v3319 = vadd.f32 %v3318, %v3270
          %v3320 = vadd.f32 %v3319, %v3272
          %v3321 = vadd.f32 %v3320, %v3274
          %v3322 = vadd.f32 %v3321, %v3276
          %v3323 = vadd.f32 %v3322, %v3278
          %v3324 = vadd.f32 %v3323, %v3280
          %v3325 = vadd.f32 %v3324, %v3282
          %v3326 = vadd.f32 %v3325, %v3284
          %v3327 = vadd.f32 %v3326, %v3286
          %v3328 = vadd.f32 %v3327, %v3288
          %v3329 = vadd.f32 %v3328, %v3290
          %v3330 = vadd.f32 %v3329, %v3292
          %v3331 = vadd.f32 %v3330, %v3294
          %v3332 = vadd.f32 %v3331, %v3296
          %v3333 = vrot.slane %v3332, 4
          %v3334 = vadd.f32 %v3332, %v3333
          %v3335 = vrot.slane %v3334, 2
          %v3336 = vadd.f32 %v3334, %v3335
          %v3337 = vrot.slane %v3336, 1
          %v3338 = vadd.f32 %v3336, %v3337
          %v3339 = vld [vmem:[%s665] sm:$0x3]
          %v3342 = vrot.slane %v3338, 7
          %v3343 = vsel %vm3217, %v3317, %v3342
          %v3345 = vsub.f32 %v3339, %v3343
          %3346 = vst.msk [vmem:[%s665] sm:$0x3] %vm3223, %v3345
        $region102: #{tpu_custom_call.1} parent=93 // pred_fallthru
          _
        %s3347 = sand.u32 %s306, 1
        %s3348 = scalar_lea.sflag [#allocation4], %s3347
        %s3349 = sand.u32 %s306, 1
        %s3350 = smul.addr %s3349, 2
        %s3351 = scalar_lea.vmem [#allocation3], %s3350
        // Predicated region
        $region103: #{tpu_custom_call.1} parent=93 // pred_check
          %p3352 = pneg %p316
        $region104: #{tpu_custom_call.1} parent=93 // pred_check_branch
          %3354 = sbr.rel (%p3352) target = $region106
        $region105: #{tpu_custom_call.1} parent=93 // pred_region
          %s3355 = smul.u32 2, %s28
          %3357 = vsyncadd %s3348, 0
          %s3358 = smul.addr %s29, 2
          %s3359 = sadd.s32 %s3355, %s3358
          %s3360 = scalar_lea.hbm %s10, %s3359
          %s3362 = sshll.u32 %s3351, 4
          %s3363 = int_to_ptr.vmem [resolvable:$true] %s3362
          %s3364 = sshll.u32 %s3360, 4
          %s3365 = int_to_ptr.hbm [resolvable:$true] %s3364
          %3367 = dma.vmem_to_hbm [thread:$0]  %s3363, 32, %s3365, %s3348
        $region106: #{tpu_custom_call.1} parent=93 // pred_fallthru
          _
      $region94: #{tpu_custom_call.1} parent=5 // pred_fallthru
        _
      %p3368 = scmp.le.s32.totalorder 2, %s19
      // Predicated region
      $region107: #{tpu_custom_call.1} parent=5 // pred_check
        %p3369 = pneg %p3368
      $region108: #{tpu_custom_call.1} parent=5 // pred_check_branch
        %3371 = sbr.rel (%p3369) target = $region110
      $region109: #{tpu_custom_call.1} parent=5 // pred_region
        %s3372 = ssub.s32 %s19, 2
        // Predicated region
        $region111: #{tpu_custom_call.1} parent=109 // pred_check
          %p3373 = pneg %p322
        $region112: #{tpu_custom_call.1} parent=109 // pred_check_branch
          %3375 = sbr.rel (%p3373) target = $region114
        $region113: #{tpu_custom_call.1} parent=109 // pred_region
          %s3376 = sand.u32 %s307, 1
          %s3377 = scalar_lea.sflag [#allocation4], %s3376
          %s3378 = sand.u32 %s307, 1
          %s3379 = smul.addr %s3378, 2
          %s3380 = scalar_lea.vmem [#allocation3], %s3379
          %3382 = dma.done %s3377, 32
        $region114: #{tpu_custom_call.1} parent=109 // pred_fallthru
          _
      $region110: #{tpu_custom_call.1} parent=5 // pred_fallthru
        _
    $region6: #{tpu_custom_call.1} parent=1 // loop_footer
      %s23 = sadd.s32 1, %s19
    $region7: #{tpu_custom_call.1} parent=1 // loop_footer_branch
      %18 = sbr.rel target = $region3
    $region8: #{tpu_custom_call.1} parent=1 // loop_exit
      _
    %3383 = vsyncpa [#allocation4], 1
    %s3384 = scalar_lea.sflag [#allocation4], 1
    %3385 = vsyncpa %s3384, 1

</llo_original>
